<compile_context>
chip_gen: v6e
topology: v6e:2x2x1
jax: 0.10.0
libtpu: 0.0.40
codegen_flags: <defaults>
</compile_context>

<pallas_src>
import math

import jax
import jax.numpy as jnp
from jax.experimental import pallas as pl
from jax.experimental.pallas import tpu as pltpu  # kept for TPU-specific params (unused at these shapes)

# ---- small config consistent with the module (scaled-down defaults) ----
BATCH = 2
N_CHANNELS = 4          # input_shape[0]
SEQ_LEN = 8             # input_shape[1]
N_EMB = 32
N_HEADS = 4
N_LAYERS = 2
HEAD_DIM = N_EMB // N_HEADS
FFN_DIM = 4 * N_EMB
LN_EPS = 1e-5
N_TOKENS = BATCH * SEQ_LEN

# ---- packed-parameter layouts ----
# mats: (N_LAYERS, N_EMB, MAT_LANES)  lanes [0:96]=wqkv, [128:256]=w1, [256:288]=wout
MAT_LANES = 384
QKV_OFF, W1_OFF, WOUT_OFF = 0, 128, 256

# vecs: (VEC_ROWS, 128) — all vectors / pos / attention mask in one buffer
ROW_EMB_W = 0                                  # rows [0:C)      emb_w (C, E)
ROW_EMB_B = N_CHANNELS                         # row 4           emb_b
ROW_LNF_W = N_CHANNELS + 1                     # row 5           ln_f weight
ROW_LNF_B = N_CHANNELS + 2                     # row 6           ln_f bias
ROW_POS = 8                                    # rows [8:8+S)    positional enc (S, E)
ROW_LAYER0 = ROW_POS + SEQ_LEN                 # 8 rows per layer: bqkv,bout,ln1w,ln1b,ln2w,ln2b,b1,b2
ROW_MASK = ROW_LAYER0 + 8 * N_LAYERS           # rows [.. : ..+N) block-diagonal attn mask (N, N)
VEC_ROWS = ROW_MASK + N_TOKENS


# ---------------------------------------------------------------------------
# shared math helpers (used by kernel body and pure-JAX reference)
# ---------------------------------------------------------------------------
def _layernorm(x, w, b):
    mean = jnp.mean(x, axis=-1, keepdims=True)
    var = jnp.mean((x - mean) ** 2, axis=-1, keepdims=True)
    return (x - mean) * jax.lax.rsqrt(var + LN_EPS) * w + b


def _gelu_exact(x):
    # torch F.gelu default (approximate='none'): 0.5*x*(1+erf(x/sqrt(2)))
    return 0.5 * x * (1.0 + jax.lax.erf(x * (1.0 / math.sqrt(2.0))))


# ---------------------------------------------------------------------------
# Pallas kernel: whole batch in one invocation (batch folded into rows)
# ---------------------------------------------------------------------------
def transformer_encoder_kernel(x_ref, mats_ref, w2_ref, vecs_ref, out_ref):
    V = vecs_ref[...]                                            # (VEC_ROWS, 128)
    x = x_ref[...]                                               # (N_TOKENS, C)

    emb_w = V[ROW_EMB_W:ROW_EMB_W + N_CHANNELS, 0:N_EMB]         # (C, E)
    emb_b = V[ROW_EMB_B:ROW_EMB_B + 1, 0:N_EMB]                  # (1, E)
    pos = V[ROW_POS:ROW_POS + SEQ_LEN, 0:N_EMB]                  # (S, E)
    pos_all = jnp.concatenate([pos] * BATCH, axis=0)             # (N, E)
    neg_mask = V[ROW_MASK:ROW_MASK + N_TOKENS, 0:N_TOKENS]       # (N, N) block-diag 0 / -1e30

    # input embedding + positional encoding (dropout = identity in eval)
    h = jnp.dot(x, emb_w, preferred_element_type=jnp.float32) + emb_b + pos_all

    scale = 1.0 / math.sqrt(HEAD_DIM)

    for l in range(N_LAYERS):
        Ml = mats_ref[l]                                         # (E, MAT_LANES)
        wqkv = Ml[:, QKV_OFF:QKV_OFF + 3 * N_EMB]                # (E, 3E)
        w1 = Ml[:, W1_OFF:W1_OFF + FFN_DIM]                      # (E, F)
        wout = Ml[:, WOUT_OFF:WOUT_OFF + N_EMB]                  # (E, E)
        w2 = w2_ref[l]                                           # (F, E)

        base = ROW_LAYER0 + 8 * l
        bqkv = V[base + 0:base + 1, 0:3 * N_EMB]
        bout = V[base + 1:base + 2, 0:N_EMB]
        ln1w = V[base + 2:base + 3, 0:N_EMB]
        ln1b = V[base + 3:base + 4, 0:N_EMB]
        ln2w = V[base + 4:base + 5, 0:N_EMB]
        ln2b = V[base + 5:base + 6, 0:N_EMB]
        b1 = V[base + 6:base + 7, 0:FFN_DIM]
        b2 = V[base + 7:base + 8, 0:N_EMB]

        # ---- pre-LN multi-head self attention (all heads batched) ----
        xn = _layernorm(h, ln1w, ln1b)
        qkv = jnp.dot(xn, wqkv, preferred_element_type=jnp.float32) + bqkv   # (N, 3E)
        q_heads = jnp.stack(
            [qkv[:, i * HEAD_DIM:(i + 1) * HEAD_DIM] for i in range(N_HEADS)], axis=0)
        k_heads = jnp.stack(
            [qkv[:, N_EMB + i * HEAD_DIM:N_EMB + (i + 1) * HEAD_DIM]
             for i in range(N_HEADS)], axis=0)
        v_heads = jnp.stack(
            [qkv[:, 2 * N_EMB + i * HEAD_DIM:2 * N_EMB + (i + 1) * HEAD_DIM]
             for i in range(N_HEADS)], axis=0)                                # (H, N, D)

        s = jnp.einsum("hnd,hmd->hnm", q_heads * scale, k_heads,
                       preferred_element_type=jnp.float32)                    # (H, N, N)
        s = s + neg_mask[None, :, :]                 # keep attention within each batch element
        m = jnp.max(s, axis=-1, keepdims=True)
        e = jnp.exp(s - m)
        p = e * pl.reciprocal(jnp.sum(e, axis=-1, keepdims=True), approx=True)
        ctx = jnp.einsum("hnm,hmd->hnd", p, v_heads,
                         preferred_element_type=jnp.float32)                  # (H, N, D)
        ctx_cat = jnp.concatenate([ctx[i] for i in range(N_HEADS)], axis=-1)  # (N, E)
        h = h + jnp.dot(ctx_cat, wout, preferred_element_type=jnp.float32) + bout

        # ---- pre-LN feed-forward (GELU, 4*n_emb) ----
        xn2 = _layernorm(h, ln2w, ln2b)
        f = _gelu_exact(jnp.dot(xn2, w1, preferred_element_type=jnp.float32) + b1)
        h = h + jnp.dot(f, w2, preferred_element_type=jnp.float32) + b2

    # final LayerNorm
    h = _layernorm(h,
                   V[ROW_LNF_W:ROW_LNF_W + 1, 0:N_EMB],
                   V[ROW_LNF_B:ROW_LNF_B + 1, 0:N_EMB])                        # (N, E)

    # write (B, E, S): the wrapper flatten becomes a free reshape and the order
    # matches torch's permute(0, 2, 1) + flatten(start_dim=1).
    for b in range(BATCH):
        out_ref[b] = h[b * SEQ_LEN:(b + 1) * SEQ_LEN, :].T


def transformer_encoder_1d(x, packed):
    """x: (B, C, S)  ->  (B, n_emb * S)   (pooling_method = FLATTEN)."""
    mats, w2s, vecs = packed
    B = x.shape[0]
    assert B == BATCH and x.shape[1:] == (N_CHANNELS, SEQ_LEN), x.shape
    # (B, C, S) -> (B, S, C) -> fold batch into rows: (B*S, C)
    x2d = jnp.transpose(x, (0, 2, 1)).reshape(B * SEQ_LEN, N_CHANNELS)

    y = pl.pallas_call(
        transformer_encoder_kernel,
        out_shape=jax.ShapeDtypeStruct((B, N_EMB, SEQ_LEN), jnp.float32),
    )(x2d, mats, w2s, vecs)

    # torch: permute(0,2,1) -> Identity pool -> flatten(start_dim=1)
    # kernel already emitted (B, E, S), so this reshape is layout-free.
    return y.reshape(B, N_EMB * SEQ_LEN)


# ---------------------------------------------------------------------------
# parameter packing (host side): 17 arrays -> 3 contiguous buffers
# ---------------------------------------------------------------------------
def pack_params(p):
    mats = jnp.zeros((N_LAYERS, N_EMB, MAT_LANES), jnp.float32)
    mats = mats.at[:, :, QKV_OFF:QKV_OFF + 3 * N_EMB].set(p["wqkv"])
    mats = mats.at[:, :, W1_OFF:W1_OFF + FFN_DIM].set(p["w1"])
    mats = mats.at[:, :, WOUT_OFF:WOUT_OFF + N_EMB].set(p["wout"])

    w2s = p["w2"]                                    # (L, F, E), already natural layout

    vecs = jnp.zeros((VEC_ROWS, 128), jnp.float32)
    vecs = vecs.at[ROW_EMB_W:ROW_EMB_W + N_CHANNELS, 0:N_EMB].set(p["emb_w"])
    vecs = vecs.at[ROW_EMB_B, 0:N_EMB].set(p["emb_b"])
    vecs = vecs.at[ROW_LNF_W, 0:N_EMB].set(p["lnfw"])
    vecs = vecs.at[ROW_LNF_B, 0:N_EMB].set(p["lnfb"])
    vecs = vecs.at[ROW_POS:ROW_POS + SEQ_LEN, 0:N_EMB].set(p["pos"])
    for l in range(N_LAYERS):
        base = ROW_LAYER0 + 8 * l
        vecs = vecs.at[base + 0, 0:3 * N_EMB].set(p["bqkv"][l])
        vecs = vecs.at[base + 1, 0:N_EMB].set(p["bout"][l])
        vecs = vecs.at[base + 2, 0:N_EMB].set(p["ln1w"][l])
        vecs = vecs.at[base + 3, 0:N_EMB].set(p["ln1b"][l])
        vecs = vecs.at[base + 4, 0:N_EMB].set(p["ln2w"][l])
        vecs = vecs.at[base + 5, 0:N_EMB].set(p["ln2b"][l])
        vecs = vecs.at[base + 6, 0:FFN_DIM].set(p["b1"][l])
        vecs = vecs.at[base + 7, 0:N_EMB].set(p["b2"][l])

    # block-diagonal additive attention mask for the batch-folded layout
    bid = jnp.arange(N_TOKENS) // SEQ_LEN
    neg = jnp.where(bid[:, None] == bid[None, :], 0.0, -1e30).astype(jnp.float32)
    vecs = vecs.at[ROW_MASK:ROW_MASK + N_TOKENS, 0:N_TOKENS].set(neg)
    return mats, w2s, vecs


# ---------------------------------------------------------------------------
# pure-JAX reference (independent formulation: per-batch vmap, per-head loop)
# ---------------------------------------------------------------------------
def reference_forward(x, params):
    B = x.shape[0]
    x_bsc = jnp.transpose(x, (0, 2, 1))             # (B, S, C)
    scale = 1.0 / math.sqrt(HEAD_DIM)

    def one(xb):
        h = xb @ params["emb_w"] + params["emb_b"] + params["pos"]
        for l in range(N_LAYERS):
            xn = _layernorm(h, params["ln1w"][l], params["ln1b"][l])
            qkv = xn @ params["wqkv"][l] + params["bqkv"][l]
            q = qkv[:, 0:N_EMB]
            k = qkv[:, N_EMB:2 * N_EMB]
            v = qkv[:, 2 * N_EMB:3 * N_EMB]
            heads = []
            for i in range(N_HEADS):
                sl = slice(i * HEAD_DIM, (i + 1) * HEAD_DIM)
                s = (q[:, sl] * scale) @ k[:, sl].T
                p = jax.nn.softmax(s, axis=-1)
                heads.append(p @ v[:, sl])
            ctx = jnp.concatenate(heads, axis=-1)
            h = h + ctx @ params["wout"][l] + params["bout"][l]
            xn2 = _layernorm(h, params["ln2w"][l], params["ln2b"][l])
            f = _gelu_exact(xn2 @ params["w1"][l] + params["b1"][l])
            h = h + f @ params["w2"][l] + params["b2"][l]
        return _layernorm(h, params["lnfw"], params["lnfb"])

    y = jax.vmap(one)(x_bsc)                        # (B, S, E)
    return jnp.transpose(y, (0, 2, 1)).reshape(B, -1)


# ---------------------------------------------------------------------------
# deterministic parameter construction (synthetic init, no checkpoint load)
# ---------------------------------------------------------------------------
def positional_encoding_1d(seq_len, channels):
    # matches positional_encodings.PositionalEncoding1D (sin/cos interleaved)
    ch = int(math.ceil(channels / 2) * 2)
    inv_freq = 1.0 / (10000.0 ** (jnp.arange(0, ch, 2, dtype=jnp.float32) / ch))
    pos = jnp.arange(seq_len, dtype=jnp.float32)
    sin_inp = pos[:, None] * inv_freq[None, :]
    emb = jnp.stack([jnp.sin(sin_inp), jnp.cos(sin_inp)], axis=-1).reshape(seq_len, ch)
    return emb[:, :channels]


def init_params(key):
    ks = jax.random.split(key, 12)

    def lin(k, fan_in, shape):
        bound = 1.0 / math.sqrt(fan_in)
        return jax.random.uniform(k, shape, jnp.float32, -bound, bound)

    p = {}
    p["emb_w"] = lin(ks[0], N_CHANNELS, (N_CHANNELS, N_EMB))          # (in, out)
    p["emb_b"] = lin(ks[1], N_CHANNELS, (N_EMB,))
    p["pos"] = positional_encoding_1d(SEQ_LEN, N_EMB)
    p["wqkv"] = lin(ks[2], N_EMB, (N_LAYERS, N_EMB, 3 * N_EMB))
    p["bqkv"] = 0.02 * jax.random.normal(ks[3], (N_LAYERS, 3 * N_EMB), jnp.float32)
    p["wout"] = lin(ks[4], N_EMB, (N_LAYERS, N_EMB, N_EMB))
    p["bout"] = lin(ks[5], N_EMB, (N_LAYERS, N_EMB))
    p["ln1w"] = 1.0 + 0.05 * jax.random.normal(ks[6], (N_LAYERS, N_EMB), jnp.float32)
    p["ln1b"] = 0.05 * jax.random.normal(ks[7], (N_LAYERS, N_EMB), jnp.float32)
    p["ln2w"] = 1.0 + 0.05 * jax.random.normal(ks[8], (N_LAYERS, N_EMB), jnp.float32)
    p["ln2b"] = 0.05 * jax.random.normal(ks[9], (N_LAYERS, N_EMB), jnp.float32)
    p["w1"] = lin(ks[10], N_EMB, (N_LAYERS, N_EMB, FFN_DIM))
    p["b1"] = jnp.zeros((N_LAYERS, FFN_DIM), jnp.float32)
    p["w2"] = lin(ks[11], FFN_DIM, (N_LAYERS, FFN_DIM, N_EMB))
    p["b2"] = jnp.zeros((N_LAYERS, N_EMB), jnp.float32)
    p["lnfw"] = jnp.ones((N_EMB,), jnp.float32)
    p["lnfb"] = jnp.zeros((N_EMB,), jnp.float32)
    return p


if __name__ == "__main__":
    key = jax.random.PRNGKey(0)
    kx, kp = jax.random.split(key)
    # module input layout: (batch, n_channels, seq_len)
    x = jax.random.normal(kx, (BATCH, N_CHANNELS, SEQ_LEN), jnp.float32)
    params = init_params(kp)
    packed = pack_params(params)

    out = transformer_encoder_1d(x, packed)
    out = jax.block_until_ready(out)

    assert out.shape == (BATCH, N_EMB * SEQ_LEN), out.shape
    ref = reference_forward(x, params)
    err = float(jnp.max(jnp.abs(out - ref)))
    # tolerance allows for pl.reciprocal(approx=True) in the in-kernel softmax
    assert jnp.allclose(out, ref, rtol=3e-3, atol=3e-3), f"max abs err {err}"
    print("KERNEL_OK")
</pallas_src>

<mosaic_0001>
module attributes {stable_mosaic.version = 11 : i64} {
  func.func @transformer_encoder_kernel(%arg0: memref<16x4xf32, #tpu.memory_space<vmem>>, %arg1: memref<2x32x384xf32, #tpu.memory_space<vmem>>, %arg2: memref<2x128x32xf32, #tpu.memory_space<vmem>>, %arg3: memref<48x128xf32, #tpu.memory_space<vmem>>, %arg4: memref<2x32x8xf32, #tpu.memory_space<vmem>>) attributes {dimension_semantics = [], scalar_prefetch = 0 : i64, scratch_operands = 0 : i64, tpu.core_type = #tpu.core_type<tc>} {
    %c0 = arith.constant 0 : index
    %c0_0 = arith.constant 0 : index
    %0 = vector.load %arg3[%c0, %c0_0] : memref<48x128xf32, #tpu.memory_space<vmem>>, vector<48x128xf32>
    %c0_1 = arith.constant 0 : index
    %c0_2 = arith.constant 0 : index
    %1 = vector.load %arg0[%c0_1, %c0_2] : memref<16x4xf32, #tpu.memory_space<vmem>>, vector<16x4xf32>
    %2 = vector.extract_strided_slice %0 {offsets = [0, 0], sizes = [4, 32], strides = [1, 1]} : vector<48x128xf32> to vector<4x32xf32>
    %3 = vector.extract_strided_slice %0 {offsets = [4, 0], sizes = [1, 32], strides = [1, 1]} : vector<48x128xf32> to vector<1x32xf32>
    %4 = vector.extract_strided_slice %0 {offsets = [8, 0], sizes = [8, 32], strides = [1, 1]} : vector<48x128xf32> to vector<8x32xf32>
    %5 = tpu.concatenate %4, %4 in 0 : vector<8x32xf32>, vector<8x32xf32> -> vector<16x32xf32>
    %6 = vector.extract_strided_slice %0 {offsets = [32, 0], sizes = [16, 16], strides = [1, 1]} : vector<48x128xf32> to vector<16x16xf32>
    %cst = arith.constant dense<0.000000e+00> : vector<16x32xf32>
    %7 = tpu.matmul %1, %2, %cst {dimension_numbers = #tpu.dot_dimension_numbers<[1], [0], [0], [1], [0, 0, 1, 1], [], []>} : vector<16x4xf32>, vector<4x32xf32>, vector<16x32xf32> -> vector<16x32xf32>
    %8 = vector.broadcast %3 : vector<1x32xf32> to vector<16x32xf32>
    %9 = arith.addf %7, %8 : vector<16x32xf32>
    %10 = arith.addf %9, %5 : vector<16x32xf32>
    %c0_3 = arith.constant 0 : index
    %c0_4 = arith.constant 0 : index
    %c0_5 = arith.constant 0 : index
    %11 = vector.load %arg1[%c0_3, %c0_4, %c0_5] : memref<2x32x384xf32, #tpu.memory_space<vmem>>, vector<1x32x384xf32>
    %12 = vector.shape_cast %11 : vector<1x32x384xf32> to vector<32x384xf32>
    %13 = vector.extract_strided_slice %12 {offsets = [0, 0], sizes = [32, 96], strides = [1, 1]} : vector<32x384xf32> to vector<32x96xf32>
    %14 = vector.extract_strided_slice %12 {offsets = [0, 128], sizes = [32, 128], strides = [1, 1]} : vector<32x384xf32> to vector<32x128xf32>
    %15 = vector.extract_strided_slice %12 {offsets = [0, 256], sizes = [32, 32], strides = [1, 1]} : vector<32x384xf32> to vector<32x32xf32>
    %c0_6 = arith.constant 0 : index
    %c0_7 = arith.constant 0 : index
    %c0_8 = arith.constant 0 : index
    %16 = vector.load %arg2[%c0_6, %c0_7, %c0_8] : memref<2x128x32xf32, #tpu.memory_space<vmem>>, vector<1x128x32xf32>
    %17 = vector.shape_cast %16 : vector<1x128x32xf32> to vector<128x32xf32>
    %18 = vector.extract_strided_slice %0 {offsets = [16, 0], sizes = [1, 96], strides = [1, 1]} : vector<48x128xf32> to vector<1x96xf32>
    %19 = vector.extract_strided_slice %0 {offsets = [17, 0], sizes = [1, 32], strides = [1, 1]} : vector<48x128xf32> to vector<1x32xf32>
    %20 = vector.extract_strided_slice %0 {offsets = [18, 0], sizes = [1, 32], strides = [1, 1]} : vector<48x128xf32> to vector<1x32xf32>
    %21 = vector.extract_strided_slice %0 {offsets = [19, 0], sizes = [1, 32], strides = [1, 1]} : vector<48x128xf32> to vector<1x32xf32>
    %22 = vector.extract_strided_slice %0 {offsets = [20, 0], sizes = [1, 32], strides = [1, 1]} : vector<48x128xf32> to vector<1x32xf32>
    %23 = vector.extract_strided_slice %0 {offsets = [21, 0], sizes = [1, 32], strides = [1, 1]} : vector<48x128xf32> to vector<1x32xf32>
    %24 = vector.extract_strided_slice %0 {offsets = [22, 0], sizes = [1, 128], strides = [1, 1]} : vector<48x128xf32> to vector<1x128xf32>
    %25 = vector.extract_strided_slice %0 {offsets = [23, 0], sizes = [1, 32], strides = [1, 1]} : vector<48x128xf32> to vector<1x32xf32>
    %cst_9 = arith.constant dense<0.000000e+00> : vector<16xf32>
    %26 = vector.multi_reduction <add>, %10, %cst_9 [1] : vector<16x32xf32> to vector<16xf32>
    %27 = vector.shape_cast %26 : vector<16xf32> to vector<16x1xf32>
    %cst_10 = arith.constant 3.200000e+01 : f32
    %28 = vector.broadcast %cst_10 : f32 to vector<16x1xf32>
    %29 = arith.divf %27, %28 : vector<16x1xf32>
    %30 = vector.broadcast %29 : vector<16x1xf32> to vector<16x32xf32>
    %31 = arith.subf %10, %30 : vector<16x32xf32>
    %32 = arith.mulf %31, %31 : vector<16x32xf32>
    %cst_11 = arith.constant dense<0.000000e+00> : vector<16xf32>
    %33 = vector.multi_reduction <add>, %32, %cst_11 [1] : vector<16x32xf32> to vector<16xf32>
    %34 = vector.shape_cast %33 : vector<16xf32> to vector<16x1xf32>
    %cst_12 = arith.constant 3.200000e+01 : f32
    %35 = vector.broadcast %cst_12 : f32 to vector<16x1xf32>
    %36 = arith.divf %34, %35 : vector<16x1xf32>
    %37 = vector.broadcast %29 : vector<16x1xf32> to vector<16x32xf32>
    %38 = arith.subf %10, %37 : vector<16x32xf32>
    %cst_13 = arith.constant 9.99999974E-6 : f32
    %39 = vector.broadcast %cst_13 : f32 to vector<16x1xf32>
    %40 = arith.addf %36, %39 : vector<16x1xf32>
    %41 = math.rsqrt %40 : vector<16x1xf32>
    %42 = vector.broadcast %41 : vector<16x1xf32> to vector<16x32xf32>
    %43 = arith.mulf %38, %42 : vector<16x32xf32>
    %44 = vector.broadcast %20 : vector<1x32xf32> to vector<16x32xf32>
    %45 = arith.mulf %43, %44 : vector<16x32xf32>
    %46 = vector.broadcast %21 : vector<1x32xf32> to vector<16x32xf32>
    %47 = arith.addf %45, %46 : vector<16x32xf32>
    %cst_14 = arith.constant dense<0.000000e+00> : vector<16x96xf32>
    %48 = tpu.matmul %47, %13, %cst_14 {dimension_numbers = #tpu.dot_dimension_numbers<[1], [0], [0], [1], [0, 0, 1, 1], [], []>} : vector<16x32xf32>, vector<32x96xf32>, vector<16x96xf32> -> vector<16x96xf32>
    %49 = vector.broadcast %18 : vector<1x96xf32> to vector<16x96xf32>
    %50 = arith.addf %48, %49 : vector<16x96xf32>
    %51 = vector.extract_strided_slice %50 {offsets = [0, 0], sizes = [16, 8], strides = [1, 1]} : vector<16x96xf32> to vector<16x8xf32>
    %52 = vector.extract_strided_slice %50 {offsets = [0, 8], sizes = [16, 8], strides = [1, 1]} : vector<16x96xf32> to vector<16x8xf32>
    %53 = vector.extract_strided_slice %50 {offsets = [0, 16], sizes = [16, 8], strides = [1, 1]} : vector<16x96xf32> to vector<16x8xf32>
    %54 = vector.extract_strided_slice %50 {offsets = [0, 24], sizes = [16, 8], strides = [1, 1]} : vector<16x96xf32> to vector<16x8xf32>
    %55 = vector.shape_cast %51 : vector<16x8xf32> to vector<1x16x8xf32>
    %56 = vector.shape_cast %52 : vector<16x8xf32> to vector<1x16x8xf32>
    %57 = vector.shape_cast %53 : vector<16x8xf32> to vector<1x16x8xf32>
    %58 = vector.shape_cast %54 : vector<16x8xf32> to vector<1x16x8xf32>
    %59 = tpu.concatenate %55, %56, %57, %58 in 0 : vector<1x16x8xf32>, vector<1x16x8xf32>, vector<1x16x8xf32>, vector<1x16x8xf32> -> vector<4x16x8xf32>
    %60 = vector.extract_strided_slice %50 {offsets = [0, 32], sizes = [16, 8], strides = [1, 1]} : vector<16x96xf32> to vector<16x8xf32>
    %61 = vector.extract_strided_slice %50 {offsets = [0, 40], sizes = [16, 8], strides = [1, 1]} : vector<16x96xf32> to vector<16x8xf32>
    %62 = vector.extract_strided_slice %50 {offsets = [0, 48], sizes = [16, 8], strides = [1, 1]} : vector<16x96xf32> to vector<16x8xf32>
    %63 = vector.extract_strided_slice %50 {offsets = [0, 56], sizes = [16, 8], strides = [1, 1]} : vector<16x96xf32> to vector<16x8xf32>
    %64 = vector.shape_cast %60 : vector<16x8xf32> to vector<1x16x8xf32>
    %65 = vector.shape_cast %61 : vector<16x8xf32> to vector<1x16x8xf32>
    %66 = vector.shape_cast %62 : vector<16x8xf32> to vector<1x16x8xf32>
    %67 = vector.shape_cast %63 : vector<16x8xf32> to vector<1x16x8xf32>
    %68 = tpu.concatenate %64, %65, %66, %67 in 0 : vector<1x16x8xf32>, vector<1x16x8xf32>, vector<1x16x8xf32>, vector<1x16x8xf32> -> vector<4x16x8xf32>
    %69 = vector.extract_strided_slice %50 {offsets = [0, 64], sizes = [16, 8], strides = [1, 1]} : vector<16x96xf32> to vector<16x8xf32>
    %70 = vector.extract_strided_slice %50 {offsets = [0, 72], sizes = [16, 8], strides = [1, 1]} : vector<16x96xf32> to vector<16x8xf32>
    %71 = vector.extract_strided_slice %50 {offsets = [0, 80], sizes = [16, 8], strides = [1, 1]} : vector<16x96xf32> to vector<16x8xf32>
    %72 = vector.extract_strided_slice %50 {offsets = [0, 88], sizes = [16, 8], strides = [1, 1]} : vector<16x96xf32> to vector<16x8xf32>
    %73 = vector.shape_cast %69 : vector<16x8xf32> to vector<1x16x8xf32>
    %74 = vector.shape_cast %70 : vector<16x8xf32> to vector<1x16x8xf32>
    %75 = vector.shape_cast %71 : vector<16x8xf32> to vector<1x16x8xf32>
    %76 = vector.shape_cast %72 : vector<16x8xf32> to vector<1x16x8xf32>
    %77 = tpu.concatenate %73, %74, %75, %76 in 0 : vector<1x16x8xf32>, vector<1x16x8xf32>, vector<1x16x8xf32>, vector<1x16x8xf32> -> vector<4x16x8xf32>
    %cst_15 = arith.constant 0.353553385 : f32
    %78 = vector.broadcast %cst_15 : f32 to vector<4x16x8xf32>
    %79 = arith.mulf %59, %78 : vector<4x16x8xf32>
    "tpu.trace_start"() <{level = 10 : i32, message = "hnd,hmd->hnm"}> : () -> ()
    %cst_16 = arith.constant dense<0.000000e+00> : vector<4x16x16xf32>
    %80 = tpu.matmul %79, %68, %cst_16 {dimension_numbers = #tpu.dot_dimension_numbers<[2], [2], [1], [1], [0, 0, 0, 1, 1, 1], [0], [0]>} : vector<4x16x8xf32>, vector<4x16x8xf32>, vector<4x16x16xf32> -> vector<4x16x16xf32>
    "tpu.trace_stop"() : () -> ()
    %81 = vector.shape_cast %6 : vector<16x16xf32> to vector<1x16x16xf32>
    %82 = vector.broadcast %81 : vector<1x16x16xf32> to vector<4x16x16xf32>
    %83 = arith.addf %80, %82 : vector<4x16x16xf32>
    %cst_17 = arith.constant dense<0xFF800000> : vector<4x16xf32>
    %84 = vector.multi_reduction <maximumf>, %83, %cst_17 [2] : vector<4x16x16xf32> to vector<4x16xf32>
    %85 = vector.shape_cast %84 : vector<4x16xf32> to vector<4x16x1xf32>
    %86 = vector.broadcast %85 : vector<4x16x1xf32> to vector<4x16x16xf32>
    %87 = arith.subf %83, %86 : vector<4x16x16xf32>
    %88 = math.exp %87 : vector<4x16x16xf32>
    %cst_18 = arith.constant dense<0.000000e+00> : vector<4x16xf32>
    %89 = vector.multi_reduction <add>, %88, %cst_18 [2] : vector<4x16x16xf32> to vector<4x16xf32>
    %90 = vector.shape_cast %89 : vector<4x16xf32> to vector<4x16x1xf32>
    %91 = tpu.reciprocal %90 {approx = true} : vector<4x16x1xf32> -> vector<4x16x1xf32>
    %92 = vector.broadcast %91 : vector<4x16x1xf32> to vector<4x16x16xf32>
    %93 = arith.mulf %88, %92 : vector<4x16x16xf32>
    "tpu.trace_start"() <{level = 10 : i32, message = "hnm,hmd->hnd"}> : () -> ()
    %cst_19 = arith.constant dense<0.000000e+00> : vector<4x16x8xf32>
    %94 = tpu.matmul %93, %77, %cst_19 {dimension_numbers = #tpu.dot_dimension_numbers<[2], [1], [1], [2], [0, 0, 0, 1, 1, 2], [0], [0]>} : vector<4x16x16xf32>, vector<4x16x8xf32>, vector<4x16x8xf32> -> vector<4x16x8xf32>
    "tpu.trace_stop"() : () -> ()
    %95 = vector.extract_strided_slice %94 {offsets = [0, 0, 0], sizes = [1, 16, 8], strides = [1, 1, 1]} : vector<4x16x8xf32> to vector<1x16x8xf32>
    %96 = vector.shape_cast %95 : vector<1x16x8xf32> to vector<16x8xf32>
    %97 = vector.extract_strided_slice %94 {offsets = [1, 0, 0], sizes = [1, 16, 8], strides = [1, 1, 1]} : vector<4x16x8xf32> to vector<1x16x8xf32>
    %98 = vector.shape_cast %97 : vector<1x16x8xf32> to vector<16x8xf32>
    %99 = vector.extract_strided_slice %94 {offsets = [2, 0, 0], sizes = [1, 16, 8], strides = [1, 1, 1]} : vector<4x16x8xf32> to vector<1x16x8xf32>
    %100 = vector.shape_cast %99 : vector<1x16x8xf32> to vector<16x8xf32>
    %101 = vector.extract_strided_slice %94 {offsets = [3, 0, 0], sizes = [1, 16, 8], strides = [1, 1, 1]} : vector<4x16x8xf32> to vector<1x16x8xf32>
    %102 = vector.shape_cast %101 : vector<1x16x8xf32> to vector<16x8xf32>
    %103 = tpu.concatenate %96, %98, %100, %102 in 1 : vector<16x8xf32>, vector<16x8xf32>, vector<16x8xf32>, vector<16x8xf32> -> vector<16x32xf32>
    %cst_20 = arith.constant dense<0.000000e+00> : vector<16x32xf32>
    %104 = tpu.matmul %103, %15, %cst_20 {dimension_numbers = #tpu.dot_dimension_numbers<[1], [0], [0], [1], [0, 0, 1, 1], [], []>} : vector<16x32xf32>, vector<32x32xf32>, vector<16x32xf32> -> vector<16x32xf32>
    %105 = arith.addf %10, %104 : vector<16x32xf32>
    %106 = vector.broadcast %19 : vector<1x32xf32> to vector<16x32xf32>
    %107 = arith.addf %105, %106 : vector<16x32xf32>
    %cst_21 = arith.constant dense<0.000000e+00> : vector<16xf32>
    %108 = vector.multi_reduction <add>, %107, %cst_21 [1] : vector<16x32xf32> to vector<16xf32>
    %109 = vector.shape_cast %108 : vector<16xf32> to vector<16x1xf32>
    %cst_22 = arith.constant 3.200000e+01 : f32
    %110 = vector.broadcast %cst_22 : f32 to vector<16x1xf32>
    %111 = arith.divf %109, %110 : vector<16x1xf32>
    %112 = vector.broadcast %111 : vector<16x1xf32> to vector<16x32xf32>
    %113 = arith.subf %107, %112 : vector<16x32xf32>
    %114 = arith.mulf %113, %113 : vector<16x32xf32>
    %cst_23 = arith.constant dense<0.000000e+00> : vector<16xf32>
    %115 = vector.multi_reduction <add>, %114, %cst_23 [1] : vector<16x32xf32> to vector<16xf32>
    %116 = vector.shape_cast %115 : vector<16xf32> to vector<16x1xf32>
    %cst_24 = arith.constant 3.200000e+01 : f32
    %117 = vector.broadcast %cst_24 : f32 to vector<16x1xf32>
    %118 = arith.divf %116, %117 : vector<16x1xf32>
    %119 = vector.broadcast %111 : vector<16x1xf32> to vector<16x32xf32>
    %120 = arith.subf %107, %119 : vector<16x32xf32>
    %cst_25 = arith.constant 9.99999974E-6 : f32
    %121 = vector.broadcast %cst_25 : f32 to vector<16x1xf32>
    %122 = arith.addf %118, %121 : vector<16x1xf32>
    %123 = math.rsqrt %122 : vector<16x1xf32>
    %124 = vector.broadcast %123 : vector<16x1xf32> to vector<16x32xf32>
    %125 = arith.mulf %120, %124 : vector<16x32xf32>
    %126 = vector.broadcast %22 : vector<1x32xf32> to vector<16x32xf32>
    %127 = arith.mulf %125, %126 : vector<16x32xf32>
    %128 = vector.broadcast %23 : vector<1x32xf32> to vector<16x32xf32>
    %129 = arith.addf %127, %128 : vector<16x32xf32>
    %cst_26 = arith.constant dense<0.000000e+00> : vector<16x128xf32>
    %130 = tpu.matmul %129, %14, %cst_26 {dimension_numbers = #tpu.dot_dimension_numbers<[1], [0], [0], [1], [0, 0, 1, 1], [], []>} : vector<16x32xf32>, vector<32x128xf32>, vector<16x128xf32> -> vector<16x128xf32>
    %131 = vector.broadcast %24 : vector<1x128xf32> to vector<16x128xf32>
    %132 = arith.addf %130, %131 : vector<16x128xf32>
    %cst_27 = arith.constant 5.000000e-01 : f32
    %133 = vector.broadcast %cst_27 : f32 to vector<16x128xf32>
    %134 = arith.mulf %133, %132 : vector<16x128xf32>
    %cst_28 = arith.constant 0.707106769 : f32
    %135 = vector.broadcast %cst_28 : f32 to vector<16x128xf32>
    %136 = arith.mulf %132, %135 : vector<16x128xf32>
    %137 = math.erf %136 : vector<16x128xf32>
    %cst_29 = arith.constant 1.000000e+00 : f32
    %138 = vector.broadcast %cst_29 : f32 to vector<16x128xf32>
    %139 = arith.addf %138, %137 : vector<16x128xf32>
    %140 = arith.mulf %134, %139 : vector<16x128xf32>
    %cst_30 = arith.constant dense<0.000000e+00> : vector<16x32xf32>
    %141 = tpu.matmul %140, %17, %cst_30 {dimension_numbers = #tpu.dot_dimension_numbers<[1], [0], [0], [1], [0, 0, 1, 1], [], []>} : vector<16x128xf32>, vector<128x32xf32>, vector<16x32xf32> -> vector<16x32xf32>
    %142 = arith.addf %107, %141 : vector<16x32xf32>
    %143 = vector.broadcast %25 : vector<1x32xf32> to vector<16x32xf32>
    %144 = arith.addf %142, %143 : vector<16x32xf32>
    %c1 = arith.constant 1 : index
    %c0_31 = arith.constant 0 : index
    %c0_32 = arith.constant 0 : index
    %145 = vector.load %arg1[%c1, %c0_31, %c0_32] : memref<2x32x384xf32, #tpu.memory_space<vmem>>, vector<1x32x384xf32>
    %146 = vector.shape_cast %145 : vector<1x32x384xf32> to vector<32x384xf32>
    %147 = vector.extract_strided_slice %146 {offsets = [0, 0], sizes = [32, 96], strides = [1, 1]} : vector<32x384xf32> to vector<32x96xf32>
    %148 = vector.extract_strided_slice %146 {offsets = [0, 128], sizes = [32, 128], strides = [1, 1]} : vector<32x384xf32> to vector<32x128xf32>
    %149 = vector.extract_strided_slice %146 {offsets = [0, 256], sizes = [32, 32], strides = [1, 1]} : vector<32x384xf32> to vector<32x32xf32>
    %c1_33 = arith.constant 1 : index
    %c0_34 = arith.constant 0 : index
    %c0_35 = arith.constant 0 : index
    %150 = vector.load %arg2[%c1_33, %c0_34, %c0_35] : memref<2x128x32xf32, #tpu.memory_space<vmem>>, vector<1x128x32xf32>
    %151 = vector.shape_cast %150 : vector<1x128x32xf32> to vector<128x32xf32>
    %152 = vector.extract_strided_slice %0 {offsets = [24, 0], sizes = [1, 96], strides = [1, 1]} : vector<48x128xf32> to vector<1x96xf32>
    %153 = vector.extract_strided_slice %0 {offsets = [25, 0], sizes = [1, 32], strides = [1, 1]} : vector<48x128xf32> to vector<1x32xf32>
    %154 = vector.extract_strided_slice %0 {offsets = [26, 0], sizes = [1, 32], strides = [1, 1]} : vector<48x128xf32> to vector<1x32xf32>
    %155 = vector.extract_strided_slice %0 {offsets = [27, 0], sizes = [1, 32], strides = [1, 1]} : vector<48x128xf32> to vector<1x32xf32>
    %156 = vector.extract_strided_slice %0 {offsets = [28, 0], sizes = [1, 32], strides = [1, 1]} : vector<48x128xf32> to vector<1x32xf32>
    %157 = vector.extract_strided_slice %0 {offsets = [29, 0], sizes = [1, 32], strides = [1, 1]} : vector<48x128xf32> to vector<1x32xf32>
    %158 = vector.extract_strided_slice %0 {offsets = [30, 0], sizes = [1, 128], strides = [1, 1]} : vector<48x128xf32> to vector<1x128xf32>
    %159 = vector.extract_strided_slice %0 {offsets = [31, 0], sizes = [1, 32], strides = [1, 1]} : vector<48x128xf32> to vector<1x32xf32>
    %cst_36 = arith.constant dense<0.000000e+00> : vector<16xf32>
    %160 = vector.multi_reduction <add>, %144, %cst_36 [1] : vector<16x32xf32> to vector<16xf32>
    %161 = vector.shape_cast %160 : vector<16xf32> to vector<16x1xf32>
    %cst_37 = arith.constant 3.200000e+01 : f32
    %162 = vector.broadcast %cst_37 : f32 to vector<16x1xf32>
    %163 = arith.divf %161, %162 : vector<16x1xf32>
    %164 = vector.broadcast %163 : vector<16x1xf32> to vector<16x32xf32>
    %165 = arith.subf %144, %164 : vector<16x32xf32>
    %166 = arith.mulf %165, %165 : vector<16x32xf32>
    %cst_38 = arith.constant dense<0.000000e+00> : vector<16xf32>
    %167 = vector.multi_reduction <add>, %166, %cst_38 [1] : vector<16x32xf32> to vector<16xf32>
    %168 = vector.shape_cast %167 : vector<16xf32> to vector<16x1xf32>
    %cst_39 = arith.constant 3.200000e+01 : f32
    %169 = vector.broadcast %cst_39 : f32 to vector<16x1xf32>
    %170 = arith.divf %168, %169 : vector<16x1xf32>
    %171 = vector.broadcast %163 : vector<16x1xf32> to vector<16x32xf32>
    %172 = arith.subf %144, %171 : vector<16x32xf32>
    %cst_40 = arith.constant 9.99999974E-6 : f32
    %173 = vector.broadcast %cst_40 : f32 to vector<16x1xf32>
    %174 = arith.addf %170, %173 : vector<16x1xf32>
    %175 = math.rsqrt %174 : vector<16x1xf32>
    %176 = vector.broadcast %175 : vector<16x1xf32> to vector<16x32xf32>
    %177 = arith.mulf %172, %176 : vector<16x32xf32>
    %178 = vector.broadcast %154 : vector<1x32xf32> to vector<16x32xf32>
    %179 = arith.mulf %177, %178 : vector<16x32xf32>
    %180 = vector.broadcast %155 : vector<1x32xf32> to vector<16x32xf32>
    %181 = arith.addf %179, %180 : vector<16x32xf32>
    %cst_41 = arith.constant dense<0.000000e+00> : vector<16x96xf32>
    %182 = tpu.matmul %181, %147, %cst_41 {dimension_numbers = #tpu.dot_dimension_numbers<[1], [0], [0], [1], [0, 0, 1, 1], [], []>} : vector<16x32xf32>, vector<32x96xf32>, vector<16x96xf32> -> vector<16x96xf32>
    %183 = vector.broadcast %152 : vector<1x96xf32> to vector<16x96xf32>
    %184 = arith.addf %182, %183 : vector<16x96xf32>
    %185 = vector.extract_strided_slice %184 {offsets = [0, 0], sizes = [16, 8], strides = [1, 1]} : vector<16x96xf32> to vector<16x8xf32>
    %186 = vector.extract_strided_slice %184 {offsets = [0, 8], sizes = [16, 8], strides = [1, 1]} : vector<16x96xf32> to vector<16x8xf32>
    %187 = vector.extract_strided_slice %184 {offsets = [0, 16], sizes = [16, 8], strides = [1, 1]} : vector<16x96xf32> to vector<16x8xf32>
    %188 = vector.extract_strided_slice %184 {offsets = [0, 24], sizes = [16, 8], strides = [1, 1]} : vector<16x96xf32> to vector<16x8xf32>
    %189 = vector.shape_cast %185 : vector<16x8xf32> to vector<1x16x8xf32>
    %190 = vector.shape_cast %186 : vector<16x8xf32> to vector<1x16x8xf32>
    %191 = vector.shape_cast %187 : vector<16x8xf32> to vector<1x16x8xf32>
    %192 = vector.shape_cast %188 : vector<16x8xf32> to vector<1x16x8xf32>
    %193 = tpu.concatenate %189, %190, %191, %192 in 0 : vector<1x16x8xf32>, vector<1x16x8xf32>, vector<1x16x8xf32>, vector<1x16x8xf32> -> vector<4x16x8xf32>
    %194 = vector.extract_strided_slice %184 {offsets = [0, 32], sizes = [16, 8], strides = [1, 1]} : vector<16x96xf32> to vector<16x8xf32>
    %195 = vector.extract_strided_slice %184 {offsets = [0, 40], sizes = [16, 8], strides = [1, 1]} : vector<16x96xf32> to vector<16x8xf32>
    %196 = vector.extract_strided_slice %184 {offsets = [0, 48], sizes = [16, 8], strides = [1, 1]} : vector<16x96xf32> to vector<16x8xf32>
    %197 = vector.extract_strided_slice %184 {offsets = [0, 56], sizes = [16, 8], strides = [1, 1]} : vector<16x96xf32> to vector<16x8xf32>
    %198 = vector.shape_cast %194 : vector<16x8xf32> to vector<1x16x8xf32>
    %199 = vector.shape_cast %195 : vector<16x8xf32> to vector<1x16x8xf32>
    %200 = vector.shape_cast %196 : vector<16x8xf32> to vector<1x16x8xf32>
    %201 = vector.shape_cast %197 : vector<16x8xf32> to vector<1x16x8xf32>
    %202 = tpu.concatenate %198, %199, %200, %201 in 0 : vector<1x16x8xf32>, vector<1x16x8xf32>, vector<1x16x8xf32>, vector<1x16x8xf32> -> vector<4x16x8xf32>
    %203 = vector.extract_strided_slice %184 {offsets = [0, 64], sizes = [16, 8], strides = [1, 1]} : vector<16x96xf32> to vector<16x8xf32>
    %204 = vector.extract_strided_slice %184 {offsets = [0, 72], sizes = [16, 8], strides = [1, 1]} : vector<16x96xf32> to vector<16x8xf32>
    %205 = vector.extract_strided_slice %184 {offsets = [0, 80], sizes = [16, 8], strides = [1, 1]} : vector<16x96xf32> to vector<16x8xf32>
    %206 = vector.extract_strided_slice %184 {offsets = [0, 88], sizes = [16, 8], strides = [1, 1]} : vector<16x96xf32> to vector<16x8xf32>
    %207 = vector.shape_cast %203 : vector<16x8xf32> to vector<1x16x8xf32>
    %208 = vector.shape_cast %204 : vector<16x8xf32> to vector<1x16x8xf32>
    %209 = vector.shape_cast %205 : vector<16x8xf32> to vector<1x16x8xf32>
    %210 = vector.shape_cast %206 : vector<16x8xf32> to vector<1x16x8xf32>
    %211 = tpu.concatenate %207, %208, %209, %210 in 0 : vector<1x16x8xf32>, vector<1x16x8xf32>, vector<1x16x8xf32>, vector<1x16x8xf32> -> vector<4x16x8xf32>
    %cst_42 = arith.constant 0.353553385 : f32
    %212 = vector.broadcast %cst_42 : f32 to vector<4x16x8xf32>
    %213 = arith.mulf %193, %212 : vector<4x16x8xf32>
    "tpu.trace_start"() <{level = 10 : i32, message = "hnd,hmd->hnm"}> : () -> ()
    %cst_43 = arith.constant dense<0.000000e+00> : vector<4x16x16xf32>
    %214 = tpu.matmul %213, %202, %cst_43 {dimension_numbers = #tpu.dot_dimension_numbers<[2], [2], [1], [1], [0, 0, 0, 1, 1, 1], [0], [0]>} : vector<4x16x8xf32>, vector<4x16x8xf32>, vector<4x16x16xf32> -> vector<4x16x16xf32>
    "tpu.trace_stop"() : () -> ()
    %215 = vector.shape_cast %6 : vector<16x16xf32> to vector<1x16x16xf32>
    %216 = vector.broadcast %215 : vector<1x16x16xf32> to vector<4x16x16xf32>
    %217 = arith.addf %214, %216 : vector<4x16x16xf32>
    %cst_44 = arith.constant dense<0xFF800000> : vector<4x16xf32>
    %218 = vector.multi_reduction <maximumf>, %217, %cst_44 [2] : vector<4x16x16xf32> to vector<4x16xf32>
    %219 = vector.shape_cast %218 : vector<4x16xf32> to vector<4x16x1xf32>
    %220 = vector.broadcast %219 : vector<4x16x1xf32> to vector<4x16x16xf32>
    %221 = arith.subf %217, %220 : vector<4x16x16xf32>
    %222 = math.exp %221 : vector<4x16x16xf32>
    %cst_45 = arith.constant dense<0.000000e+00> : vector<4x16xf32>
    %223 = vector.multi_reduction <add>, %222, %cst_45 [2] : vector<4x16x16xf32> to vector<4x16xf32>
    %224 = vector.shape_cast %223 : vector<4x16xf32> to vector<4x16x1xf32>
    %225 = tpu.reciprocal %224 {approx = true} : vector<4x16x1xf32> -> vector<4x16x1xf32>
    %226 = vector.broadcast %225 : vector<4x16x1xf32> to vector<4x16x16xf32>
    %227 = arith.mulf %222, %226 : vector<4x16x16xf32>
    "tpu.trace_start"() <{level = 10 : i32, message = "hnm,hmd->hnd"}> : () -> ()
    %cst_46 = arith.constant dense<0.000000e+00> : vector<4x16x8xf32>
    %228 = tpu.matmul %227, %211, %cst_46 {dimension_numbers = #tpu.dot_dimension_numbers<[2], [1], [1], [2], [0, 0, 0, 1, 1, 2], [0], [0]>} : vector<4x16x16xf32>, vector<4x16x8xf32>, vector<4x16x8xf32> -> vector<4x16x8xf32>
    "tpu.trace_stop"() : () -> ()
    %229 = vector.extract_strided_slice %228 {offsets = [0, 0, 0], sizes = [1, 16, 8], strides = [1, 1, 1]} : vector<4x16x8xf32> to vector<1x16x8xf32>
    %230 = vector.shape_cast %229 : vector<1x16x8xf32> to vector<16x8xf32>
    %231 = vector.extract_strided_slice %228 {offsets = [1, 0, 0], sizes = [1, 16, 8], strides = [1, 1, 1]} : vector<4x16x8xf32> to vector<1x16x8xf32>
    %232 = vector.shape_cast %231 : vector<1x16x8xf32> to vector<16x8xf32>
    %233 = vector.extract_strided_slice %228 {offsets = [2, 0, 0], sizes = [1, 16, 8], strides = [1, 1, 1]} : vector<4x16x8xf32> to vector<1x16x8xf32>
    %234 = vector.shape_cast %233 : vector<1x16x8xf32> to vector<16x8xf32>
    %235 = vector.extract_strided_slice %228 {offsets = [3, 0, 0], sizes = [1, 16, 8], strides = [1, 1, 1]} : vector<4x16x8xf32> to vector<1x16x8xf32>
    %236 = vector.shape_cast %235 : vector<1x16x8xf32> to vector<16x8xf32>
    %237 = tpu.concatenate %230, %232, %234, %236 in 1 : vector<16x8xf32>, vector<16x8xf32>, vector<16x8xf32>, vector<16x8xf32> -> vector<16x32xf32>
    %cst_47 = arith.constant dense<0.000000e+00> : vector<16x32xf32>
    %238 = tpu.matmul %237, %149, %cst_47 {dimension_numbers = #tpu.dot_dimension_numbers<[1], [0], [0], [1], [0, 0, 1, 1], [], []>} : vector<16x32xf32>, vector<32x32xf32>, vector<16x32xf32> -> vector<16x32xf32>
    %239 = arith.addf %144, %238 : vector<16x32xf32>
    %240 = vector.broadcast %153 : vector<1x32xf32> to vector<16x32xf32>
    %241 = arith.addf %239, %240 : vector<16x32xf32>
    %cst_48 = arith.constant dense<0.000000e+00> : vector<16xf32>
    %242 = vector.multi_reduction <add>, %241, %cst_48 [1] : vector<16x32xf32> to vector<16xf32>
    %243 = vector.shape_cast %242 : vector<16xf32> to vector<16x1xf32>
    %cst_49 = arith.constant 3.200000e+01 : f32
    %244 = vector.broadcast %cst_49 : f32 to vector<16x1xf32>
    %245 = arith.divf %243, %244 : vector<16x1xf32>
    %246 = vector.broadcast %245 : vector<16x1xf32> to vector<16x32xf32>
    %247 = arith.subf %241, %246 : vector<16x32xf32>
    %248 = arith.mulf %247, %247 : vector<16x32xf32>
    %cst_50 = arith.constant dense<0.000000e+00> : vector<16xf32>
    %249 = vector.multi_reduction <add>, %248, %cst_50 [1] : vector<16x32xf32> to vector<16xf32>
    %250 = vector.shape_cast %249 : vector<16xf32> to vector<16x1xf32>
    %cst_51 = arith.constant 3.200000e+01 : f32
    %251 = vector.broadcast %cst_51 : f32 to vector<16x1xf32>
    %252 = arith.divf %250, %251 : vector<16x1xf32>
    %253 = vector.broadcast %245 : vector<16x1xf32> to vector<16x32xf32>
    %254 = arith.subf %241, %253 : vector<16x32xf32>
    %cst_52 = arith.constant 9.99999974E-6 : f32
    %255 = vector.broadcast %cst_52 : f32 to vector<16x1xf32>
    %256 = arith.addf %252, %255 : vector<16x1xf32>
    %257 = math.rsqrt %256 : vector<16x1xf32>
    %258 = vector.broadcast %257 : vector<16x1xf32> to vector<16x32xf32>
    %259 = arith.mulf %254, %258 : vector<16x32xf32>
    %260 = vector.broadcast %156 : vector<1x32xf32> to vector<16x32xf32>
    %261 = arith.mulf %259, %260 : vector<16x32xf32>
    %262 = vector.broadcast %157 : vector<1x32xf32> to vector<16x32xf32>
    %263 = arith.addf %261, %262 : vector<16x32xf32>
    %cst_53 = arith.constant dense<0.000000e+00> : vector<16x128xf32>
    %264 = tpu.matmul %263, %148, %cst_53 {dimension_numbers = #tpu.dot_dimension_numbers<[1], [0], [0], [1], [0, 0, 1, 1], [], []>} : vector<16x32xf32>, vector<32x128xf32>, vector<16x128xf32> -> vector<16x128xf32>
    %265 = vector.broadcast %158 : vector<1x128xf32> to vector<16x128xf32>
    %266 = arith.addf %264, %265 : vector<16x128xf32>
    %cst_54 = arith.constant 5.000000e-01 : f32
    %267 = vector.broadcast %cst_54 : f32 to vector<16x128xf32>
    %268 = arith.mulf %267, %266 : vector<16x128xf32>
    %cst_55 = arith.constant 0.707106769 : f32
    %269 = vector.broadcast %cst_55 : f32 to vector<16x128xf32>
    %270 = arith.mulf %266, %269 : vector<16x128xf32>
    %271 = math.erf %270 : vector<16x128xf32>
    %cst_56 = arith.constant 1.000000e+00 : f32
    %272 = vector.broadcast %cst_56 : f32 to vector<16x128xf32>
    %273 = arith.addf %272, %271 : vector<16x128xf32>
    %274 = arith.mulf %268, %273 : vector<16x128xf32>
    %cst_57 = arith.constant dense<0.000000e+00> : vector<16x32xf32>
    %275 = tpu.matmul %274, %151, %cst_57 {dimension_numbers = #tpu.dot_dimension_numbers<[1], [0], [0], [1], [0, 0, 1, 1], [], []>} : vector<16x128xf32>, vector<128x32xf32>, vector<16x32xf32> -> vector<16x32xf32>
    %276 = arith.addf %241, %275 : vector<16x32xf32>
    %277 = vector.broadcast %159 : vector<1x32xf32> to vector<16x32xf32>
    %278 = arith.addf %276, %277 : vector<16x32xf32>
    %279 = vector.extract_strided_slice %0 {offsets = [5, 0], sizes = [1, 32], strides = [1, 1]} : vector<48x128xf32> to vector<1x32xf32>
    %280 = vector.extract_strided_slice %0 {offsets = [6, 0], sizes = [1, 32], strides = [1, 1]} : vector<48x128xf32> to vector<1x32xf32>
    %cst_58 = arith.constant dense<0.000000e+00> : vector<16xf32>
    %281 = vector.multi_reduction <add>, %278, %cst_58 [1] : vector<16x32xf32> to vector<16xf32>
    %282 = vector.shape_cast %281 : vector<16xf32> to vector<16x1xf32>
    %cst_59 = arith.constant 3.200000e+01 : f32
    %283 = vector.broadcast %cst_59 : f32 to vector<16x1xf32>
    %284 = arith.divf %282, %283 : vector<16x1xf32>
    %285 = vector.broadcast %284 : vector<16x1xf32> to vector<16x32xf32>
    %286 = arith.subf %278, %285 : vector<16x32xf32>
    %287 = arith.mulf %286, %286 : vector<16x32xf32>
    %cst_60 = arith.constant dense<0.000000e+00> : vector<16xf32>
    %288 = vector.multi_reduction <add>, %287, %cst_60 [1] : vector<16x32xf32> to vector<16xf32>
    %289 = vector.shape_cast %288 : vector<16xf32> to vector<16x1xf32>
    %cst_61 = arith.constant 3.200000e+01 : f32
    %290 = vector.broadcast %cst_61 : f32 to vector<16x1xf32>
    %291 = arith.divf %289, %290 : vector<16x1xf32>
    %292 = vector.broadcast %284 : vector<16x1xf32> to vector<16x32xf32>
    %293 = arith.subf %278, %292 : vector<16x32xf32>
    %cst_62 = arith.constant 9.99999974E-6 : f32
    %294 = vector.broadcast %cst_62 : f32 to vector<16x1xf32>
    %295 = arith.addf %291, %294 : vector<16x1xf32>
    %296 = math.rsqrt %295 : vector<16x1xf32>
    %297 = vector.broadcast %296 : vector<16x1xf32> to vector<16x32xf32>
    %298 = arith.mulf %293, %297 : vector<16x32xf32>
    %299 = vector.broadcast %279 : vector<1x32xf32> to vector<16x32xf32>
    %300 = arith.mulf %298, %299 : vector<16x32xf32>
    %301 = vector.broadcast %280 : vector<1x32xf32> to vector<16x32xf32>
    %302 = arith.addf %300, %301 : vector<16x32xf32>
    %303 = vector.extract_strided_slice %302 {offsets = [0, 0], sizes = [8, 32], strides = [1, 1]} : vector<16x32xf32> to vector<8x32xf32>
    %304 = tpu.transpose %303, [1, 0] : vector<8x32xf32> -> vector<32x8xf32>
    %c0_63 = arith.constant 0 : index
    %c0_64 = arith.constant 0 : index
    %c0_65 = arith.constant 0 : index
    %305 = vector.load %arg4[%c0_63, %c0_64, %c0_65] : memref<2x32x8xf32, #tpu.memory_space<vmem>>, vector<1x32x8xf32>
    %306 = vector.shape_cast %305 : vector<1x32x8xf32> to vector<32x8xf32>
    %307 = vector.shape_cast %304 : vector<32x8xf32> to vector<1x32x8xf32>
    tpu.vector_store %arg4[%c0_63, %c0_64, %c0_65], %307 {strides = array<i32>} : memref<2x32x8xf32, #tpu.memory_space<vmem>>, vector<1x32x8xf32>,
    %308 = vector.extract_strided_slice %302 {offsets = [8, 0], sizes = [8, 32], strides = [1, 1]} : vector<16x32xf32> to vector<8x32xf32>
    %309 = tpu.transpose %308, [1, 0] : vector<8x32xf32> -> vector<32x8xf32>
    %c1_66 = arith.constant 1 : index
    %c0_67 = arith.constant 0 : index
    %c0_68 = arith.constant 0 : index
    %310 = vector.load %arg4[%c1_66, %c0_67, %c0_68] : memref<2x32x8xf32, #tpu.memory_space<vmem>>, vector<1x32x8xf32>
    %311 = vector.shape_cast %310 : vector<1x32x8xf32> to vector<32x8xf32>
    %312 = vector.shape_cast %309 : vector<32x8xf32> to vector<1x32x8xf32>
    tpu.vector_store %arg4[%c1_66, %c0_67, %c0_68], %312 {strides = array<i32>} : memref<2x32x8xf32, #tpu.memory_space<vmem>>, vector<1x32x8xf32>,
    return
  }
}

</mosaic_0001>

<llo_original>
// kernel: tpu_custom_call.1
$region0: #{tpu_custom_call.1}
  #allocation0 [shape = 'u32[]', space=smem, size = 0x4, offset = 0x4, fixed_abs, tag = 'smem constant byte address 0x4 - core index']
  #allocation1 [shape = 'u32[144,128]{1,0:T(1,128)}', space=vmem, size = 0x12000, scoped, tag = 'internal scratch']
  %s0 = inlined_call_operand.vmem [shape: f32[16,4], index: 0, kind: input, shape index: {}]
  %s1 = inlined_call_operand.vmem [shape: f32[2,32,384], index: 1, kind: input, shape index: {}]
  %s2 = inlined_call_operand.vmem [shape: f32[2,128,32], index: 2, kind: input, shape index: {}]
  %s3 = inlined_call_operand.vmem [shape: f32[48,128], index: 3, kind: input, shape index: {}]
  %s4 = inlined_call_operand.vmem [shape: f32[2,32,8], index: 4, kind: output, shape index: {}]
  %s5 = sld [smem:[#allocation0]]
  $region26: #{tpu_custom_call.1} parent=0
    _
  %s7 = ssub.s32 1, %s5
  %s8 = scalar_select 0, %s7, %s5
  // Predicated region
  $region2: #{tpu_custom_call.1} parent=0 // pred_check
    _
  $region3: #{tpu_custom_call.1} parent=0 // pred_check_branch
    %10 = sbr.rel (0) target = $region5
  $region4: #{tpu_custom_call.1} parent=0 // pred_region
    _
  $region5: #{tpu_custom_call.1} parent=0 // pred_fallthru
    _
  // Predicated region
  $region6: #{tpu_custom_call.1} parent=0 // pred_check
    _
  $region7: #{tpu_custom_call.1} parent=0 // pred_check_branch
    %12 = sbr.rel (0) target = $region9
  $region8: #{tpu_custom_call.1} parent=0 // pred_region
    _
  $region9: #{tpu_custom_call.1} parent=0 // pred_fallthru
    _
  // Predicated region
  $region10: #{tpu_custom_call.1} parent=0 // pred_check
    _
  $region11: #{tpu_custom_call.1} parent=0 // pred_check_branch
    %14 = sbr.rel (0) target = $region13
  $region12: #{tpu_custom_call.1} parent=0 // pred_region
    _
  $region13: #{tpu_custom_call.1} parent=0 // pred_fallthru
    _
  // Predicated region
  $region14: #{tpu_custom_call.1} parent=0 // pred_check
    _
  $region15: #{tpu_custom_call.1} parent=0 // pred_check_branch
    %16 = sbr.rel (0) target = $region17
  $region16: #{tpu_custom_call.1} parent=0 // pred_region
    _
  $region17: #{tpu_custom_call.1} parent=0 // pred_fallthru
    _
  %v17 = vld [vmem:[%s3] sm:$0xff]
  %v18 = vld [vmem:[%s3 + $0x8] sm:$0xff]
  %v19 = vld [vmem:[%s3 + $0x10] sm:$0xff]
  %v20 = vld [vmem:[%s3 + $0x18] sm:$0xff]
  %v21 = vld [vmem:[%s3 + $0x20] sm:$0xff]
  %v22 = vld [vmem:[%s3 + $0x28] sm:$0xff]
  %v23 = vld [vmem:[%s0] sm:$0xff]
  %v24 = vld [vmem:[%s0 + $0x8] sm:$0xff]
  %v25 = vlaneseq
  %v26 = vshrl.u32 %v25, 7
  %v27 = vsub.s32 4, %v26
  %v28 = vrot.slane %v17, %v27
  %vm29 = vcmask 31744
  %v31 = vsel %vm29, %v23, 0
  %v34 = vsel %vm29, %v24, 0
  %vm36 = vcmask 1043456
  %v38 = vsel %vm36, %v17, 0
  %40 = vmatprep.subr.mxu0 0.0
  %41 = vmatpush1.msra.mxu0 0.0
  %42 = vmatprep.subr.mxu0 0.0
  %43 = vmatpush1.msra.mxu0 0.0
  %44 = vmatprep.subr.mxu0 0.0
  %45 = vmatpush1.msra.mxu0 0.0
  %46 = vmatprep.subr.mxu0 0.0
  %47 = vmatpush1.msra.mxu0 0.0
  %48 = vmatprep.subr.mxu0 0.0
  %49 = vmatpush1.msra.mxu0 0.0
  %50 = vmatprep.subr.mxu0 0.0
  %51 = vmatpush1.msra.mxu0 0.0
  %52 = vmatprep.subr.mxu0 0.0
  %53 = vmatpush1.msra.mxu0 0.0
  %54 = vmatprep.subr.mxu0 0.0
  %55 = vmatpush1.msra.mxu0 0.0
  %56 = vmatprep.subr.mxu0 0.0
  %57 = vmatpush1.msra.mxu0 0.0
  %58 = vmatprep.subr.mxu0 0.0
  %59 = vmatpush1.msra.mxu0 0.0
  %60 = vmatprep.subr.mxu0 0.0
  %61 = vmatpush1.msra.mxu0 0.0
  %62 = vmatprep.subr.mxu0 0.0
  %63 = vmatpush1.msra.mxu0 0.0
  %64 = vmatprep.subr.mxu0 0.0
  %65 = vmatpush1.msra.mxu0 0.0
  %66 = vmatprep.subr.mxu0 0.0
  %67 = vmatpush1.msra.mxu0 0.0
  %68 = vmatprep.subr.mxu0 0.0
  %69 = vmatpush1.msra.mxu0 0.0
  %70 = vmatprep.subr.mxu0 0.0
  %71 = vmatpush1.msra.mxu0 %v38
  %72 = vmatprep.subr.mxu0 0.0
  %73 = vmatpush2.msra.mxu0 0.0
  %74 = vmatprep.subr.mxu0 0.0
  %75 = vmatpush2.msra.mxu0 0.0
  %76 = vmatprep.subr.mxu0 0.0
  %77 = vmatpush2.msra.mxu0 0.0
  %78 = vmatprep.subr.mxu0 0.0
  %79 = vmatpush2.msra.mxu0 0.0
  %80 = vmatprep.subr.mxu0 0.0
  %81 = vmatpush2.msra.mxu0 0.0
  %82 = vmatprep.subr.mxu0 0.0
  %83 = vmatpush2.msra.mxu0 0.0
  %84 = vmatprep.subr.mxu0 0.0
  %85 = vmatpush2.msra.mxu0 0.0
  %86 = vmatprep.subr.mxu0 0.0
  %87 = vmatpush2.msra.mxu0 0.0
  %88 = vmatprep.subr.mxu0 0.0
  %89 = vmatpush2.msra.mxu0 0.0
  %90 = vmatprep.subr.mxu0 0.0
  %91 = vmatpush2.msra.mxu0 0.0
  %92 = vmatprep.subr.mxu0 0.0
  %93 = vmatpush2.msra.mxu0 0.0
  %94 = vmatprep.subr.mxu0 0.0
  %95 = vmatpush2.msra.mxu0 0.0
  %96 = vmatprep.subr.mxu0 0.0
  %97 = vmatpush2.msra.mxu0 0.0
  %98 = vmatprep.subr.mxu0 0.0
  %99 = vmatpush2.msra.mxu0 0.0
  %100 = vmatprep.subr.mxu0 0.0
  %101 = vmatpush2.msra.mxu0 0.0
  %102 = vmatprep.subr.mxu0 0.0
  %103 = vmatpush2.msra.mxu0 0.0
  %104 = vmatprep.mubr.f32.mxu0 0.0
  %105 = vmatmul.mubr.f32.gmra.mxu0 %v31
  %v106 = vpop.f32.mrf.mxu0
  %v107 = vadd.f32 %v28, %v106
  %v108 = vpop.f32.mrf.mxu0
  %109 = vmatprep.mubr.f32.mxu0 0.0
  %110 = vmatmul.mubr.f32.gmra.mxu0 %v34
  %v111 = vpop.f32.mrf.mxu0
  %v112 = vadd.f32 %v28, %v111
  %v113 = vpop.f32.mrf.mxu0
  %114 = vdwg.mxu0
  %v115 = vadd.f32 %v107, %v18
  %v116 = vadd.f32 %v112, %v18
  %v117 = vld [vmem:[%s1] sm:$0xff]
  %v118 = vld [vmem:[%s1 + $0x8] sm:$0xff]
  %v119 = vld [vmem:[%s1 + $0x10] sm:$0xff]
  %v120 = vld [vmem:[%s1 + $0x18] sm:$0xff]
  %v121 = vld [vmem:[%s1 + $0x20] sm:$0xff]
  %v122 = vld [vmem:[%s1 + $0x28] sm:$0xff]
  %v123 = vld [vmem:[%s1 + $0x30] sm:$0xff]
  %v124 = vld [vmem:[%s1 + $0x38] sm:$0xff]
  %v125 = vld [vmem:[%s1 + $0x40] sm:$0xff]
  %v126 = vld [vmem:[%s1 + $0x48] sm:$0xff]
  %v127 = vld [vmem:[%s1 + $0x50] sm:$0xff]
  %v128 = vld [vmem:[%s1 + $0x58] sm:$0xff]
  %v129 = vld [vmem:[%s2] sm:$0xff]
  %v130 = vld [vmem:[%s2 + $0x8] sm:$0xff]
  %v131 = vld [vmem:[%s2 + $0x10] sm:$0xff]
  %v132 = vld [vmem:[%s2 + $0x18] sm:$0xff]
  %v133 = vld [vmem:[%s2 + $0x20] sm:$0xff]
  %v134 = vld [vmem:[%s2 + $0x28] sm:$0xff]
  %v135 = vld [vmem:[%s2 + $0x30] sm:$0xff]
  %v136 = vld [vmem:[%s2 + $0x38] sm:$0xff]
  %v137 = vld [vmem:[%s2 + $0x40] sm:$0xff]
  %v138 = vld [vmem:[%s2 + $0x48] sm:$0xff]
  %v139 = vld [vmem:[%s2 + $0x50] sm:$0xff]
  %v140 = vld [vmem:[%s2 + $0x58] sm:$0xff]
  %v141 = vld [vmem:[%s2 + $0x60] sm:$0xff]
  %v142 = vld [vmem:[%s2 + $0x68] sm:$0xff]
  %v143 = vld [vmem:[%s2 + $0x70] sm:$0xff]
  %v144 = vld [vmem:[%s2 + $0x78] sm:$0xff]
  %vm145 = vcmask 261120
  %v146 = vsel %vm145, %v115, 0.0
  %147 = vadd.xlane.f32.xlu0 %v146
  %v148 = vpop.xlane.xlu0 %147
  %v149 = vsel %vm145, %v116, 0.0
  %150 = vadd.xlane.f32.xlu0 %v149
  %v151 = vpop.xlane.xlu0 %150
  %v152 = vrcp.pop 32.0
  %v153 = vmul.f32 %v148, %v152
  %v154 = vmul.f32 %v151, %v152
  %v155 = vsub.f32 %v115, %v153
  %v156 = vsub.f32 %v116, %v154
  %v157 = vmul.f32 %v155, %v155
  %v158 = vmul.f32 %v156, %v156
  %v159 = vsel %vm145, %v157, 0.0
  %160 = vadd.xlane.f32.xlu0 %v159
  %v161 = vpop.xlane.xlu0 %160
  %v162 = vsel %vm145, %v158, 0.0
  %163 = vadd.xlane.f32.xlu0 %v162
  %v164 = vpop.xlane.xlu0 %163
  %v165 = vmul.f32 %v161, %v152
  %v166 = vmul.f32 %v164, %v152
  %v167 = vadd.f32 %v165, 1e-05
  %v168 = vadd.f32 %v166, 1e-05
  %v169 = vrsqrt.pop %v167
  %v170 = vrsqrt.pop %v168
  %v171 = vmul.f32 %v155, %v169
  %v172 = vmul.f32 %v156, %v170
  %v173 = vlaneseq
  %v174 = vshrl.u32 %v173, 7
  %v175 = vsub.s32 2, %v174
  %v176 = vrot.slane %v19, %v175
  %v177 = vmul.f32 %v171, %v176
  %v178 = vmul.f32 %v172, %v176
  %v179 = vlaneseq
  %v180 = vshrl.u32 %v179, 7
  %v181 = vsub.s32 3, %v180
  %v182 = vrot.slane %v19, %v181
  %v183 = vadd.f32 %v177, %v182
  %v184 = vadd.f32 %v178, %v182
  %v185 = vlaneseq
  %v186 = vshrl.u32 %v185, 7
  %v187 = vsub.s32 0, %v186
  %v188 = vrot.slane %v19, %v187
  %v190 = vsel %vm145, %v183, 0
  %v193 = vsel %vm145, %v184, 0
  %195 = vmatprep.subr.mxu0 0.0
  %196 = vmatpush1.msra.mxu0 0.0
  %197 = vmatprep.subr.mxu0 0.0
  %198 = vmatpush1.msra.mxu0 0.0
  %199 = vmatprep.subr.mxu0 0.0
  %200 = vmatpush1.msra.mxu0 0.0
  %201 = vmatprep.subr.mxu0 0.0
  %202 = vmatpush1.msra.mxu0 0.0
  %203 = vmatprep.subr.mxu0 0.0
  %204 = vmatpush1.msra.mxu0 0.0
  %205 = vmatprep.subr.mxu0 0.0
  %206 = vmatpush1.msra.mxu0 0.0
  %207 = vmatprep.subr.mxu0 0.0
  %208 = vmatpush1.msra.mxu0 0.0
  %209 = vmatprep.subr.mxu0 0.0
  %210 = vmatpush1.msra.mxu0 0.0
  %211 = vmatprep.subr.mxu0 0.0
  %212 = vmatpush1.msra.mxu0 0.0
  %213 = vmatprep.subr.mxu0 0.0
  %214 = vmatpush1.msra.mxu0 0.0
  %215 = vmatprep.subr.mxu0 0.0
  %216 = vmatpush1.msra.mxu0 0.0
  %217 = vmatprep.subr.mxu0 0.0
  %218 = vmatpush1.msra.mxu0 0.0
  %219 = vmatprep.subr.mxu0 0.0
  %220 = vmatpush1.msra.mxu0 %v126
  %221 = vmatprep.subr.mxu0 0.0
  %222 = vmatpush1.msra.mxu0 %v123
  %223 = vmatprep.subr.mxu0 0.0
  %224 = vmatpush1.msra.mxu0 %v120
  %225 = vmatprep.subr.mxu0 0.0
  %226 = vmatpush1.msra.mxu0 %v117
  %227 = vmatprep.subr.mxu0 0.0
  %228 = vmatpush2.msra.mxu0 0.0
  %229 = vmatprep.subr.mxu0 0.0
  %230 = vmatpush2.msra.mxu0 0.0
  %231 = vmatprep.subr.mxu0 0.0
  %232 = vmatpush2.msra.mxu0 0.0
  %233 = vmatprep.subr.mxu0 0.0
  %234 = vmatpush2.msra.mxu0 0.0
  %235 = vmatprep.subr.mxu0 0.0
  %236 = vmatpush2.msra.mxu0 0.0
  %237 = vmatprep.subr.mxu0 0.0
  %238 = vmatpush2.msra.mxu0 0.0
  %239 = vmatprep.subr.mxu0 0.0
  %240 = vmatpush2.msra.mxu0 0.0
  %241 = vmatprep.subr.mxu0 0.0
  %242 = vmatpush2.msra.mxu0 0.0
  %243 = vmatprep.subr.mxu0 0.0
  %244 = vmatpush2.msra.mxu0 0.0
  %245 = vmatprep.subr.mxu0 0.0
  %246 = vmatpush2.msra.mxu0 0.0
  %247 = vmatprep.subr.mxu0 0.0
  %248 = vmatpush2.msra.mxu0 0.0
  %249 = vmatprep.subr.mxu0 0.0
  %250 = vmatpush2.msra.mxu0 0.0
  %251 = vmatprep.subr.mxu0 0.0
  %252 = vmatpush2.msra.mxu0 0.0
  %253 = vmatprep.subr.mxu0 0.0
  %254 = vmatpush2.msra.mxu0 0.0
  %255 = vmatprep.subr.mxu0 0.0
  %256 = vmatpush2.msra.mxu0 0.0
  %257 = vmatprep.subr.mxu0 0.0
  %258 = vmatpush2.msra.mxu0 0.0
  %259 = vmatprep.mubr.f32.mxu0 0.0
  %260 = vmatmul.mubr.f32.gmra.mxu0 %v190
  %v261 = vpop.f32.mrf.mxu0
  %v262 = vadd.f32 %v188, %v261
  %v263 = vpop.f32.mrf.mxu0
  %264 = vmatprep.mubr.f32.mxu0 0.0
  %265 = vmatmul.mubr.f32.gmra.mxu0 %v193
  %v266 = vpop.f32.mrf.mxu0
  %v267 = vadd.f32 %v188, %v266
  %v268 = vpop.f32.mrf.mxu0
  %269 = vdwg.mxu0
  %272 = vrot.lane.b32.xlu0 %v262, 120
  %v273 = vpop.permute.xlu0 %272
  %274 = vrot.lane.b32.xlu0 %v267, 120
  %v275 = vpop.permute.xlu0 %274
  %278 = vrot.lane.b32.xlu0 %v262, 112
  %v279 = vpop.permute.xlu0 %278
  %280 = vrot.lane.b32.xlu0 %v267, 112
  %v281 = vpop.permute.xlu0 %280
  %284 = vrot.lane.b32.xlu0 %v262, 104
  %v285 = vpop.permute.xlu0 %284
  %286 = vrot.lane.b32.xlu0 %v267, 104
  %v287 = vpop.permute.xlu0 %286
  %v290 = vmul.f32 %v262, 0.35355338
  %v291 = vmul.f32 %v267, 0.35355338
  %v292 = vmul.f32 %v273, 0.35355338
  %v293 = vmul.f32 %v275, 0.35355338
  %v294 = vmul.f32 %v279, 0.35355338
  %v295 = vmul.f32 %v281, 0.35355338
  %v296 = vmul.f32 %v285, 0.35355338
  %v297 = vmul.f32 %v287, 0.35355338
  %298 = vrot.lane.b32.xlu0 %v262, 96
  %v299 = vpop.permute.xlu0 %298
  %300 = vrot.lane.b32.xlu0 %v267, 96
  %v301 = vpop.permute.xlu0 %300
  %vm302 = vcmask 64512
  %v304 = vsel %vm302, %v290, 0
  %v307 = vsel %vm302, %v291, 0
  %v309 = vsel %vm302, %v299, 0
  %v311 = vsel %vm302, %v301, 0
  %313 = vmatprep.subr.mxu0 0.0
  %314 = vmatpush1.xpose.msra.mxu0 0.0
  %315 = vmatprep.subr.mxu0 0.0
  %316 = vmatpush1.xpose.msra.mxu0 0.0
  %317 = vmatprep.subr.mxu0 0.0
  %318 = vmatpush1.xpose.msra.mxu0 0.0
  %319 = vmatprep.subr.mxu0 0.0
  %320 = vmatpush1.xpose.msra.mxu0 0.0
  %321 = vmatprep.subr.mxu0 0.0
  %322 = vmatpush1.xpose.msra.mxu0 0.0
  %323 = vmatprep.subr.mxu0 0.0
  %324 = vmatpush1.xpose.msra.mxu0 0.0
  %325 = vmatprep.subr.mxu0 0.0
  %326 = vmatpush1.xpose.msra.mxu0 0.0
  %327 = vmatprep.subr.mxu0 0.0
  %328 = vmatpush1.xpose.msra.mxu0 0.0
  %329 = vmatprep.subr.mxu0 0.0
  %330 = vmatpush1.xpose.msra.mxu0 0.0
  %331 = vmatprep.subr.mxu0 0.0
  %332 = vmatpush1.xpose.msra.mxu0 0.0
  %333 = vmatprep.subr.mxu0 0.0
  %334 = vmatpush1.xpose.msra.mxu0 0.0
  %335 = vmatprep.subr.mxu0 0.0
  %336 = vmatpush1.xpose.msra.mxu0 0.0
  %337 = vmatprep.subr.mxu0 0.0
  %338 = vmatpush1.xpose.msra.mxu0 0.0
  %339 = vmatprep.subr.mxu0 0.0
  %340 = vmatpush1.xpose.msra.mxu0 0.0
  %341 = vmatprep.subr.mxu0 0.0
  %342 = vmatpush1.xpose.msra.mxu0 %v311
  %343 = vmatprep.subr.mxu0 0.0
  %344 = vmatpush1.xpose.msra.mxu0 %v309
  %345 = vmatprep.subr.mxu0 0.0
  %346 = vmatpush2.xpose.msra.mxu0 0.0
  %347 = vmatprep.subr.mxu0 0.0
  %348 = vmatpush2.xpose.msra.mxu0 0.0
  %349 = vmatprep.subr.mxu0 0.0
  %350 = vmatpush2.xpose.msra.mxu0 0.0
  %351 = vmatprep.subr.mxu0 0.0
  %352 = vmatpush2.xpose.msra.mxu0 0.0
  %353 = vmatprep.subr.mxu0 0.0
  %354 = vmatpush2.xpose.msra.mxu0 0.0
  %355 = vmatprep.subr.mxu0 0.0
  %356 = vmatpush2.xpose.msra.mxu0 0.0
  %357 = vmatprep.subr.mxu0 0.0
  %358 = vmatpush2.xpose.msra.mxu0 0.0
  %359 = vmatprep.subr.mxu0 0.0
  %360 = vmatpush2.xpose.msra.mxu0 0.0
  %361 = vmatprep.subr.mxu0 0.0
  %362 = vmatpush2.xpose.msra.mxu0 0.0
  %363 = vmatprep.subr.mxu0 0.0
  %364 = vmatpush2.xpose.msra.mxu0 0.0
  %365 = vmatprep.subr.mxu0 0.0
  %366 = vmatpush2.xpose.msra.mxu0 0.0
  %367 = vmatprep.subr.mxu0 0.0
  %368 = vmatpush2.xpose.msra.mxu0 0.0
  %369 = vmatprep.subr.mxu0 0.0
  %370 = vmatpush2.xpose.msra.mxu0 0.0
  %371 = vmatprep.subr.mxu0 0.0
  %372 = vmatpush2.xpose.msra.mxu0 0.0
  %373 = vmatprep.subr.mxu0 0.0
  %374 = vmatpush2.xpose.msra.mxu0 0.0
  %375 = vmatprep.subr.mxu0 0.0
  %376 = vmatpush2.xpose.msra.mxu0 0.0
  %377 = vmatprep.mubr.f32.mxu0 0.0
  %378 = vmatmul.mubr.f32.gmra.mxu0 %v304
  %v379 = vpop.f32.mrf.mxu0
  %v380 = vadd.f32 %v21, %v379
  %v381 = vpop.f32.mrf.mxu0
  %382 = vmatprep.mubr.f32.mxu0 0.0
  %383 = vmatmul.mubr.f32.gmra.mxu0 %v307
  %v384 = vpop.f32.mrf.mxu0
  %v385 = vadd.f32 %v22, %v384
  %v386 = vpop.f32.mrf.mxu0
  %387 = vdwg.mxu0
  %388 = vrot.lane.b32.xlu0 %v273, 96
  %v389 = vpop.permute.xlu0 %388
  %390 = vrot.lane.b32.xlu0 %v275, 96
  %v391 = vpop.permute.xlu0 %390
  %v393 = vsel %vm302, %v292, 0
  %v396 = vsel %vm302, %v293, 0
  %v398 = vsel %vm302, %v389, 0
  %v400 = vsel %vm302, %v391, 0
  %402 = vmatprep.subr.mxu0 0.0
  %403 = vmatpush1.xpose.msra.mxu0 0.0
  %404 = vmatprep.subr.mxu0 0.0
  %405 = vmatpush1.xpose.msra.mxu0 0.0
  %406 = vmatprep.subr.mxu0 0.0
  %407 = vmatpush1.xpose.msra.mxu0 0.0
  %408 = vmatprep.subr.mxu0 0.0
  %409 = vmatpush1.xpose.msra.mxu0 0.0
  %410 = vmatprep.subr.mxu0 0.0
  %411 = vmatpush1.xpose.msra.mxu0 0.0
  %412 = vmatprep.subr.mxu0 0.0
  %413 = vmatpush1.xpose.msra.mxu0 0.0
  %414 = vmatprep.subr.mxu0 0.0
  %415 = vmatpush1.xpose.msra.mxu0 0.0
  %416 = vmatprep.subr.mxu0 0.0
  %417 = vmatpush1.xpose.msra.mxu0 0.0
  %418 = vmatprep.subr.mxu0 0.0
  %419 = vmatpush1.xpose.msra.mxu0 0.0
  %420 = vmatprep.subr.mxu0 0.0
  %421 = vmatpush1.xpose.msra.mxu0 0.0
  %422 = vmatprep.subr.mxu0 0.0
  %423 = vmatpush1.xpose.msra.mxu0 0.0
  %424 = vmatprep.subr.mxu0 0.0
  %425 = vmatpush1.xpose.msra.mxu0 0.0
  %426 = vmatprep.subr.mxu0 0.0
  %427 = vmatpush1.xpose.msra.mxu0 0.0
  %428 = vmatprep.subr.mxu0 0.0
  %429 = vmatpush1.xpose.msra.mxu0 0.0
  %430 = vmatprep.subr.mxu0 0.0
  %431 = vmatpush1.xpose.msra.mxu0 %v400
  %432 = vmatprep.subr.mxu0 0.0
  %433 = vmatpush1.xpose.msra.mxu0 %v398
  %434 = vmatprep.subr.mxu0 0.0
  %435 = vmatpush2.xpose.msra.mxu0 0.0
  %436 = vmatprep.subr.mxu0 0.0
  %437 = vmatpush2.xpose.msra.mxu0 0.0
  %438 = vmatprep.subr.mxu0 0.0
  %439 = vmatpush2.xpose.msra.mxu0 0.0
  %440 = vmatprep.subr.mxu0 0.0
  %441 = vmatpush2.xpose.msra.mxu0 0.0
  %442 = vmatprep.subr.mxu0 0.0
  %443 = vmatpush2.xpose.msra.mxu0 0.0
  %444 = vmatprep.subr.mxu0 0.0
  %445 = vmatpush2.xpose.msra.mxu0 0.0
  %446 = vmatprep.subr.mxu0 0.0
  %447 = vmatpush2.xpose.msra.mxu0 0.0
  %448 = vmatprep.subr.mxu0 0.0
  %449 = vmatpush2.xpose.msra.mxu0 0.0
  %450 = vmatprep.subr.mxu0 0.0
  %451 = vmatpush2.xpose.msra.mxu0 0.0
  %452 = vmatprep.subr.mxu0 0.0
  %453 = vmatpush2.xpose.msra.mxu0 0.0
  %454 = vmatprep.subr.mxu0 0.0
  %455 = vmatpush2.xpose.msra.mxu0 0.0
  %456 = vmatprep.subr.mxu0 0.0
  %457 = vmatpush2.xpose.msra.mxu0 0.0
  %458 = vmatprep.subr.mxu0 0.0
  %459 = vmatpush2.xpose.msra.mxu0 0.0
  %460 = vmatprep.subr.mxu0 0.0
  %461 = vmatpush2.xpose.msra.mxu0 0.0
  %462 = vmatprep.subr.mxu0 0.0
  %463 = vmatpush2.xpose.msra.mxu0 0.0
  %464 = vmatprep.subr.mxu0 0.0
  %465 = vmatpush2.xpose.msra.mxu0 0.0
  %466 = vmatprep.mubr.f32.mxu0 0.0
  %467 = vmatmul.mubr.f32.gmra.mxu0 %v393
  %v468 = vpop.f32.mrf.mxu0
  %v469 = vadd.f32 %v21, %v468
  %v470 = vpop.f32.mrf.mxu0
  %471 = vmatprep.mubr.f32.mxu0 0.0
  %472 = vmatmul.mubr.f32.gmra.mxu0 %v396
  %v473 = vpop.f32.mrf.mxu0
  %v474 = vadd.f32 %v22, %v473
  %v475 = vpop.f32.mrf.mxu0
  %476 = vdwg.mxu0
  %477 = vrot.lane.b32.xlu0 %v279, 96
  %v478 = vpop.permute.xlu0 %477
  %479 = vrot.lane.b32.xlu0 %v281, 96
  %v480 = vpop.permute.xlu0 %479
  %v482 = vsel %vm302, %v294, 0
  %v485 = vsel %vm302, %v295, 0
  %v487 = vsel %vm302, %v478, 0
  %v489 = vsel %vm302, %v480, 0
  %491 = vmatprep.subr.mxu0 0.0
  %492 = vmatpush1.xpose.msra.mxu0 0.0
  %493 = vmatprep.subr.mxu0 0.0
  %494 = vmatpush1.xpose.msra.mxu0 0.0
  %495 = vmatprep.subr.mxu0 0.0
  %496 = vmatpush1.xpose.msra.mxu0 0.0
  %497 = vmatprep.subr.mxu0 0.0
  %498 = vmatpush1.xpose.msra.mxu0 0.0
  %499 = vmatprep.subr.mxu0 0.0
  %500 = vmatpush1.xpose.msra.mxu0 0.0
  %501 = vmatprep.subr.mxu0 0.0
  %502 = vmatpush1.xpose.msra.mxu0 0.0
  %503 = vmatprep.subr.mxu0 0.0
  %504 = vmatpush1.xpose.msra.mxu0 0.0
  %505 = vmatprep.subr.mxu0 0.0
  %506 = vmatpush1.xpose.msra.mxu0 0.0
  %507 = vmatprep.subr.mxu0 0.0
  %508 = vmatpush1.xpose.msra.mxu0 0.0
  %509 = vmatprep.subr.mxu0 0.0
  %510 = vmatpush1.xpose.msra.mxu0 0.0
  %511 = vmatprep.subr.mxu0 0.0
  %512 = vmatpush1.xpose.msra.mxu0 0.0
  %513 = vmatprep.subr.mxu0 0.0
  %514 = vmatpush1.xpose.msra.mxu0 0.0
  %515 = vmatprep.subr.mxu0 0.0
  %516 = vmatpush1.xpose.msra.mxu0 0.0
  %517 = vmatprep.subr.mxu0 0.0
  %518 = vmatpush1.xpose.msra.mxu0 0.0
  %519 = vmatprep.subr.mxu0 0.0
  %520 = vmatpush1.xpose.msra.mxu0 %v489
  %521 = vmatprep.subr.mxu0 0.0
  %522 = vmatpush1.xpose.msra.mxu0 %v487
  %523 = vmatprep.subr.mxu0 0.0
  %524 = vmatpush2.xpose.msra.mxu0 0.0
  %525 = vmatprep.subr.mxu0 0.0
  %526 = vmatpush2.xpose.msra.mxu0 0.0
  %527 = vmatprep.subr.mxu0 0.0
  %528 = vmatpush2.xpose.msra.mxu0 0.0
  %529 = vmatprep.subr.mxu0 0.0
  %530 = vmatpush2.xpose.msra.mxu0 0.0
  %531 = vmatprep.subr.mxu0 0.0
  %532 = vmatpush2.xpose.msra.mxu0 0.0
  %533 = vmatprep.subr.mxu0 0.0
  %534 = vmatpush2.xpose.msra.mxu0 0.0
  %535 = vmatprep.subr.mxu0 0.0
  %536 = vmatpush2.xpose.msra.mxu0 0.0
  %537 = vmatprep.subr.mxu0 0.0
  %538 = vmatpush2.xpose.msra.mxu0 0.0
  %539 = vmatprep.subr.mxu0 0.0
  %540 = vmatpush2.xpose.msra.mxu0 0.0
  %541 = vmatprep.subr.mxu0 0.0
  %542 = vmatpush2.xpose.msra.mxu0 0.0
  %543 = vmatprep.subr.mxu0 0.0
  %544 = vmatpush2.xpose.msra.mxu0 0.0
  %545 = vmatprep.subr.mxu0 0.0
  %546 = vmatpush2.xpose.msra.mxu0 0.0
  %547 = vmatprep.subr.mxu0 0.0
  %548 = vmatpush2.xpose.msra.mxu0 0.0
  %549 = vmatprep.subr.mxu0 0.0
  %550 = vmatpush2.xpose.msra.mxu0 0.0
  %551 = vmatprep.subr.mxu0 0.0
  %552 = vmatpush2.xpose.msra.mxu0 0.0
  %553 = vmatprep.subr.mxu0 0.0
  %554 = vmatpush2.xpose.msra.mxu0 0.0
  %555 = vmatprep.mubr.f32.mxu0 0.0
  %556 = vmatmul.mubr.f32.gmra.mxu0 %v482
  %v557 = vpop.f32.mrf.mxu0
  %v558 = vadd.f32 %v21, %v557
  %v559 = vpop.f32.mrf.mxu0
  %560 = vmatprep.mubr.f32.mxu0 0.0
  %561 = vmatmul.mubr.f32.gmra.mxu0 %v485
  %v562 = vpop.f32.mrf.mxu0
  %v563 = vadd.f32 %v22, %v562
  %v564 = vpop.f32.mrf.mxu0
  %565 = vdwg.mxu0
  %566 = vrot.lane.b32.xlu0 %v285, 96
  %v567 = vpop.permute.xlu0 %566
  %568 = vrot.lane.b32.xlu0 %v287, 96
  %v569 = vpop.permute.xlu0 %568
  %v571 = vsel %vm302, %v296, 0
  %v574 = vsel %vm302, %v297, 0
  %v576 = vsel %vm302, %v567, 0
  %v578 = vsel %vm302, %v569, 0
  %580 = vmatprep.subr.mxu0 0.0
  %581 = vmatpush1.xpose.msra.mxu0 0.0
  %582 = vmatprep.subr.mxu0 0.0
  %583 = vmatpush1.xpose.msra.mxu0 0.0
  %584 = vmatprep.subr.mxu0 0.0
  %585 = vmatpush1.xpose.msra.mxu0 0.0
  %586 = vmatprep.subr.mxu0 0.0
  %587 = vmatpush1.xpose.msra.mxu0 0.0
  %588 = vmatprep.subr.mxu0 0.0
  %589 = vmatpush1.xpose.msra.mxu0 0.0
  %590 = vmatprep.subr.mxu0 0.0
  %591 = vmatpush1.xpose.msra.mxu0 0.0
  %592 = vmatprep.subr.mxu0 0.0
  %593 = vmatpush1.xpose.msra.mxu0 0.0
  %594 = vmatprep.subr.mxu0 0.0
  %595 = vmatpush1.xpose.msra.mxu0 0.0
  %596 = vmatprep.subr.mxu0 0.0
  %597 = vmatpush1.xpose.msra.mxu0 0.0
  %598 = vmatprep.subr.mxu0 0.0
  %599 = vmatpush1.xpose.msra.mxu0 0.0
  %600 = vmatprep.subr.mxu0 0.0
  %601 = vmatpush1.xpose.msra.mxu0 0.0
  %602 = vmatprep.subr.mxu0 0.0
  %603 = vmatpush1.xpose.msra.mxu0 0.0
  %604 = vmatprep.subr.mxu0 0.0
  %605 = vmatpush1.xpose.msra.mxu0 0.0
  %606 = vmatprep.subr.mxu0 0.0
  %607 = vmatpush1.xpose.msra.mxu0 0.0
  %608 = vmatprep.subr.mxu0 0.0
  %609 = vmatpush1.xpose.msra.mxu0 %v578
  %610 = vmatprep.subr.mxu0 0.0
  %611 = vmatpush1.xpose.msra.mxu0 %v576
  %612 = vmatprep.subr.mxu0 0.0
  %613 = vmatpush2.xpose.msra.mxu0 0.0
  %614 = vmatprep.subr.mxu0 0.0
  %615 = vmatpush2.xpose.msra.mxu0 0.0
  %616 = vmatprep.subr.mxu0 0.0
  %617 = vmatpush2.xpose.msra.mxu0 0.0
  %618 = vmatprep.subr.mxu0 0.0
  %619 = vmatpush2.xpose.msra.mxu0 0.0
  %620 = vmatprep.subr.mxu0 0.0
  %621 = vmatpush2.xpose.msra.mxu0 0.0
  %622 = vmatprep.subr.mxu0 0.0
  %623 = vmatpush2.xpose.msra.mxu0 0.0
  %624 = vmatprep.subr.mxu0 0.0
  %625 = vmatpush2.xpose.msra.mxu0 0.0
  %626 = vmatprep.subr.mxu0 0.0
  %627 = vmatpush2.xpose.msra.mxu0 0.0
  %628 = vmatprep.subr.mxu0 0.0
  %629 = vmatpush2.xpose.msra.mxu0 0.0
  %630 = vmatprep.subr.mxu0 0.0
  %631 = vmatpush2.xpose.msra.mxu0 0.0
  %632 = vmatprep.subr.mxu0 0.0
  %633 = vmatpush2.xpose.msra.mxu0 0.0
  %634 = vmatprep.subr.mxu0 0.0
  %635 = vmatpush2.xpose.msra.mxu0 0.0
  %636 = vmatprep.subr.mxu0 0.0
  %637 = vmatpush2.xpose.msra.mxu0 0.0
  %638 = vmatprep.subr.mxu0 0.0
  %639 = vmatpush2.xpose.msra.mxu0 0.0
  %640 = vmatprep.subr.mxu0 0.0
  %641 = vmatpush2.xpose.msra.mxu0 0.0
  %642 = vmatprep.subr.mxu0 0.0
  %643 = vmatpush2.xpose.msra.mxu0 0.0
  %644 = vmatprep.mubr.f32.mxu0 0.0
  %645 = vmatmul.mubr.f32.gmra.mxu0 %v571
  %v646 = vpop.f32.mrf.mxu0
  %v647 = vadd.f32 %v21, %v646
  %v648 = vpop.f32.mrf.mxu0
  %649 = vmatprep.mubr.f32.mxu0 0.0
  %650 = vmatmul.mubr.f32.gmra.mxu0 %v574
  %v651 = vpop.f32.mrf.mxu0
  %v652 = vadd.f32 %v22, %v651
  %v653 = vpop.f32.mrf.mxu0
  %654 = vdwg.mxu0
  %vm655 = vcmask 130048
  %v656 = vsel %vm655, %v380, -inf
  %657 = vmax.xlane.f32.xlu0 %v656
  %v658 = vpop.xlane.xlu0 %657
  %v659 = vsel %vm655, %v385, -inf
  %660 = vmax.xlane.f32.xlu0 %v659
  %v661 = vpop.xlane.xlu0 %660
  %v662 = vsel %vm655, %v469, -inf
  %663 = vmax.xlane.f32.xlu0 %v662
  %v664 = vpop.xlane.xlu0 %663
  %v665 = vsel %vm655, %v474, -inf
  %666 = vmax.xlane.f32.xlu0 %v665
  %v667 = vpop.xlane.xlu0 %666
  %v668 = vsel %vm655, %v558, -inf
  %669 = vmax.xlane.f32.xlu0 %v668
  %v670 = vpop.xlane.xlu0 %669
  %v671 = vsel %vm655, %v563, -inf
  %672 = vmax.xlane.f32.xlu0 %v671
  %v673 = vpop.xlane.xlu0 %672
  %v674 = vsel %vm655, %v647, -inf
  %675 = vmax.xlane.f32.xlu0 %v674
  %v676 = vpop.xlane.xlu0 %675
  %v677 = vsel %vm655, %v652, -inf
  %678 = vmax.xlane.f32.xlu0 %v677
  %v679 = vpop.xlane.xlu0 %678
  %v680 = vsub.f32 %v380, %v658
  %v681 = vsub.f32 %v385, %v661
  %v682 = vsub.f32 %v469, %v664
  %v683 = vsub.f32 %v474, %v667
  %v684 = vsub.f32 %v558, %v670
  %v685 = vsub.f32 %v563, %v673
  %v686 = vsub.f32 %v647, %v676
  %v687 = vsub.f32 %v652, %v679
  %v688 = vmul.f32 %v680, 1.442695
  %v689 = vpow.pop %v688
  %v690 = vmul.f32 %v681, 1.442695
  %v691 = vpow.pop %v690
  %v692 = vmul.f32 %v682, 1.442695
  %v693 = vpow.pop %v692
  %v694 = vmul.f32 %v683, 1.442695
  %v695 = vpow.pop %v694
  %v696 = vmul.f32 %v684, 1.442695
  %v697 = vpow.pop %v696
  %v698 = vmul.f32 %v685, 1.442695
  %v699 = vpow.pop %v698
  %v700 = vmul.f32 %v686, 1.442695
  %v701 = vpow.pop %v700
  %v702 = vmul.f32 %v687, 1.442695
  %v703 = vpow.pop %v702
  %v704 = vsel %vm655, %v689, 0.0
  %705 = vadd.xlane.f32.xlu0 %v704
  %v706 = vpop.xlane.xlu0 %705
  %v707 = vsel %vm655, %v691, 0.0
  %708 = vadd.xlane.f32.xlu0 %v707
  %v709 = vpop.xlane.xlu0 %708
  %v710 = vsel %vm655, %v693, 0.0
  %711 = vadd.xlane.f32.xlu0 %v710
  %v712 = vpop.xlane.xlu0 %711
  %v713 = vsel %vm655, %v695, 0.0
  %714 = vadd.xlane.f32.xlu0 %v713
  %v715 = vpop.xlane.xlu0 %714
  %v716 = vsel %vm655, %v697, 0.0
  %717 = vadd.xlane.f32.xlu0 %v716
  %v718 = vpop.xlane.xlu0 %717
  %v719 = vsel %vm655, %v699, 0.0
  %720 = vadd.xlane.f32.xlu0 %v719
  %v721 = vpop.xlane.xlu0 %720
  %v722 = vsel %vm655, %v701, 0.0
  %723 = vadd.xlane.f32.xlu0 %v722
  %v724 = vpop.xlane.xlu0 %723
  %v725 = vsel %vm655, %v703, 0.0
  %726 = vadd.xlane.f32.xlu0 %v725
  %v727 = vpop.xlane.xlu0 %726
  %v728 = vrcp.pop %v706
  %v729 = vrcp.pop %v709
  %v730 = vrcp.pop %v712
  %v731 = vrcp.pop %v715
  %v732 = vrcp.pop %v718
  %v733 = vrcp.pop %v721
  %v734 = vrcp.pop %v724
  %v735 = vrcp.pop %v727
  %v736 = vmul.f32 %v689, %v728
  %v737 = vmul.f32 %v691, %v729
  %v738 = vmul.f32 %v693, %v730
  %v739 = vmul.f32 %v695, %v731
  %v740 = vmul.f32 %v697, %v732
  %v741 = vmul.f32 %v699, %v733
  %v742 = vmul.f32 %v701, %v734
  %v743 = vmul.f32 %v703, %v735
  %744 = vrot.lane.b32.xlu0 %v262, 64
  %v745 = vpop.permute.xlu0 %744
  %746 = vrot.lane.b32.xlu0 %v267, 64
  %v747 = vpop.permute.xlu0 %746
  %v751 = vsel %vm655, %v736, 0
  %v754 = vsel %vm655, %v737, 0
  %756 = vmatprep.subr.mxu0 0.0
  %757 = vmatpush1.msra.mxu0 0.0
  %758 = vmatprep.subr.mxu0 0.0
  %759 = vmatpush1.msra.mxu0 0.0
  %760 = vmatprep.subr.mxu0 0.0
  %761 = vmatpush1.msra.mxu0 0.0
  %762 = vmatprep.subr.mxu0 0.0
  %763 = vmatpush1.msra.mxu0 0.0
  %764 = vmatprep.subr.mxu0 0.0
  %765 = vmatpush1.msra.mxu0 0.0
  %766 = vmatprep.subr.mxu0 0.0
  %767 = vmatpush1.msra.mxu0 0.0
  %768 = vmatprep.subr.mxu0 0.0
  %769 = vmatpush1.msra.mxu0 0.0
  %770 = vmatprep.subr.mxu0 0.0
  %771 = vmatpush1.msra.mxu0 0.0
  %772 = vmatprep.subr.mxu0 0.0
  %773 = vmatpush1.msra.mxu0 0.0
  %774 = vmatprep.subr.mxu0 0.0
  %775 = vmatpush1.msra.mxu0 0.0
  %776 = vmatprep.subr.mxu0 0.0
  %777 = vmatpush1.msra.mxu0 0.0
  %778 = vmatprep.subr.mxu0 0.0
  %779 = vmatpush1.msra.mxu0 0.0
  %780 = vmatprep.subr.mxu0 0.0
  %781 = vmatpush1.msra.mxu0 0.0
  %782 = vmatprep.subr.mxu0 0.0
  %783 = vmatpush1.msra.mxu0 0.0
  %784 = vmatprep.subr.mxu0 0.0
  %785 = vmatpush1.msra.mxu0 %v747
  %786 = vmatprep.subr.mxu0 0.0
  %787 = vmatpush1.msra.mxu0 %v745
  %788 = vmatprep.subr.mxu0 0.0
  %789 = vmatpush2.msra.mxu0 0.0
  %790 = vmatprep.subr.mxu0 0.0
  %791 = vmatpush2.msra.mxu0 0.0
  %792 = vmatprep.subr.mxu0 0.0
  %793 = vmatpush2.msra.mxu0 0.0
  %794 = vmatprep.subr.mxu0 0.0
  %795 = vmatpush2.msra.mxu0 0.0
  %796 = vmatprep.subr.mxu0 0.0
  %797 = vmatpush2.msra.mxu0 0.0
  %798 = vmatprep.subr.mxu0 0.0
  %799 = vmatpush2.msra.mxu0 0.0
  %800 = vmatprep.subr.mxu0 0.0
  %801 = vmatpush2.msra.mxu0 0.0
  %802 = vmatprep.subr.mxu0 0.0
  %803 = vmatpush2.msra.mxu0 0.0
  %804 = vmatprep.subr.mxu0 0.0
  %805 = vmatpush2.msra.mxu0 0.0
  %806 = vmatprep.subr.mxu0 0.0
  %807 = vmatpush2.msra.mxu0 0.0
  %808 = vmatprep.subr.mxu0 0.0
  %809 = vmatpush2.msra.mxu0 0.0
  %810 = vmatprep.subr.mxu0 0.0
  %811 = vmatpush2.msra.mxu0 0.0
  %812 = vmatprep.subr.mxu0 0.0
  %813 = vmatpush2.msra.mxu0 0.0
  %814 = vmatprep.subr.mxu0 0.0
  %815 = vmatpush2.msra.mxu0 0.0
  %816 = vmatprep.subr.mxu0 0.0
  %817 = vmatpush2.msra.mxu0 0.0
  %818 = vmatprep.subr.mxu0 0.0
  %819 = vmatpush2.msra.mxu0 0.0
  %820 = vmatprep.mubr.f32.mxu0 0.0
  %821 = vmatmul.mubr.f32.gmra.mxu0 %v751
  %v822 = vpop.f32.mrf.mxu0
  %v823 = vadd.f32 0.0, %v822
  %v824 = vpop.f32.mrf.mxu0
  %825 = vmatprep.mubr.f32.mxu0 0.0
  %826 = vmatmul.mubr.f32.gmra.mxu0 %v754
  %v827 = vpop.f32.mrf.mxu0
  %v828 = vadd.f32 0.0, %v827
  %v829 = vpop.f32.mrf.mxu0
  %830 = vdwg.mxu0
  %831 = vrot.lane.b32.xlu0 %v273, 64
  %v832 = vpop.permute.xlu0 %831
  %833 = vrot.lane.b32.xlu0 %v275, 64
  %v834 = vpop.permute.xlu0 %833
  %v838 = vsel %vm655, %v738, 0
  %v841 = vsel %vm655, %v739, 0
  %843 = vmatprep.subr.mxu0 0.0
  %844 = vmatpush1.msra.mxu0 0.0
  %845 = vmatprep.subr.mxu0 0.0
  %846 = vmatpush1.msra.mxu0 0.0
  %847 = vmatprep.subr.mxu0 0.0
  %848 = vmatpush1.msra.mxu0 0.0
  %849 = vmatprep.subr.mxu0 0.0
  %850 = vmatpush1.msra.mxu0 0.0
  %851 = vmatprep.subr.mxu0 0.0
  %852 = vmatpush1.msra.mxu0 0.0
  %853 = vmatprep.subr.mxu0 0.0
  %854 = vmatpush1.msra.mxu0 0.0
  %855 = vmatprep.subr.mxu0 0.0
  %856 = vmatpush1.msra.mxu0 0.0
  %857 = vmatprep.subr.mxu0 0.0
  %858 = vmatpush1.msra.mxu0 0.0
  %859 = vmatprep.subr.mxu0 0.0
  %860 = vmatpush1.msra.mxu0 0.0
  %861 = vmatprep.subr.mxu0 0.0
  %862 = vmatpush1.msra.mxu0 0.0
  %863 = vmatprep.subr.mxu0 0.0
  %864 = vmatpush1.msra.mxu0 0.0
  %865 = vmatprep.subr.mxu0 0.0
  %866 = vmatpush1.msra.mxu0 0.0
  %867 = vmatprep.subr.mxu0 0.0
  %868 = vmatpush1.msra.mxu0 0.0
  %869 = vmatprep.subr.mxu0 0.0
  %870 = vmatpush1.msra.mxu0 0.0
  %871 = vmatprep.subr.mxu0 0.0
  %872 = vmatpush1.msra.mxu0 %v834
  %873 = vmatprep.subr.mxu0 0.0
  %874 = vmatpush1.msra.mxu0 %v832
  %875 = vmatprep.subr.mxu0 0.0
  %876 = vmatpush2.msra.mxu0 0.0
  %877 = vmatprep.subr.mxu0 0.0
  %878 = vmatpush2.msra.mxu0 0.0
  %879 = vmatprep.subr.mxu0 0.0
  %880 = vmatpush2.msra.mxu0 0.0
  %881 = vmatprep.subr.mxu0 0.0
  %882 = vmatpush2.msra.mxu0 0.0
  %883 = vmatprep.subr.mxu0 0.0
  %884 = vmatpush2.msra.mxu0 0.0
  %885 = vmatprep.subr.mxu0 0.0
  %886 = vmatpush2.msra.mxu0 0.0
  %887 = vmatprep.subr.mxu0 0.0
  %888 = vmatpush2.msra.mxu0 0.0
  %889 = vmatprep.subr.mxu0 0.0
  %890 = vmatpush2.msra.mxu0 0.0
  %891 = vmatprep.subr.mxu0 0.0
  %892 = vmatpush2.msra.mxu0 0.0
  %893 = vmatprep.subr.mxu0 0.0
  %894 = vmatpush2.msra.mxu0 0.0
  %895 = vmatprep.subr.mxu0 0.0
  %896 = vmatpush2.msra.mxu0 0.0
  %897 = vmatprep.subr.mxu0 0.0
  %898 = vmatpush2.msra.mxu0 0.0
  %899 = vmatprep.subr.mxu0 0.0
  %900 = vmatpush2.msra.mxu0 0.0
  %901 = vmatprep.subr.mxu0 0.0
  %902 = vmatpush2.msra.mxu0 0.0
  %903 = vmatprep.subr.mxu0 0.0
  %904 = vmatpush2.msra.mxu0 0.0
  %905 = vmatprep.subr.mxu0 0.0
  %906 = vmatpush2.msra.mxu0 0.0
  %907 = vmatprep.mubr.f32.mxu0 0.0
  %908 = vmatmul.mubr.f32.gmra.mxu0 %v838
  %v909 = vpop.f32.mrf.mxu0
  %v910 = vadd.f32 0.0, %v909
  %v911 = vpop.f32.mrf.mxu0
  %912 = vmatprep.mubr.f32.mxu0 0.0
  %913 = vmatmul.mubr.f32.gmra.mxu0 %v841
  %v914 = vpop.f32.mrf.mxu0
  %v915 = vadd.f32 0.0, %v914
  %v916 = vpop.f32.mrf.mxu0
  %917 = vdwg.mxu0
  %918 = vrot.lane.b32.xlu0 %v279, 64
  %v919 = vpop.permute.xlu0 %918
  %920 = vrot.lane.b32.xlu0 %v281, 64
  %v921 = vpop.permute.xlu0 %920
  %v925 = vsel %vm655, %v740, 0
  %v928 = vsel %vm655, %v741, 0
  %930 = vmatprep.subr.mxu0 0.0
  %931 = vmatpush1.msra.mxu0 0.0
  %932 = vmatprep.subr.mxu0 0.0
  %933 = vmatpush1.msra.mxu0 0.0
  %934 = vmatprep.subr.mxu0 0.0
  %935 = vmatpush1.msra.mxu0 0.0
  %936 = vmatprep.subr.mxu0 0.0
  %937 = vmatpush1.msra.mxu0 0.0
  %938 = vmatprep.subr.mxu0 0.0
  %939 = vmatpush1.msra.mxu0 0.0
  %940 = vmatprep.subr.mxu0 0.0
  %941 = vmatpush1.msra.mxu0 0.0
  %942 = vmatprep.subr.mxu0 0.0
  %943 = vmatpush1.msra.mxu0 0.0
  %944 = vmatprep.subr.mxu0 0.0
  %945 = vmatpush1.msra.mxu0 0.0
  %946 = vmatprep.subr.mxu0 0.0
  %947 = vmatpush1.msra.mxu0 0.0
  %948 = vmatprep.subr.mxu0 0.0
  %949 = vmatpush1.msra.mxu0 0.0
  %950 = vmatprep.subr.mxu0 0.0
  %951 = vmatpush1.msra.mxu0 0.0
  %952 = vmatprep.subr.mxu0 0.0
  %953 = vmatpush1.msra.mxu0 0.0
  %954 = vmatprep.subr.mxu0 0.0
  %955 = vmatpush1.msra.mxu0 0.0
  %956 = vmatprep.subr.mxu0 0.0
  %957 = vmatpush1.msra.mxu0 0.0
  %958 = vmatprep.subr.mxu0 0.0
  %959 = vmatpush1.msra.mxu0 %v921
  %960 = vmatprep.subr.mxu0 0.0
  %961 = vmatpush1.msra.mxu0 %v919
  %962 = vmatprep.subr.mxu0 0.0
  %963 = vmatpush2.msra.mxu0 0.0
  %964 = vmatprep.subr.mxu0 0.0
  %965 = vmatpush2.msra.mxu0 0.0
  %966 = vmatprep.subr.mxu0 0.0
  %967 = vmatpush2.msra.mxu0 0.0
  %968 = vmatprep.subr.mxu0 0.0
  %969 = vmatpush2.msra.mxu0 0.0
  %970 = vmatprep.subr.mxu0 0.0
  %971 = vmatpush2.msra.mxu0 0.0
  %972 = vmatprep.subr.mxu0 0.0
  %973 = vmatpush2.msra.mxu0 0.0
  %974 = vmatprep.subr.mxu0 0.0
  %975 = vmatpush2.msra.mxu0 0.0
  %976 = vmatprep.subr.mxu0 0.0
  %977 = vmatpush2.msra.mxu0 0.0
  %978 = vmatprep.subr.mxu0 0.0
  %979 = vmatpush2.msra.mxu0 0.0
  %980 = vmatprep.subr.mxu0 0.0
  %981 = vmatpush2.msra.mxu0 0.0
  %982 = vmatprep.subr.mxu0 0.0
  %983 = vmatpush2.msra.mxu0 0.0
  %984 = vmatprep.subr.mxu0 0.0
  %985 = vmatpush2.msra.mxu0 0.0
  %986 = vmatprep.subr.mxu0 0.0
  %987 = vmatpush2.msra.mxu0 0.0
  %988 = vmatprep.subr.mxu0 0.0
  %989 = vmatpush2.msra.mxu0 0.0
  %990 = vmatprep.subr.mxu0 0.0
  %991 = vmatpush2.msra.mxu0 0.0
  %992 = vmatprep.subr.mxu0 0.0
  %993 = vmatpush2.msra.mxu0 0.0
  %994 = vmatprep.mubr.f32.mxu0 0.0
  %995 = vmatmul.mubr.f32.gmra.mxu0 %v925
  %v996 = vpop.f32.mrf.mxu0
  %v997 = vadd.f32 0.0, %v996
  %v998 = vpop.f32.mrf.mxu0
  %999 = vmatprep.mubr.f32.mxu0 0.0
  %1000 = vmatmul.mubr.f32.gmra.mxu0 %v928
  %v1001 = vpop.f32.mrf.mxu0
  %v1002 = vadd.f32 0.0, %v1001
  %v1003 = vpop.f32.mrf.mxu0
  %1004 = vdwg.mxu0
  %1005 = vrot.lane.b32.xlu0 %v285, 64
  %v1006 = vpop.permute.xlu0 %1005
  %1007 = vrot.lane.b32.xlu0 %v287, 64
  %v1008 = vpop.permute.xlu0 %1007
  %v1012 = vsel %vm655, %v742, 0
  %v1015 = vsel %vm655, %v743, 0
  %1017 = vmatprep.subr.mxu0 0.0
  %1018 = vmatpush1.msra.mxu0 0.0
  %1019 = vmatprep.subr.mxu0 0.0
  %1020 = vmatpush1.msra.mxu0 0.0
  %1021 = vmatprep.subr.mxu0 0.0
  %1022 = vmatpush1.msra.mxu0 0.0
  %1023 = vmatprep.subr.mxu0 0.0
  %1024 = vmatpush1.msra.mxu0 0.0
  %1025 = vmatprep.subr.mxu0 0.0
  %1026 = vmatpush1.msra.mxu0 0.0
  %1027 = vmatprep.subr.mxu0 0.0
  %1028 = vmatpush1.msra.mxu0 0.0
  %1029 = vmatprep.subr.mxu0 0.0
  %1030 = vmatpush1.msra.mxu0 0.0
  %1031 = vmatprep.subr.mxu0 0.0
  %1032 = vmatpush1.msra.mxu0 0.0
  %1033 = vmatprep.subr.mxu0 0.0
  %1034 = vmatpush1.msra.mxu0 0.0
  %1035 = vmatprep.subr.mxu0 0.0
  %1036 = vmatpush1.msra.mxu0 0.0
  %1037 = vmatprep.subr.mxu0 0.0
  %1038 = vmatpush1.msra.mxu0 0.0
  %1039 = vmatprep.subr.mxu0 0.0
  %1040 = vmatpush1.msra.mxu0 0.0
  %1041 = vmatprep.subr.mxu0 0.0
  %1042 = vmatpush1.msra.mxu0 0.0
  %1043 = vmatprep.subr.mxu0 0.0
  %1044 = vmatpush1.msra.mxu0 0.0
  %1045 = vmatprep.subr.mxu0 0.0
  %1046 = vmatpush1.msra.mxu0 %v1008
  %1047 = vmatprep.subr.mxu0 0.0
  %1048 = vmatpush1.msra.mxu0 %v1006
  %1049 = vmatprep.subr.mxu0 0.0
  %1050 = vmatpush2.msra.mxu0 0.0
  %1051 = vmatprep.subr.mxu0 0.0
  %1052 = vmatpush2.msra.mxu0 0.0
  %1053 = vmatprep.subr.mxu0 0.0
  %1054 = vmatpush2.msra.mxu0 0.0
  %1055 = vmatprep.subr.mxu0 0.0
  %1056 = vmatpush2.msra.mxu0 0.0
  %1057 = vmatprep.subr.mxu0 0.0
  %1058 = vmatpush2.msra.mxu0 0.0
  %1059 = vmatprep.subr.mxu0 0.0
  %1060 = vmatpush2.msra.mxu0 0.0
  %1061 = vmatprep.subr.mxu0 0.0
  %1062 = vmatpush2.msra.mxu0 0.0
  %1063 = vmatprep.subr.mxu0 0.0
  %1064 = vmatpush2.msra.mxu0 0.0
  %1065 = vmatprep.subr.mxu0 0.0
  %1066 = vmatpush2.msra.mxu0 0.0
  %1067 = vmatprep.subr.mxu0 0.0
  %1068 = vmatpush2.msra.mxu0 0.0
  %1069 = vmatprep.subr.mxu0 0.0
  %1070 = vmatpush2.msra.mxu0 0.0
  %1071 = vmatprep.subr.mxu0 0.0
  %1072 = vmatpush2.msra.mxu0 0.0
  %1073 = vmatprep.subr.mxu0 0.0
  %1074 = vmatpush2.msra.mxu0 0.0
  %1075 = vmatprep.subr.mxu0 0.0
  %1076 = vmatpush2.msra.mxu0 0.0
  %1077 = vmatprep.subr.mxu0 0.0
  %1078 = vmatpush2.msra.mxu0 0.0
  %1079 = vmatprep.subr.mxu0 0.0
  %1080 = vmatpush2.msra.mxu0 0.0
  %1081 = vmatprep.mubr.f32.mxu0 0.0
  %1082 = vmatmul.mubr.f32.gmra.mxu0 %v1012
  %v1083 = vpop.f32.mrf.mxu0
  %v1084 = vadd.f32 0.0, %v1083
  %v1085 = vpop.f32.mrf.mxu0
  %1086 = vmatprep.mubr.f32.mxu0 0.0
  %1087 = vmatmul.mubr.f32.gmra.mxu0 %v1015
  %v1088 = vpop.f32.mrf.mxu0
  %v1089 = vadd.f32 0.0, %v1088
  %v1090 = vpop.f32.mrf.mxu0
  %1091 = vdwg.mxu0
  %1094 = vrot.lane.b32.xlu0 %v910, 8
  %v1095 = vpop.permute.xlu0 %1094
  %1096 = vrot.lane.b32.xlu0 %v915, 8
  %v1097 = vpop.permute.xlu0 %1096
  %1102 = vrot.lane.b32.xlu0 %v997, 16
  %v1103 = vpop.permute.xlu0 %1102
  %1104 = vrot.lane.b32.xlu0 %v1002, 16
  %v1105 = vpop.permute.xlu0 %1104
  %1110 = vrot.lane.b32.xlu0 %v1084, 24
  %v1111 = vpop.permute.xlu0 %1110
  %1112 = vrot.lane.b32.xlu0 %v1089, 24
  %v1113 = vpop.permute.xlu0 %1112
  %v1116 = vsel %vm302, %v823, %v1095
  %v1117 = vsel %vm302, %v828, %v1097
  %v1118 = vsel %vm655, %v1116, %v1103
  %v1119 = vsel %vm655, %v1117, %v1105
  %vm1120 = vcmask 195584
  %v1121 = vsel %vm1120, %v1118, %v1111
  %v1122 = vsel %vm1120, %v1119, %v1113
  %v1124 = vsel %vm145, %v1121, 0
  %v1127 = vsel %vm145, %v1122, 0
  %1129 = vmatprep.subr.mxu0 0.0
  %1130 = vmatpush1.msra.mxu0 0.0
  %1131 = vmatprep.subr.mxu0 0.0
  %1132 = vmatpush1.msra.mxu0 0.0
  %1133 = vmatprep.subr.mxu0 0.0
  %1134 = vmatpush1.msra.mxu0 0.0
  %1135 = vmatprep.subr.mxu0 0.0
  %1136 = vmatpush1.msra.mxu0 0.0
  %1137 = vmatprep.subr.mxu0 0.0
  %1138 = vmatpush1.msra.mxu0 0.0
  %1139 = vmatprep.subr.mxu0 0.0
  %1140 = vmatpush1.msra.mxu0 0.0
  %1141 = vmatprep.subr.mxu0 0.0
  %1142 = vmatpush1.msra.mxu0 0.0
  %1143 = vmatprep.subr.mxu0 0.0
  %1144 = vmatpush1.msra.mxu0 0.0
  %1145 = vmatprep.subr.mxu0 0.0
  %1146 = vmatpush1.msra.mxu0 0.0
  %1147 = vmatprep.subr.mxu0 0.0
  %1148 = vmatpush1.msra.mxu0 0.0
  %1149 = vmatprep.subr.mxu0 0.0
  %1150 = vmatpush1.msra.mxu0 0.0
  %1151 = vmatprep.subr.mxu0 0.0
  %1152 = vmatpush1.msra.mxu0 0.0
  %1153 = vmatprep.subr.mxu0 0.0
  %1154 = vmatpush1.msra.mxu0 %v128
  %1155 = vmatprep.subr.mxu0 0.0
  %1156 = vmatpush1.msra.mxu0 %v125
  %1157 = vmatprep.subr.mxu0 0.0
  %1158 = vmatpush1.msra.mxu0 %v122
  %1159 = vmatprep.subr.mxu0 0.0
  %1160 = vmatpush1.msra.mxu0 %v119
  %1161 = vmatprep.subr.mxu0 0.0
  %1162 = vmatpush2.msra.mxu0 0.0
  %1163 = vmatprep.subr.mxu0 0.0
  %1164 = vmatpush2.msra.mxu0 0.0
  %1165 = vmatprep.subr.mxu0 0.0
  %1166 = vmatpush2.msra.mxu0 0.0
  %1167 = vmatprep.subr.mxu0 0.0
  %1168 = vmatpush2.msra.mxu0 0.0
  %1169 = vmatprep.subr.mxu0 0.0
  %1170 = vmatpush2.msra.mxu0 0.0
  %1171 = vmatprep.subr.mxu0 0.0
  %1172 = vmatpush2.msra.mxu0 0.0
  %1173 = vmatprep.subr.mxu0 0.0
  %1174 = vmatpush2.msra.mxu0 0.0
  %1175 = vmatprep.subr.mxu0 0.0
  %1176 = vmatpush2.msra.mxu0 0.0
  %1177 = vmatprep.subr.mxu0 0.0
  %1178 = vmatpush2.msra.mxu0 0.0
  %1179 = vmatprep.subr.mxu0 0.0
  %1180 = vmatpush2.msra.mxu0 0.0
  %1181 = vmatprep.subr.mxu0 0.0
  %1182 = vmatpush2.msra.mxu0 0.0
  %1183 = vmatprep.subr.mxu0 0.0
  %1184 = vmatpush2.msra.mxu0 0.0
  %1185 = vmatprep.subr.mxu0 0.0
  %1186 = vmatpush2.msra.mxu0 0.0
  %1187 = vmatprep.subr.mxu0 0.0
  %1188 = vmatpush2.msra.mxu0 0.0
  %1189 = vmatprep.subr.mxu0 0.0
  %1190 = vmatpush2.msra.mxu0 0.0
  %1191 = vmatprep.subr.mxu0 0.0
  %1192 = vmatpush2.msra.mxu0 0.0
  %1193 = vmatprep.mubr.f32.mxu0 0.0
  %1194 = vmatmul.mubr.f32.gmra.mxu0 %v1124
  %v1195 = vpop.f32.mrf.mxu0
  %v1196 = vadd.f32 0.0, %v1195
  %v1197 = vpop.f32.mrf.mxu0
  %1198 = vmatprep.mubr.f32.mxu0 0.0
  %1199 = vmatmul.mubr.f32.gmra.mxu0 %v1127
  %v1200 = vpop.f32.mrf.mxu0
  %v1201 = vadd.f32 0.0, %v1200
  %v1202 = vpop.f32.mrf.mxu0
  %1203 = vdwg.mxu0
  %v1204 = vadd.f32 %v115, %v1196
  %v1205 = vadd.f32 %v116, %v1201
  %v1206 = vlaneseq
  %v1207 = vshrl.u32 %v1206, 7
  %v1208 = vsub.s32 1, %v1207
  %v1209 = vrot.slane %v19, %v1208
  %v1210 = vadd.f32 %v1204, %v1209
  %v1211 = vadd.f32 %v1205, %v1209
  %v1212 = vsel %vm145, %v1210, 0.0
  %1213 = vadd.xlane.f32.xlu0 %v1212
  %v1214 = vpop.xlane.xlu0 %1213
  %v1215 = vsel %vm145, %v1211, 0.0
  %1216 = vadd.xlane.f32.xlu0 %v1215
  %v1217 = vpop.xlane.xlu0 %1216
  %v1218 = vmul.f32 %v1214, %v152
  %v1219 = vmul.f32 %v1217, %v152
  %v1220 = vsub.f32 %v1210, %v1218
  %v1221 = vsub.f32 %v1211, %v1219
  %v1222 = vmul.f32 %v1220, %v1220
  %v1223 = vmul.f32 %v1221, %v1221
  %v1224 = vsel %vm145, %v1222, 0.0
  %1225 = vadd.xlane.f32.xlu0 %v1224
  %v1226 = vpop.xlane.xlu0 %1225
  %v1227 = vsel %vm145, %v1223, 0.0
  %1228 = vadd.xlane.f32.xlu0 %v1227
  %v1229 = vpop.xlane.xlu0 %1228
  %v1230 = vmul.f32 %v1226, %v152
  %v1231 = vmul.f32 %v1229, %v152
  %v1232 = vadd.f32 %v1230, 1e-05
  %v1233 = vadd.f32 %v1231, 1e-05
  %v1234 = vrsqrt.pop %v1232
  %v1235 = vrsqrt.pop %v1233
  %v1236 = vmul.f32 %v1220, %v1234
  %v1237 = vmul.f32 %v1221, %v1235
  %v1238 = vlaneseq
  %v1239 = vshrl.u32 %v1238, 7
  %v1240 = vsub.s32 4, %v1239
  %v1241 = vrot.slane %v19, %v1240
  %v1242 = vmul.f32 %v1236, %v1241
  %v1243 = vmul.f32 %v1237, %v1241
  %v1244 = vlaneseq
  %v1245 = vshrl.u32 %v1244, 7
  %v1246 = vsub.s32 5, %v1245
  %v1247 = vrot.slane %v19, %v1246
  %v1248 = vadd.f32 %v1242, %v1247
  %v1249 = vadd.f32 %v1243, %v1247
  %v1250 = vlaneseq
  %v1251 = vshrl.u32 %v1250, 7
  %v1252 = vsub.s32 6, %v1251
  %v1253 = vrot.slane %v19, %v1252
  %v1255 = vsel %vm145, %v1248, 0
  %v1258 = vsel %vm145, %v1249, 0
  %1260 = vmatprep.subr.mxu0 0.0
  %1261 = vmatpush1.msra.mxu0 0.0
  %1262 = vmatprep.subr.mxu0 0.0
  %1263 = vmatpush1.msra.mxu0 0.0
  %1264 = vmatprep.subr.mxu0 0.0
  %1265 = vmatpush1.msra.mxu0 0.0
  %1266 = vmatprep.subr.mxu0 0.0
  %1267 = vmatpush1.msra.mxu0 0.0
  %1268 = vmatprep.subr.mxu0 0.0
  %1269 = vmatpush1.msra.mxu0 0.0
  %1270 = vmatprep.subr.mxu0 0.0
  %1271 = vmatpush1.msra.mxu0 0.0
  %1272 = vmatprep.subr.mxu0 0.0
  %1273 = vmatpush1.msra.mxu0 0.0
  %1274 = vmatprep.subr.mxu0 0.0
  %1275 = vmatpush1.msra.mxu0 0.0
  %1276 = vmatprep.subr.mxu0 0.0
  %1277 = vmatpush1.msra.mxu0 0.0
  %1278 = vmatprep.subr.mxu0 0.0
  %1279 = vmatpush1.msra.mxu0 0.0
  %1280 = vmatprep.subr.mxu0 0.0
  %1281 = vmatpush1.msra.mxu0 0.0
  %1282 = vmatprep.subr.mxu0 0.0
  %1283 = vmatpush1.msra.mxu0 0.0
  %1284 = vmatprep.subr.mxu0 0.0
  %1285 = vmatpush1.msra.mxu0 %v127
  %1286 = vmatprep.subr.mxu0 0.0
  %1287 = vmatpush1.msra.mxu0 %v124
  %1288 = vmatprep.subr.mxu0 0.0
  %1289 = vmatpush1.msra.mxu0 %v121
  %1290 = vmatprep.subr.mxu0 0.0
  %1291 = vmatpush1.msra.mxu0 %v118
  %1292 = vmatprep.subr.mxu0 0.0
  %1293 = vmatpush2.msra.mxu0 0.0
  %1294 = vmatprep.subr.mxu0 0.0
  %1295 = vmatpush2.msra.mxu0 0.0
  %1296 = vmatprep.subr.mxu0 0.0
  %1297 = vmatpush2.msra.mxu0 0.0
  %1298 = vmatprep.subr.mxu0 0.0
  %1299 = vmatpush2.msra.mxu0 0.0
  %1300 = vmatprep.subr.mxu0 0.0
  %1301 = vmatpush2.msra.mxu0 0.0
  %1302 = vmatprep.subr.mxu0 0.0
  %1303 = vmatpush2.msra.mxu0 0.0
  %1304 = vmatprep.subr.mxu0 0.0
  %1305 = vmatpush2.msra.mxu0 0.0
  %1306 = vmatprep.subr.mxu0 0.0
  %1307 = vmatpush2.msra.mxu0 0.0
  %1308 = vmatprep.subr.mxu0 0.0
  %1309 = vmatpush2.msra.mxu0 0.0
  %1310 = vmatprep.subr.mxu0 0.0
  %1311 = vmatpush2.msra.mxu0 0.0
  %1312 = vmatprep.subr.mxu0 0.0
  %1313 = vmatpush2.msra.mxu0 0.0
  %1314 = vmatprep.subr.mxu0 0.0
  %1315 = vmatpush2.msra.mxu0 0.0
  %1316 = vmatprep.subr.mxu0 0.0
  %1317 = vmatpush2.msra.mxu0 0.0
  %1318 = vmatprep.subr.mxu0 0.0
  %1319 = vmatpush2.msra.mxu0 0.0
  %1320 = vmatprep.subr.mxu0 0.0
  %1321 = vmatpush2.msra.mxu0 0.0
  %1322 = vmatprep.subr.mxu0 0.0
  %1323 = vmatpush2.msra.mxu0 0.0
  %1324 = vmatprep.mubr.f32.mxu0 0.0
  %1325 = vmatmul.mubr.f32.gmra.mxu0 %v1255
  %v1326 = vpop.f32.mrf.mxu0
  %v1327 = vadd.f32 %v1253, %v1326
  %v1328 = vpop.f32.mrf.mxu0
  %1329 = vmatprep.mubr.f32.mxu0 0.0
  %1330 = vmatmul.mubr.f32.gmra.mxu0 %v1258
  %v1331 = vpop.f32.mrf.mxu0
  %v1332 = vadd.f32 %v1253, %v1331
  %v1333 = vpop.f32.mrf.mxu0
  %1334 = vdwg.mxu0
  %v1335 = vmul.f32 %v1327, 0.5
  %v1336 = vmul.f32 %v1332, 0.5
  %v1337 = vmul.f32 %v1327, 0.70710677
  %v1338 = vmul.f32 %v1332, 0.70710677
  %v1339 = verf.f32.pop %v1337
  %v1340 = verf.f32.pop %v1338
  %v1341 = vadd.f32 %v1339, 1.0
  %v1342 = vadd.f32 %v1340, 1.0
  %v1343 = vmul.f32 %v1335, %v1341
  %v1344 = vmul.f32 %v1336, %v1342
  %1345 = vmatprep.subr.mxu0 0.0
  %1346 = vmatpush1.msra.mxu0 %v144
  %1347 = vmatprep.subr.mxu0 0.0
  %1348 = vmatpush1.msra.mxu0 %v143
  %1349 = vmatprep.subr.mxu0 0.0
  %1350 = vmatpush1.msra.mxu0 %v142
  %1351 = vmatprep.subr.mxu0 0.0
  %1352 = vmatpush1.msra.mxu0 %v141
  %1353 = vmatprep.subr.mxu0 0.0
  %1354 = vmatpush1.msra.mxu0 %v140
  %1355 = vmatprep.subr.mxu0 0.0
  %1356 = vmatpush1.msra.mxu0 %v139
  %1357 = vmatprep.subr.mxu0 0.0
  %1358 = vmatpush1.msra.mxu0 %v138
  %1359 = vmatprep.subr.mxu0 0.0
  %1360 = vmatpush1.msra.mxu0 %v137
  %1361 = vmatprep.subr.mxu0 0.0
  %1362 = vmatpush1.msra.mxu0 %v136
  %1363 = vmatprep.subr.mxu0 0.0
  %1364 = vmatpush1.msra.mxu0 %v135
  %1365 = vmatprep.subr.mxu0 0.0
  %1366 = vmatpush1.msra.mxu0 %v134
  %1367 = vmatprep.subr.mxu0 0.0
  %1368 = vmatpush1.msra.mxu0 %v133
  %1369 = vmatprep.subr.mxu0 0.0
  %1370 = vmatpush1.msra.mxu0 %v132
  %1371 = vmatprep.subr.mxu0 0.0
  %1372 = vmatpush1.msra.mxu0 %v131
  %1373 = vmatprep.subr.mxu0 0.0
  %1374 = vmatpush1.msra.mxu0 %v130
  %1375 = vmatprep.subr.mxu0 0.0
  %1376 = vmatpush1.msra.mxu0 %v129
  %1377 = vmatprep.subr.mxu0 0.0
  %1378 = vmatpush2.msra.mxu0 0.0
  %1379 = vmatprep.subr.mxu0 0.0
  %1380 = vmatpush2.msra.mxu0 0.0
  %1381 = vmatprep.subr.mxu0 0.0
  %1382 = vmatpush2.msra.mxu0 0.0
  %1383 = vmatprep.subr.mxu0 0.0
  %1384 = vmatpush2.msra.mxu0 0.0
  %1385 = vmatprep.subr.mxu0 0.0
  %1386 = vmatpush2.msra.mxu0 0.0
  %1387 = vmatprep.subr.mxu0 0.0
  %1388 = vmatpush2.msra.mxu0 0.0
  %1389 = vmatprep.subr.mxu0 0.0
  %1390 = vmatpush2.msra.mxu0 0.0
  %1391 = vmatprep.subr.mxu0 0.0
  %1392 = vmatpush2.msra.mxu0 0.0
  %1393 = vmatprep.subr.mxu0 0.0
  %1394 = vmatpush2.msra.mxu0 0.0
  %1395 = vmatprep.subr.mxu0 0.0
  %1396 = vmatpush2.msra.mxu0 0.0
  %1397 = vmatprep.subr.mxu0 0.0
  %1398 = vmatpush2.msra.mxu0 0.0
  %1399 = vmatprep.subr.mxu0 0.0
  %1400 = vmatpush2.msra.mxu0 0.0
  %1401 = vmatprep.subr.mxu0 0.0
  %1402 = vmatpush2.msra.mxu0 0.0
  %1403 = vmatprep.subr.mxu0 0.0
  %1404 = vmatpush2.msra.mxu0 0.0
  %1405 = vmatprep.subr.mxu0 0.0
  %1406 = vmatpush2.msra.mxu0 0.0
  %1407 = vmatprep.subr.mxu0 0.0
  %1408 = vmatpush2.msra.mxu0 0.0
  %1409 = vmatprep.mubr.f32.mxu0 0.0
  %1410 = vmatmul.mubr.f32.gmra.mxu0 %v1343
  %v1411 = vpop.f32.mrf.mxu0
  %v1412 = vadd.f32 0.0, %v1411
  %v1413 = vpop.f32.mrf.mxu0
  %1414 = vmatprep.mubr.f32.mxu0 0.0
  %1415 = vmatmul.mubr.f32.gmra.mxu0 %v1344
  %v1416 = vpop.f32.mrf.mxu0
  %v1417 = vadd.f32 0.0, %v1416
  %v1418 = vpop.f32.mrf.mxu0
  %1419 = vdwg.mxu0
  %v1420 = vadd.f32 %v1210, %v1412
  %v1421 = vadd.f32 %v1211, %v1417
  %v1422 = vlaneseq
  %v1423 = vshrl.u32 %v1422, 7
  %v1424 = vsub.s32 7, %v1423
  %v1425 = vrot.slane %v19, %v1424
  %v1426 = vadd.f32 %v1420, %v1425
  %v1427 = vadd.f32 %v1421, %v1425
  %s1428 = scalar_lea.vmem %s1, 96
  %v1429 = vld [vmem:[%s1428] sm:$0xff]
  %v1430 = vld [vmem:[%s1428 + $0x8] sm:$0xff]
  %v1431 = vld [vmem:[%s1428 + $0x10] sm:$0xff]
  %v1432 = vld [vmem:[%s1428 + $0x18] sm:$0xff]
  %v1433 = vld [vmem:[%s1428 + $0x20] sm:$0xff]
  %v1434 = vld [vmem:[%s1428 + $0x28] sm:$0xff]
  %v1435 = vld [vmem:[%s1428 + $0x30] sm:$0xff]
  %v1436 = vld [vmem:[%s1428 + $0x38] sm:$0xff]
  %v1437 = vld [vmem:[%s1428 + $0x40] sm:$0xff]
  %v1438 = vld [vmem:[%s1428 + $0x48] sm:$0xff]
  %v1439 = vld [vmem:[%s1428 + $0x50] sm:$0xff]
  %v1440 = vld [vmem:[%s1428 + $0x58] sm:$0xff]
  %s1441 = scalar_lea.vmem %s2, 128
  %v1442 = vld [vmem:[%s1441] sm:$0xff]
  %v1443 = vld [vmem:[%s1441 + $0x8] sm:$0xff]
  %v1444 = vld [vmem:[%s1441 + $0x10] sm:$0xff]
  %v1445 = vld [vmem:[%s1441 + $0x18] sm:$0xff]
  %v1446 = vld [vmem:[%s1441 + $0x20] sm:$0xff]
  %v1447 = vld [vmem:[%s1441 + $0x28] sm:$0xff]
  %v1448 = vld [vmem:[%s1441 + $0x30] sm:$0xff]
  %v1449 = vld [vmem:[%s1441 + $0x38] sm:$0xff]
  %v1450 = vld [vmem:[%s1441 + $0x40] sm:$0xff]
  %v1451 = vld [vmem:[%s1441 + $0x48] sm:$0xff]
  %v1452 = vld [vmem:[%s1441 + $0x50] sm:$0xff]
  %v1453 = vld [vmem:[%s1441 + $0x58] sm:$0xff]
  %v1454 = vld [vmem:[%s1441 + $0x60] sm:$0xff]
  %v1455 = vld [vmem:[%s1441 + $0x68] sm:$0xff]
  %v1456 = vld [vmem:[%s1441 + $0x70] sm:$0xff]
  %v1457 = vld [vmem:[%s1441 + $0x78] sm:$0xff]
  %v1458 = vsel %vm145, %v1426, 0.0
  %1459 = vadd.xlane.f32.xlu0 %v1458
  %v1460 = vpop.xlane.xlu0 %1459
  %v1461 = vsel %vm145, %v1427, 0.0
  %1462 = vadd.xlane.f32.xlu0 %v1461
  %v1463 = vpop.xlane.xlu0 %1462
  %v1464 = vmul.f32 %v1460, %v152
  %v1465 = vmul.f32 %v1463, %v152
  %v1466 = vsub.f32 %v1426, %v1464
  %v1467 = vsub.f32 %v1427, %v1465
  %v1468 = vmul.f32 %v1466, %v1466
  %v1469 = vmul.f32 %v1467, %v1467
  %v1470 = vsel %vm145, %v1468, 0.0
  %1471 = vadd.xlane.f32.xlu0 %v1470
  %v1472 = vpop.xlane.xlu0 %1471
  %v1473 = vsel %vm145, %v1469, 0.0
  %1474 = vadd.xlane.f32.xlu0 %v1473
  %v1475 = vpop.xlane.xlu0 %1474
  %v1476 = vmul.f32 %v1472, %v152
  %v1477 = vmul.f32 %v1475, %v152
  %v1478 = vadd.f32 %v1476, 1e-05
  %v1479 = vadd.f32 %v1477, 1e-05
  %v1480 = vrsqrt.pop %v1478
  %v1481 = vrsqrt.pop %v1479
  %v1482 = vmul.f32 %v1466, %v1480
  %v1483 = vmul.f32 %v1467, %v1481
  %v1484 = vlaneseq
  %v1485 = vshrl.u32 %v1484, 7
  %v1486 = vsub.s32 2, %v1485
  %v1487 = vrot.slane %v20, %v1486
  %v1488 = vmul.f32 %v1482, %v1487
  %v1489 = vmul.f32 %v1483, %v1487
  %v1490 = vlaneseq
  %v1491 = vshrl.u32 %v1490, 7
  %v1492 = vsub.s32 3, %v1491
  %v1493 = vrot.slane %v20, %v1492
  %v1494 = vadd.f32 %v1488, %v1493
  %v1495 = vadd.f32 %v1489, %v1493
  %v1496 = vlaneseq
  %v1497 = vshrl.u32 %v1496, 7
  %v1498 = vsub.s32 0, %v1497
  %v1499 = vrot.slane %v20, %v1498
  %v1501 = vsel %vm145, %v1494, 0
  %v1504 = vsel %vm145, %v1495, 0
  %1506 = vmatprep.subr.mxu0 0.0
  %1507 = vmatpush1.msra.mxu0 0.0
  %1508 = vmatprep.subr.mxu0 0.0
  %1509 = vmatpush1.msra.mxu0 0.0
  %1510 = vmatprep.subr.mxu0 0.0
  %1511 = vmatpush1.msra.mxu0 0.0
  %1512 = vmatprep.subr.mxu0 0.0
  %1513 = vmatpush1.msra.mxu0 0.0
  %1514 = vmatprep.subr.mxu0 0.0
  %1515 = vmatpush1.msra.mxu0 0.0
  %1516 = vmatprep.subr.mxu0 0.0
  %1517 = vmatpush1.msra.mxu0 0.0
  %1518 = vmatprep.subr.mxu0 0.0
  %1519 = vmatpush1.msra.mxu0 0.0
  %1520 = vmatprep.subr.mxu0 0.0
  %1521 = vmatpush1.msra.mxu0 0.0
  %1522 = vmatprep.subr.mxu0 0.0
  %1523 = vmatpush1.msra.mxu0 0.0
  %1524 = vmatprep.subr.mxu0 0.0
  %1525 = vmatpush1.msra.mxu0 0.0
  %1526 = vmatprep.subr.mxu0 0.0
  %1527 = vmatpush1.msra.mxu0 0.0
  %1528 = vmatprep.subr.mxu0 0.0
  %1529 = vmatpush1.msra.mxu0 0.0
  %1530 = vmatprep.subr.mxu0 0.0
  %1531 = vmatpush1.msra.mxu0 %v1438
  %1532 = vmatprep.subr.mxu0 0.0
  %1533 = vmatpush1.msra.mxu0 %v1435
  %1534 = vmatprep.subr.mxu0 0.0
  %1535 = vmatpush1.msra.mxu0 %v1432
  %1536 = vmatprep.subr.mxu0 0.0
  %1537 = vmatpush1.msra.mxu0 %v1429
  %1538 = vmatprep.subr.mxu0 0.0
  %1539 = vmatpush2.msra.mxu0 0.0
  %1540 = vmatprep.subr.mxu0 0.0
  %1541 = vmatpush2.msra.mxu0 0.0
  %1542 = vmatprep.subr.mxu0 0.0
  %1543 = vmatpush2.msra.mxu0 0.0
  %1544 = vmatprep.subr.mxu0 0.0
  %1545 = vmatpush2.msra.mxu0 0.0
  %1546 = vmatprep.subr.mxu0 0.0
  %1547 = vmatpush2.msra.mxu0 0.0
  %1548 = vmatprep.subr.mxu0 0.0
  %1549 = vmatpush2.msra.mxu0 0.0
  %1550 = vmatprep.subr.mxu0 0.0
  %1551 = vmatpush2.msra.mxu0 0.0
  %1552 = vmatprep.subr.mxu0 0.0
  %1553 = vmatpush2.msra.mxu0 0.0
  %1554 = vmatprep.subr.mxu0 0.0
  %1555 = vmatpush2.msra.mxu0 0.0
  %1556 = vmatprep.subr.mxu0 0.0
  %1557 = vmatpush2.msra.mxu0 0.0
  %1558 = vmatprep.subr.mxu0 0.0
  %1559 = vmatpush2.msra.mxu0 0.0
  %1560 = vmatprep.subr.mxu0 0.0
  %1561 = vmatpush2.msra.mxu0 0.0
  %1562 = vmatprep.subr.mxu0 0.0
  %1563 = vmatpush2.msra.mxu0 0.0
  %1564 = vmatprep.subr.mxu0 0.0
  %1565 = vmatpush2.msra.mxu0 0.0
  %1566 = vmatprep.subr.mxu0 0.0
  %1567 = vmatpush2.msra.mxu0 0.0
  %1568 = vmatprep.subr.mxu0 0.0
  %1569 = vmatpush2.msra.mxu0 0.0
  %1570 = vmatprep.mubr.f32.mxu0 0.0
  %1571 = vmatmul.mubr.f32.gmra.mxu0 %v1501
  %v1572 = vpop.f32.mrf.mxu0
  %v1573 = vadd.f32 %v1499, %v1572
  %v1574 = vpop.f32.mrf.mxu0
  %1575 = vmatprep.mubr.f32.mxu0 0.0
  %1576 = vmatmul.mubr.f32.gmra.mxu0 %v1504
  %v1577 = vpop.f32.mrf.mxu0
  %v1578 = vadd.f32 %v1499, %v1577
  %v1579 = vpop.f32.mrf.mxu0
  %1580 = vdwg.mxu0
  %1583 = vrot.lane.b32.xlu0 %v1573, 120
  %v1584 = vpop.permute.xlu0 %1583
  %1585 = vrot.lane.b32.xlu0 %v1578, 120
  %v1586 = vpop.permute.xlu0 %1585
  %1589 = vrot.lane.b32.xlu0 %v1573, 112
  %v1590 = vpop.permute.xlu0 %1589
  %1591 = vrot.lane.b32.xlu0 %v1578, 112
  %v1592 = vpop.permute.xlu0 %1591
  %1595 = vrot.lane.b32.xlu0 %v1573, 104
  %v1596 = vpop.permute.xlu0 %1595
  %1597 = vrot.lane.b32.xlu0 %v1578, 104
  %v1598 = vpop.permute.xlu0 %1597
  %v1601 = vmul.f32 %v1573, 0.35355338
  %v1602 = vmul.f32 %v1578, 0.35355338
  %v1603 = vmul.f32 %v1584, 0.35355338
  %v1604 = vmul.f32 %v1586, 0.35355338
  %v1605 = vmul.f32 %v1590, 0.35355338
  %v1606 = vmul.f32 %v1592, 0.35355338
  %v1607 = vmul.f32 %v1596, 0.35355338
  %v1608 = vmul.f32 %v1598, 0.35355338
  %1609 = vrot.lane.b32.xlu0 %v1573, 96
  %v1610 = vpop.permute.xlu0 %1609
  %1611 = vrot.lane.b32.xlu0 %v1578, 96
  %v1612 = vpop.permute.xlu0 %1611
  %v1614 = vsel %vm302, %v1601, 0
  %v1617 = vsel %vm302, %v1602, 0
  %v1619 = vsel %vm302, %v1610, 0
  %v1621 = vsel %vm302, %v1612, 0
  %1623 = vmatprep.subr.mxu0 0.0
  %1624 = vmatpush1.xpose.msra.mxu0 0.0
  %1625 = vmatprep.subr.mxu0 0.0
  %1626 = vmatpush1.xpose.msra.mxu0 0.0
  %1627 = vmatprep.subr.mxu0 0.0
  %1628 = vmatpush1.xpose.msra.mxu0 0.0
  %1629 = vmatprep.subr.mxu0 0.0
  %1630 = vmatpush1.xpose.msra.mxu0 0.0
  %1631 = vmatprep.subr.mxu0 0.0
  %1632 = vmatpush1.xpose.msra.mxu0 0.0
  %1633 = vmatprep.subr.mxu0 0.0
  %1634 = vmatpush1.xpose.msra.mxu0 0.0
  %1635 = vmatprep.subr.mxu0 0.0
  %1636 = vmatpush1.xpose.msra.mxu0 0.0
  %1637 = vmatprep.subr.mxu0 0.0
  %1638 = vmatpush1.xpose.msra.mxu0 0.0
  %1639 = vmatprep.subr.mxu0 0.0
  %1640 = vmatpush1.xpose.msra.mxu0 0.0
  %1641 = vmatprep.subr.mxu0 0.0
  %1642 = vmatpush1.xpose.msra.mxu0 0.0
  %1643 = vmatprep.subr.mxu0 0.0
  %1644 = vmatpush1.xpose.msra.mxu0 0.0
  %1645 = vmatprep.subr.mxu0 0.0
  %1646 = vmatpush1.xpose.msra.mxu0 0.0
  %1647 = vmatprep.subr.mxu0 0.0
  %1648 = vmatpush1.xpose.msra.mxu0 0.0
  %1649 = vmatprep.subr.mxu0 0.0
  %1650 = vmatpush1.xpose.msra.mxu0 0.0
  %1651 = vmatprep.subr.mxu0 0.0
  %1652 = vmatpush1.xpose.msra.mxu0 %v1621
  %1653 = vmatprep.subr.mxu0 0.0
  %1654 = vmatpush1.xpose.msra.mxu0 %v1619
  %1655 = vmatprep.subr.mxu0 0.0
  %1656 = vmatpush2.xpose.msra.mxu0 0.0
  %1657 = vmatprep.subr.mxu0 0.0
  %1658 = vmatpush2.xpose.msra.mxu0 0.0
  %1659 = vmatprep.subr.mxu0 0.0
  %1660 = vmatpush2.xpose.msra.mxu0 0.0
  %1661 = vmatprep.subr.mxu0 0.0
  %1662 = vmatpush2.xpose.msra.mxu0 0.0
  %1663 = vmatprep.subr.mxu0 0.0
  %1664 = vmatpush2.xpose.msra.mxu0 0.0
  %1665 = vmatprep.subr.mxu0 0.0
  %1666 = vmatpush2.xpose.msra.mxu0 0.0
  %1667 = vmatprep.subr.mxu0 0.0
  %1668 = vmatpush2.xpose.msra.mxu0 0.0
  %1669 = vmatprep.subr.mxu0 0.0
  %1670 = vmatpush2.xpose.msra.mxu0 0.0
  %1671 = vmatprep.subr.mxu0 0.0
  %1672 = vmatpush2.xpose.msra.mxu0 0.0
  %1673 = vmatprep.subr.mxu0 0.0
  %1674 = vmatpush2.xpose.msra.mxu0 0.0
  %1675 = vmatprep.subr.mxu0 0.0
  %1676 = vmatpush2.xpose.msra.mxu0 0.0
  %1677 = vmatprep.subr.mxu0 0.0
  %1678 = vmatpush2.xpose.msra.mxu0 0.0
  %1679 = vmatprep.subr.mxu0 0.0
  %1680 = vmatpush2.xpose.msra.mxu0 0.0
  %1681 = vmatprep.subr.mxu0 0.0
  %1682 = vmatpush2.xpose.msra.mxu0 0.0
  %1683 = vmatprep.subr.mxu0 0.0
  %1684 = vmatpush2.xpose.msra.mxu0 0.0
  %1685 = vmatprep.subr.mxu0 0.0
  %1686 = vmatpush2.xpose.msra.mxu0 0.0
  %1687 = vmatprep.mubr.f32.mxu0 0.0
  %1688 = vmatmul.mubr.f32.gmra.mxu0 %v1614
  %v1689 = vpop.f32.mrf.mxu0
  %v1690 = vadd.f32 %v21, %v1689
  %v1691 = vpop.f32.mrf.mxu0
  %1692 = vmatprep.mubr.f32.mxu0 0.0
  %1693 = vmatmul.mubr.f32.gmra.mxu0 %v1617
  %v1694 = vpop.f32.mrf.mxu0
  %v1695 = vadd.f32 %v22, %v1694
  %v1696 = vpop.f32.mrf.mxu0
  %1697 = vdwg.mxu0
  %1698 = vrot.lane.b32.xlu0 %v1584, 96
  %v1699 = vpop.permute.xlu0 %1698
  %1700 = vrot.lane.b32.xlu0 %v1586, 96
  %v1701 = vpop.permute.xlu0 %1700
  %v1703 = vsel %vm302, %v1603, 0
  %v1706 = vsel %vm302, %v1604, 0
  %v1708 = vsel %vm302, %v1699, 0
  %v1710 = vsel %vm302, %v1701, 0
  %1712 = vmatprep.subr.mxu0 0.0
  %1713 = vmatpush1.xpose.msra.mxu0 0.0
  %1714 = vmatprep.subr.mxu0 0.0
  %1715 = vmatpush1.xpose.msra.mxu0 0.0
  %1716 = vmatprep.subr.mxu0 0.0
  %1717 = vmatpush1.xpose.msra.mxu0 0.0
  %1718 = vmatprep.subr.mxu0 0.0
  %1719 = vmatpush1.xpose.msra.mxu0 0.0
  %1720 = vmatprep.subr.mxu0 0.0
  %1721 = vmatpush1.xpose.msra.mxu0 0.0
  %1722 = vmatprep.subr.mxu0 0.0
  %1723 = vmatpush1.xpose.msra.mxu0 0.0
  %1724 = vmatprep.subr.mxu0 0.0
  %1725 = vmatpush1.xpose.msra.mxu0 0.0
  %1726 = vmatprep.subr.mxu0 0.0
  %1727 = vmatpush1.xpose.msra.mxu0 0.0
  %1728 = vmatprep.subr.mxu0 0.0
  %1729 = vmatpush1.xpose.msra.mxu0 0.0
  %1730 = vmatprep.subr.mxu0 0.0
  %1731 = vmatpush1.xpose.msra.mxu0 0.0
  %1732 = vmatprep.subr.mxu0 0.0
  %1733 = vmatpush1.xpose.msra.mxu0 0.0
  %1734 = vmatprep.subr.mxu0 0.0
  %1735 = vmatpush1.xpose.msra.mxu0 0.0
  %1736 = vmatprep.subr.mxu0 0.0
  %1737 = vmatpush1.xpose.msra.mxu0 0.0
  %1738 = vmatprep.subr.mxu0 0.0
  %1739 = vmatpush1.xpose.msra.mxu0 0.0
  %1740 = vmatprep.subr.mxu0 0.0
  %1741 = vmatpush1.xpose.msra.mxu0 %v1710
  %1742 = vmatprep.subr.mxu0 0.0
  %1743 = vmatpush1.xpose.msra.mxu0 %v1708
  %1744 = vmatprep.subr.mxu0 0.0
  %1745 = vmatpush2.xpose.msra.mxu0 0.0
  %1746 = vmatprep.subr.mxu0 0.0
  %1747 = vmatpush2.xpose.msra.mxu0 0.0
  %1748 = vmatprep.subr.mxu0 0.0
  %1749 = vmatpush2.xpose.msra.mxu0 0.0
  %1750 = vmatprep.subr.mxu0 0.0
  %1751 = vmatpush2.xpose.msra.mxu0 0.0
  %1752 = vmatprep.subr.mxu0 0.0
  %1753 = vmatpush2.xpose.msra.mxu0 0.0
  %1754 = vmatprep.subr.mxu0 0.0
  %1755 = vmatpush2.xpose.msra.mxu0 0.0
  %1756 = vmatprep.subr.mxu0 0.0
  %1757 = vmatpush2.xpose.msra.mxu0 0.0
  %1758 = vmatprep.subr.mxu0 0.0
  %1759 = vmatpush2.xpose.msra.mxu0 0.0
  %1760 = vmatprep.subr.mxu0 0.0
  %1761 = vmatpush2.xpose.msra.mxu0 0.0
  %1762 = vmatprep.subr.mxu0 0.0
  %1763 = vmatpush2.xpose.msra.mxu0 0.0
  %1764 = vmatprep.subr.mxu0 0.0
  %1765 = vmatpush2.xpose.msra.mxu0 0.0
  %1766 = vmatprep.subr.mxu0 0.0
  %1767 = vmatpush2.xpose.msra.mxu0 0.0
  %1768 = vmatprep.subr.mxu0 0.0
  %1769 = vmatpush2.xpose.msra.mxu0 0.0
  %1770 = vmatprep.subr.mxu0 0.0
  %1771 = vmatpush2.xpose.msra.mxu0 0.0
  %1772 = vmatprep.subr.mxu0 0.0
  %1773 = vmatpush2.xpose.msra.mxu0 0.0
  %1774 = vmatprep.subr.mxu0 0.0
  %1775 = vmatpush2.xpose.msra.mxu0 0.0
  %1776 = vmatprep.mubr.f32.mxu0 0.0
  %1777 = vmatmul.mubr.f32.gmra.mxu0 %v1703
  %v1778 = vpop.f32.mrf.mxu0
  %v1779 = vadd.f32 %v21, %v1778
  %v1780 = vpop.f32.mrf.mxu0
  %1781 = vmatprep.mubr.f32.mxu0 0.0
  %1782 = vmatmul.mubr.f32.gmra.mxu0 %v1706
  %v1783 = vpop.f32.mrf.mxu0
  %v1784 = vadd.f32 %v22, %v1783
  %v1785 = vpop.f32.mrf.mxu0
  %1786 = vdwg.mxu0
  %1787 = vrot.lane.b32.xlu0 %v1590, 96
  %v1788 = vpop.permute.xlu0 %1787
  %1789 = vrot.lane.b32.xlu0 %v1592, 96
  %v1790 = vpop.permute.xlu0 %1789
  %v1792 = vsel %vm302, %v1605, 0
  %v1795 = vsel %vm302, %v1606, 0
  %v1797 = vsel %vm302, %v1788, 0
  %v1799 = vsel %vm302, %v1790, 0
  %1801 = vmatprep.subr.mxu0 0.0
  %1802 = vmatpush1.xpose.msra.mxu0 0.0
  %1803 = vmatprep.subr.mxu0 0.0
  %1804 = vmatpush1.xpose.msra.mxu0 0.0
  %1805 = vmatprep.subr.mxu0 0.0
  %1806 = vmatpush1.xpose.msra.mxu0 0.0
  %1807 = vmatprep.subr.mxu0 0.0
  %1808 = vmatpush1.xpose.msra.mxu0 0.0
  %1809 = vmatprep.subr.mxu0 0.0
  %1810 = vmatpush1.xpose.msra.mxu0 0.0
  %1811 = vmatprep.subr.mxu0 0.0
  %1812 = vmatpush1.xpose.msra.mxu0 0.0
  %1813 = vmatprep.subr.mxu0 0.0
  %1814 = vmatpush1.xpose.msra.mxu0 0.0
  %1815 = vmatprep.subr.mxu0 0.0
  %1816 = vmatpush1.xpose.msra.mxu0 0.0
  %1817 = vmatprep.subr.mxu0 0.0
  %1818 = vmatpush1.xpose.msra.mxu0 0.0
  %1819 = vmatprep.subr.mxu0 0.0
  %1820 = vmatpush1.xpose.msra.mxu0 0.0
  %1821 = vmatprep.subr.mxu0 0.0
  %1822 = vmatpush1.xpose.msra.mxu0 0.0
  %1823 = vmatprep.subr.mxu0 0.0
  %1824 = vmatpush1.xpose.msra.mxu0 0.0
  %1825 = vmatprep.subr.mxu0 0.0
  %1826 = vmatpush1.xpose.msra.mxu0 0.0
  %1827 = vmatprep.subr.mxu0 0.0
  %1828 = vmatpush1.xpose.msra.mxu0 0.0
  %1829 = vmatprep.subr.mxu0 0.0
  %1830 = vmatpush1.xpose.msra.mxu0 %v1799
  %1831 = vmatprep.subr.mxu0 0.0
  %1832 = vmatpush1.xpose.msra.mxu0 %v1797
  %1833 = vmatprep.subr.mxu0 0.0
  %1834 = vmatpush2.xpose.msra.mxu0 0.0
  %1835 = vmatprep.subr.mxu0 0.0
  %1836 = vmatpush2.xpose.msra.mxu0 0.0
  %1837 = vmatprep.subr.mxu0 0.0
  %1838 = vmatpush2.xpose.msra.mxu0 0.0
  %1839 = vmatprep.subr.mxu0 0.0
  %1840 = vmatpush2.xpose.msra.mxu0 0.0
  %1841 = vmatprep.subr.mxu0 0.0
  %1842 = vmatpush2.xpose.msra.mxu0 0.0
  %1843 = vmatprep.subr.mxu0 0.0
  %1844 = vmatpush2.xpose.msra.mxu0 0.0
  %1845 = vmatprep.subr.mxu0 0.0
  %1846 = vmatpush2.xpose.msra.mxu0 0.0
  %1847 = vmatprep.subr.mxu0 0.0
  %1848 = vmatpush2.xpose.msra.mxu0 0.0
  %1849 = vmatprep.subr.mxu0 0.0
  %1850 = vmatpush2.xpose.msra.mxu0 0.0
  %1851 = vmatprep.subr.mxu0 0.0
  %1852 = vmatpush2.xpose.msra.mxu0 0.0
  %1853 = vmatprep.subr.mxu0 0.0
  %1854 = vmatpush2.xpose.msra.mxu0 0.0
  %1855 = vmatprep.subr.mxu0 0.0
  %1856 = vmatpush2.xpose.msra.mxu0 0.0
  %1857 = vmatprep.subr.mxu0 0.0
  %1858 = vmatpush2.xpose.msra.mxu0 0.0
  %1859 = vmatprep.subr.mxu0 0.0
  %1860 = vmatpush2.xpose.msra.mxu0 0.0
  %1861 = vmatprep.subr.mxu0 0.0
  %1862 = vmatpush2.xpose.msra.mxu0 0.0
  %1863 = vmatprep.subr.mxu0 0.0
  %1864 = vmatpush2.xpose.msra.mxu0 0.0
  %1865 = vmatprep.mubr.f32.mxu0 0.0
  %1866 = vmatmul.mubr.f32.gmra.mxu0 %v1792
  %v1867 = vpop.f32.mrf.mxu0
  %v1868 = vadd.f32 %v21, %v1867
  %v1869 = vpop.f32.mrf.mxu0
  %1870 = vmatprep.mubr.f32.mxu0 0.0
  %1871 = vmatmul.mubr.f32.gmra.mxu0 %v1795
  %v1872 = vpop.f32.mrf.mxu0
  %v1873 = vadd.f32 %v22, %v1872
  %v1874 = vpop.f32.mrf.mxu0
  %1875 = vdwg.mxu0
  %1876 = vrot.lane.b32.xlu0 %v1596, 96
  %v1877 = vpop.permute.xlu0 %1876
  %1878 = vrot.lane.b32.xlu0 %v1598, 96
  %v1879 = vpop.permute.xlu0 %1878
  %v1881 = vsel %vm302, %v1607, 0
  %v1884 = vsel %vm302, %v1608, 0
  %v1886 = vsel %vm302, %v1877, 0
  %v1888 = vsel %vm302, %v1879, 0
  %1890 = vmatprep.subr.mxu0 0.0
  %1891 = vmatpush1.xpose.msra.mxu0 0.0
  %1892 = vmatprep.subr.mxu0 0.0
  %1893 = vmatpush1.xpose.msra.mxu0 0.0
  %1894 = vmatprep.subr.mxu0 0.0
  %1895 = vmatpush1.xpose.msra.mxu0 0.0
  %1896 = vmatprep.subr.mxu0 0.0
  %1897 = vmatpush1.xpose.msra.mxu0 0.0
  %1898 = vmatprep.subr.mxu0 0.0
  %1899 = vmatpush1.xpose.msra.mxu0 0.0
  %1900 = vmatprep.subr.mxu0 0.0
  %1901 = vmatpush1.xpose.msra.mxu0 0.0
  %1902 = vmatprep.subr.mxu0 0.0
  %1903 = vmatpush1.xpose.msra.mxu0 0.0
  %1904 = vmatprep.subr.mxu0 0.0
  %1905 = vmatpush1.xpose.msra.mxu0 0.0
  %1906 = vmatprep.subr.mxu0 0.0
  %1907 = vmatpush1.xpose.msra.mxu0 0.0
  %1908 = vmatprep.subr.mxu0 0.0
  %1909 = vmatpush1.xpose.msra.mxu0 0.0
  %1910 = vmatprep.subr.mxu0 0.0
  %1911 = vmatpush1.xpose.msra.mxu0 0.0
  %1912 = vmatprep.subr.mxu0 0.0
  %1913 = vmatpush1.xpose.msra.mxu0 0.0
  %1914 = vmatprep.subr.mxu0 0.0
  %1915 = vmatpush1.xpose.msra.mxu0 0.0
  %1916 = vmatprep.subr.mxu0 0.0
  %1917 = vmatpush1.xpose.msra.mxu0 0.0
  %1918 = vmatprep.subr.mxu0 0.0
  %1919 = vmatpush1.xpose.msra.mxu0 %v1888
  %1920 = vmatprep.subr.mxu0 0.0
  %1921 = vmatpush1.xpose.msra.mxu0 %v1886
  %1922 = vmatprep.subr.mxu0 0.0
  %1923 = vmatpush2.xpose.msra.mxu0 0.0
  %1924 = vmatprep.subr.mxu0 0.0
  %1925 = vmatpush2.xpose.msra.mxu0 0.0
  %1926 = vmatprep.subr.mxu0 0.0
  %1927 = vmatpush2.xpose.msra.mxu0 0.0
  %1928 = vmatprep.subr.mxu0 0.0
  %1929 = vmatpush2.xpose.msra.mxu0 0.0
  %1930 = vmatprep.subr.mxu0 0.0
  %1931 = vmatpush2.xpose.msra.mxu0 0.0
  %1932 = vmatprep.subr.mxu0 0.0
  %1933 = vmatpush2.xpose.msra.mxu0 0.0
  %1934 = vmatprep.subr.mxu0 0.0
  %1935 = vmatpush2.xpose.msra.mxu0 0.0
  %1936 = vmatprep.subr.mxu0 0.0
  %1937 = vmatpush2.xpose.msra.mxu0 0.0
  %1938 = vmatprep.subr.mxu0 0.0
  %1939 = vmatpush2.xpose.msra.mxu0 0.0
  %1940 = vmatprep.subr.mxu0 0.0
  %1941 = vmatpush2.xpose.msra.mxu0 0.0
  %1942 = vmatprep.subr.mxu0 0.0
  %1943 = vmatpush2.xpose.msra.mxu0 0.0
  %1944 = vmatprep.subr.mxu0 0.0
  %1945 = vmatpush2.xpose.msra.mxu0 0.0
  %1946 = vmatprep.subr.mxu0 0.0
  %1947 = vmatpush2.xpose.msra.mxu0 0.0
  %1948 = vmatprep.subr.mxu0 0.0
  %1949 = vmatpush2.xpose.msra.mxu0 0.0
  %1950 = vmatprep.subr.mxu0 0.0
  %1951 = vmatpush2.xpose.msra.mxu0 0.0
  %1952 = vmatprep.subr.mxu0 0.0
  %1953 = vmatpush2.xpose.msra.mxu0 0.0
  %1954 = vmatprep.mubr.f32.mxu0 0.0
  %1955 = vmatmul.mubr.f32.gmra.mxu0 %v1881
  %v1956 = vpop.f32.mrf.mxu0
  %v1957 = vadd.f32 %v21, %v1956
  %v1958 = vpop.f32.mrf.mxu0
  %1959 = vmatprep.mubr.f32.mxu0 0.0
  %1960 = vmatmul.mubr.f32.gmra.mxu0 %v1884
  %v1961 = vpop.f32.mrf.mxu0
  %v1962 = vadd.f32 %v22, %v1961
  %v1963 = vpop.f32.mrf.mxu0
  %1964 = vdwg.mxu0
  %v1965 = vsel %vm655, %v1690, -inf
  %1966 = vmax.xlane.f32.xlu0 %v1965
  %v1967 = vpop.xlane.xlu0 %1966
  %v1968 = vsel %vm655, %v1695, -inf
  %1969 = vmax.xlane.f32.xlu0 %v1968
  %v1970 = vpop.xlane.xlu0 %1969
  %v1971 = vsel %vm655, %v1779, -inf
  %1972 = vmax.xlane.f32.xlu0 %v1971
  %v1973 = vpop.xlane.xlu0 %1972
  %v1974 = vsel %vm655, %v1784, -inf
  %1975 = vmax.xlane.f32.xlu0 %v1974
  %v1976 = vpop.xlane.xlu0 %1975
  %v1977 = vsel %vm655, %v1868, -inf
  %1978 = vmax.xlane.f32.xlu0 %v1977
  %v1979 = vpop.xlane.xlu0 %1978
  %v1980 = vsel %vm655, %v1873, -inf
  %1981 = vmax.xlane.f32.xlu0 %v1980
  %v1982 = vpop.xlane.xlu0 %1981
  %v1983 = vsel %vm655, %v1957, -inf
  %1984 = vmax.xlane.f32.xlu0 %v1983
  %v1985 = vpop.xlane.xlu0 %1984
  %v1986 = vsel %vm655, %v1962, -inf
  %1987 = vmax.xlane.f32.xlu0 %v1986
  %v1988 = vpop.xlane.xlu0 %1987
  %v1989 = vsub.f32 %v1690, %v1967
  %v1990 = vsub.f32 %v1695, %v1970
  %v1991 = vsub.f32 %v1779, %v1973
  %v1992 = vsub.f32 %v1784, %v1976
  %v1993 = vsub.f32 %v1868, %v1979
  %v1994 = vsub.f32 %v1873, %v1982
  %v1995 = vsub.f32 %v1957, %v1985
  %v1996 = vsub.f32 %v1962, %v1988
  %v1997 = vmul.f32 %v1989, 1.442695
  %v1998 = vpow.pop %v1997
  %v1999 = vmul.f32 %v1990, 1.442695
  %v2000 = vpow.pop %v1999
  %v2001 = vmul.f32 %v1991, 1.442695
  %v2002 = vpow.pop %v2001
  %v2003 = vmul.f32 %v1992, 1.442695
  %v2004 = vpow.pop %v2003
  %v2005 = vmul.f32 %v1993, 1.442695
  %v2006 = vpow.pop %v2005
  %v2007 = vmul.f32 %v1994, 1.442695
  %v2008 = vpow.pop %v2007
  %v2009 = vmul.f32 %v1995, 1.442695
  %v2010 = vpow.pop %v2009
  %v2011 = vmul.f32 %v1996, 1.442695
  %v2012 = vpow.pop %v2011
  %v2013 = vsel %vm655, %v1998, 0.0
  %2014 = vadd.xlane.f32.xlu0 %v2013
  %v2015 = vpop.xlane.xlu0 %2014
  %v2016 = vsel %vm655, %v2000, 0.0
  %2017 = vadd.xlane.f32.xlu0 %v2016
  %v2018 = vpop.xlane.xlu0 %2017
  %v2019 = vsel %vm655, %v2002, 0.0
  %2020 = vadd.xlane.f32.xlu0 %v2019
  %v2021 = vpop.xlane.xlu0 %2020
  %v2022 = vsel %vm655, %v2004, 0.0
  %2023 = vadd.xlane.f32.xlu0 %v2022
  %v2024 = vpop.xlane.xlu0 %2023
  %v2025 = vsel %vm655, %v2006, 0.0
  %2026 = vadd.xlane.f32.xlu0 %v2025
  %v2027 = vpop.xlane.xlu0 %2026
  %v2028 = vsel %vm655, %v2008, 0.0
  %2029 = vadd.xlane.f32.xlu0 %v2028
  %v2030 = vpop.xlane.xlu0 %2029
  %v2031 = vsel %vm655, %v2010, 0.0
  %2032 = vadd.xlane.f32.xlu0 %v2031
  %v2033 = vpop.xlane.xlu0 %2032
  %v2034 = vsel %vm655, %v2012, 0.0
  %2035 = vadd.xlane.f32.xlu0 %v2034
  %v2036 = vpop.xlane.xlu0 %2035
  %v2037 = vrcp.pop %v2015
  %v2038 = vrcp.pop %v2018
  %v2039 = vrcp.pop %v2021
  %v2040 = vrcp.pop %v2024
  %v2041 = vrcp.pop %v2027
  %v2042 = vrcp.pop %v2030
  %v2043 = vrcp.pop %v2033
  %v2044 = vrcp.pop %v2036
  %v2045 = vmul.f32 %v1998, %v2037
  %v2046 = vmul.f32 %v2000, %v2038
  %v2047 = vmul.f32 %v2002, %v2039
  %v2048 = vmul.f32 %v2004, %v2040
  %v2049 = vmul.f32 %v2006, %v2041
  %v2050 = vmul.f32 %v2008, %v2042
  %v2051 = vmul.f32 %v2010, %v2043
  %v2052 = vmul.f32 %v2012, %v2044
  %2053 = vrot.lane.b32.xlu0 %v1573, 64
  %v2054 = vpop.permute.xlu0 %2053
  %2055 = vrot.lane.b32.xlu0 %v1578, 64
  %v2056 = vpop.permute.xlu0 %2055
  %v2060 = vsel %vm655, %v2045, 0
  %v2063 = vsel %vm655, %v2046, 0
  %2065 = vmatprep.subr.mxu0 0.0
  %2066 = vmatpush1.msra.mxu0 0.0
  %2067 = vmatprep.subr.mxu0 0.0
  %2068 = vmatpush1.msra.mxu0 0.0
  %2069 = vmatprep.subr.mxu0 0.0
  %2070 = vmatpush1.msra.mxu0 0.0
  %2071 = vmatprep.subr.mxu0 0.0
  %2072 = vmatpush1.msra.mxu0 0.0
  %2073 = vmatprep.subr.mxu0 0.0
  %2074 = vmatpush1.msra.mxu0 0.0
  %2075 = vmatprep.subr.mxu0 0.0
  %2076 = vmatpush1.msra.mxu0 0.0
  %2077 = vmatprep.subr.mxu0 0.0
  %2078 = vmatpush1.msra.mxu0 0.0
  %2079 = vmatprep.subr.mxu0 0.0
  %2080 = vmatpush1.msra.mxu0 0.0
  %2081 = vmatprep.subr.mxu0 0.0
  %2082 = vmatpush1.msra.mxu0 0.0
  %2083 = vmatprep.subr.mxu0 0.0
  %2084 = vmatpush1.msra.mxu0 0.0
  %2085 = vmatprep.subr.mxu0 0.0
  %2086 = vmatpush1.msra.mxu0 0.0
  %2087 = vmatprep.subr.mxu0 0.0
  %2088 = vmatpush1.msra.mxu0 0.0
  %2089 = vmatprep.subr.mxu0 0.0
  %2090 = vmatpush1.msra.mxu0 0.0
  %2091 = vmatprep.subr.mxu0 0.0
  %2092 = vmatpush1.msra.mxu0 0.0
  %2093 = vmatprep.subr.mxu0 0.0
  %2094 = vmatpush1.msra.mxu0 %v2056
  %2095 = vmatprep.subr.mxu0 0.0
  %2096 = vmatpush1.msra.mxu0 %v2054
  %2097 = vmatprep.subr.mxu0 0.0
  %2098 = vmatpush2.msra.mxu0 0.0
  %2099 = vmatprep.subr.mxu0 0.0
  %2100 = vmatpush2.msra.mxu0 0.0
  %2101 = vmatprep.subr.mxu0 0.0
  %2102 = vmatpush2.msra.mxu0 0.0
  %2103 = vmatprep.subr.mxu0 0.0
  %2104 = vmatpush2.msra.mxu0 0.0
  %2105 = vmatprep.subr.mxu0 0.0
  %2106 = vmatpush2.msra.mxu0 0.0
  %2107 = vmatprep.subr.mxu0 0.0
  %2108 = vmatpush2.msra.mxu0 0.0
  %2109 = vmatprep.subr.mxu0 0.0
  %2110 = vmatpush2.msra.mxu0 0.0
  %2111 = vmatprep.subr.mxu0 0.0
  %2112 = vmatpush2.msra.mxu0 0.0
  %2113 = vmatprep.subr.mxu0 0.0
  %2114 = vmatpush2.msra.mxu0 0.0
  %2115 = vmatprep.subr.mxu0 0.0
  %2116 = vmatpush2.msra.mxu0 0.0
  %2117 = vmatprep.subr.mxu0 0.0
  %2118 = vmatpush2.msra.mxu0 0.0
  %2119 = vmatprep.subr.mxu0 0.0
  %2120 = vmatpush2.msra.mxu0 0.0
  %2121 = vmatprep.subr.mxu0 0.0
  %2122 = vmatpush2.msra.mxu0 0.0
  %2123 = vmatprep.subr.mxu0 0.0
  %2124 = vmatpush2.msra.mxu0 0.0
  %2125 = vmatprep.subr.mxu0 0.0
  %2126 = vmatpush2.msra.mxu0 0.0
  %2127 = vmatprep.subr.mxu0 0.0
  %2128 = vmatpush2.msra.mxu0 0.0
  %2129 = vmatprep.mubr.f32.mxu0 0.0
  %2130 = vmatmul.mubr.f32.gmra.mxu0 %v2060
  %v2131 = vpop.f32.mrf.mxu0
  %v2132 = vadd.f32 0.0, %v2131
  %v2133 = vpop.f32.mrf.mxu0
  %2134 = vmatprep.mubr.f32.mxu0 0.0
  %2135 = vmatmul.mubr.f32.gmra.mxu0 %v2063
  %v2136 = vpop.f32.mrf.mxu0
  %v2137 = vadd.f32 0.0, %v2136
  %v2138 = vpop.f32.mrf.mxu0
  %2139 = vdwg.mxu0
  %2140 = vrot.lane.b32.xlu0 %v1584, 64
  %v2141 = vpop.permute.xlu0 %2140
  %2142 = vrot.lane.b32.xlu0 %v1586, 64
  %v2143 = vpop.permute.xlu0 %2142
  %v2147 = vsel %vm655, %v2047, 0
  %v2150 = vsel %vm655, %v2048, 0
  %2152 = vmatprep.subr.mxu0 0.0
  %2153 = vmatpush1.msra.mxu0 0.0
  %2154 = vmatprep.subr.mxu0 0.0
  %2155 = vmatpush1.msra.mxu0 0.0
  %2156 = vmatprep.subr.mxu0 0.0
  %2157 = vmatpush1.msra.mxu0 0.0
  %2158 = vmatprep.subr.mxu0 0.0
  %2159 = vmatpush1.msra.mxu0 0.0
  %2160 = vmatprep.subr.mxu0 0.0
  %2161 = vmatpush1.msra.mxu0 0.0
  %2162 = vmatprep.subr.mxu0 0.0
  %2163 = vmatpush1.msra.mxu0 0.0
  %2164 = vmatprep.subr.mxu0 0.0
  %2165 = vmatpush1.msra.mxu0 0.0
  %2166 = vmatprep.subr.mxu0 0.0
  %2167 = vmatpush1.msra.mxu0 0.0
  %2168 = vmatprep.subr.mxu0 0.0
  %2169 = vmatpush1.msra.mxu0 0.0
  %2170 = vmatprep.subr.mxu0 0.0
  %2171 = vmatpush1.msra.mxu0 0.0
  %2172 = vmatprep.subr.mxu0 0.0
  %2173 = vmatpush1.msra.mxu0 0.0
  %2174 = vmatprep.subr.mxu0 0.0
  %2175 = vmatpush1.msra.mxu0 0.0
  %2176 = vmatprep.subr.mxu0 0.0
  %2177 = vmatpush1.msra.mxu0 0.0
  %2178 = vmatprep.subr.mxu0 0.0
  %2179 = vmatpush1.msra.mxu0 0.0
  %2180 = vmatprep.subr.mxu0 0.0
  %2181 = vmatpush1.msra.mxu0 %v2143
  %2182 = vmatprep.subr.mxu0 0.0
  %2183 = vmatpush1.msra.mxu0 %v2141
  %2184 = vmatprep.subr.mxu0 0.0
  %2185 = vmatpush2.msra.mxu0 0.0
  %2186 = vmatprep.subr.mxu0 0.0
  %2187 = vmatpush2.msra.mxu0 0.0
  %2188 = vmatprep.subr.mxu0 0.0
  %2189 = vmatpush2.msra.mxu0 0.0
  %2190 = vmatprep.subr.mxu0 0.0
  %2191 = vmatpush2.msra.mxu0 0.0
  %2192 = vmatprep.subr.mxu0 0.0
  %2193 = vmatpush2.msra.mxu0 0.0
  %2194 = vmatprep.subr.mxu0 0.0
  %2195 = vmatpush2.msra.mxu0 0.0
  %2196 = vmatprep.subr.mxu0 0.0
  %2197 = vmatpush2.msra.mxu0 0.0
  %2198 = vmatprep.subr.mxu0 0.0
  %2199 = vmatpush2.msra.mxu0 0.0
  %2200 = vmatprep.subr.mxu0 0.0
  %2201 = vmatpush2.msra.mxu0 0.0
  %2202 = vmatprep.subr.mxu0 0.0
  %2203 = vmatpush2.msra.mxu0 0.0
  %2204 = vmatprep.subr.mxu0 0.0
  %2205 = vmatpush2.msra.mxu0 0.0
  %2206 = vmatprep.subr.mxu0 0.0
  %2207 = vmatpush2.msra.mxu0 0.0
  %2208 = vmatprep.subr.mxu0 0.0
  %2209 = vmatpush2.msra.mxu0 0.0
  %2210 = vmatprep.subr.mxu0 0.0
  %2211 = vmatpush2.msra.mxu0 0.0
  %2212 = vmatprep.subr.mxu0 0.0
  %2213 = vmatpush2.msra.mxu0 0.0
  %2214 = vmatprep.subr.mxu0 0.0
  %2215 = vmatpush2.msra.mxu0 0.0
  %2216 = vmatprep.mubr.f32.mxu0 0.0
  %2217 = vmatmul.mubr.f32.gmra.mxu0 %v2147
  %v2218 = vpop.f32.mrf.mxu0
  %v2219 = vadd.f32 0.0, %v2218
  %v2220 = vpop.f32.mrf.mxu0
  %2221 = vmatprep.mubr.f32.mxu0 0.0
  %2222 = vmatmul.mubr.f32.gmra.mxu0 %v2150
  %v2223 = vpop.f32.mrf.mxu0
  %v2224 = vadd.f32 0.0, %v2223
  %v2225 = vpop.f32.mrf.mxu0
  %2226 = vdwg.mxu0
  %2227 = vrot.lane.b32.xlu0 %v1590, 64
  %v2228 = vpop.permute.xlu0 %2227
  %2229 = vrot.lane.b32.xlu0 %v1592, 64
  %v2230 = vpop.permute.xlu0 %2229
  %v2234 = vsel %vm655, %v2049, 0
  %v2237 = vsel %vm655, %v2050, 0
  %2239 = vmatprep.subr.mxu0 0.0
  %2240 = vmatpush1.msra.mxu0 0.0
  %2241 = vmatprep.subr.mxu0 0.0
  %2242 = vmatpush1.msra.mxu0 0.0
  %2243 = vmatprep.subr.mxu0 0.0
  %2244 = vmatpush1.msra.mxu0 0.0
  %2245 = vmatprep.subr.mxu0 0.0
  %2246 = vmatpush1.msra.mxu0 0.0
  %2247 = vmatprep.subr.mxu0 0.0
  %2248 = vmatpush1.msra.mxu0 0.0
  %2249 = vmatprep.subr.mxu0 0.0
  %2250 = vmatpush1.msra.mxu0 0.0
  %2251 = vmatprep.subr.mxu0 0.0
  %2252 = vmatpush1.msra.mxu0 0.0
  %2253 = vmatprep.subr.mxu0 0.0
  %2254 = vmatpush1.msra.mxu0 0.0
  %2255 = vmatprep.subr.mxu0 0.0
  %2256 = vmatpush1.msra.mxu0 0.0
  %2257 = vmatprep.subr.mxu0 0.0
  %2258 = vmatpush1.msra.mxu0 0.0
  %2259 = vmatprep.subr.mxu0 0.0
  %2260 = vmatpush1.msra.mxu0 0.0
  %2261 = vmatprep.subr.mxu0 0.0
  %2262 = vmatpush1.msra.mxu0 0.0
  %2263 = vmatprep.subr.mxu0 0.0
  %2264 = vmatpush1.msra.mxu0 0.0
  %2265 = vmatprep.subr.mxu0 0.0
  %2266 = vmatpush1.msra.mxu0 0.0
  %2267 = vmatprep.subr.mxu0 0.0
  %2268 = vmatpush1.msra.mxu0 %v2230
  %2269 = vmatprep.subr.mxu0 0.0
  %2270 = vmatpush1.msra.mxu0 %v2228
  %2271 = vmatprep.subr.mxu0 0.0
  %2272 = vmatpush2.msra.mxu0 0.0
  %2273 = vmatprep.subr.mxu0 0.0
  %2274 = vmatpush2.msra.mxu0 0.0
  %2275 = vmatprep.subr.mxu0 0.0
  %2276 = vmatpush2.msra.mxu0 0.0
  %2277 = vmatprep.subr.mxu0 0.0
  %2278 = vmatpush2.msra.mxu0 0.0
  %2279 = vmatprep.subr.mxu0 0.0
  %2280 = vmatpush2.msra.mxu0 0.0
  %2281 = vmatprep.subr.mxu0 0.0
  %2282 = vmatpush2.msra.mxu0 0.0
  %2283 = vmatprep.subr.mxu0 0.0
  %2284 = vmatpush2.msra.mxu0 0.0
  %2285 = vmatprep.subr.mxu0 0.0
  %2286 = vmatpush2.msra.mxu0 0.0
  %2287 = vmatprep.subr.mxu0 0.0
  %2288 = vmatpush2.msra.mxu0 0.0
  %2289 = vmatprep.subr.mxu0 0.0
  %2290 = vmatpush2.msra.mxu0 0.0
  %2291 = vmatprep.subr.mxu0 0.0
  %2292 = vmatpush2.msra.mxu0 0.0
  %2293 = vmatprep.subr.mxu0 0.0
  %2294 = vmatpush2.msra.mxu0 0.0
  %2295 = vmatprep.subr.mxu0 0.0
  %2296 = vmatpush2.msra.mxu0 0.0
  %2297 = vmatprep.subr.mxu0 0.0
  %2298 = vmatpush2.msra.mxu0 0.0
  %2299 = vmatprep.subr.mxu0 0.0
  %2300 = vmatpush2.msra.mxu0 0.0
  %2301 = vmatprep.subr.mxu0 0.0
  %2302 = vmatpush2.msra.mxu0 0.0
  %2303 = vmatprep.mubr.f32.mxu0 0.0
  %2304 = vmatmul.mubr.f32.gmra.mxu0 %v2234
  %v2305 = vpop.f32.mrf.mxu0
  %v2306 = vadd.f32 0.0, %v2305
  %v2307 = vpop.f32.mrf.mxu0
  %2308 = vmatprep.mubr.f32.mxu0 0.0
  %2309 = vmatmul.mubr.f32.gmra.mxu0 %v2237
  %v2310 = vpop.f32.mrf.mxu0
  %v2311 = vadd.f32 0.0, %v2310
  %v2312 = vpop.f32.mrf.mxu0
  %2313 = vdwg.mxu0
  %2314 = vrot.lane.b32.xlu0 %v1596, 64
  %v2315 = vpop.permute.xlu0 %2314
  %2316 = vrot.lane.b32.xlu0 %v1598, 64
  %v2317 = vpop.permute.xlu0 %2316
  %v2321 = vsel %vm655, %v2051, 0
  %v2324 = vsel %vm655, %v2052, 0
  %2326 = vmatprep.subr.mxu0 0.0
  %2327 = vmatpush1.msra.mxu0 0.0
  %2328 = vmatprep.subr.mxu0 0.0
  %2329 = vmatpush1.msra.mxu0 0.0
  %2330 = vmatprep.subr.mxu0 0.0
  %2331 = vmatpush1.msra.mxu0 0.0
  %2332 = vmatprep.subr.mxu0 0.0
  %2333 = vmatpush1.msra.mxu0 0.0
  %2334 = vmatprep.subr.mxu0 0.0
  %2335 = vmatpush1.msra.mxu0 0.0
  %2336 = vmatprep.subr.mxu0 0.0
  %2337 = vmatpush1.msra.mxu0 0.0
  %2338 = vmatprep.subr.mxu0 0.0
  %2339 = vmatpush1.msra.mxu0 0.0
  %2340 = vmatprep.subr.mxu0 0.0
  %2341 = vmatpush1.msra.mxu0 0.0
  %2342 = vmatprep.subr.mxu0 0.0
  %2343 = vmatpush1.msra.mxu0 0.0
  %2344 = vmatprep.subr.mxu0 0.0
  %2345 = vmatpush1.msra.mxu0 0.0
  %2346 = vmatprep.subr.mxu0 0.0
  %2347 = vmatpush1.msra.mxu0 0.0
  %2348 = vmatprep.subr.mxu0 0.0
  %2349 = vmatpush1.msra.mxu0 0.0
  %2350 = vmatprep.subr.mxu0 0.0
  %2351 = vmatpush1.msra.mxu0 0.0
  %2352 = vmatprep.subr.mxu0 0.0
  %2353 = vmatpush1.msra.mxu0 0.0
  %2354 = vmatprep.subr.mxu0 0.0
  %2355 = vmatpush1.msra.mxu0 %v2317
  %2356 = vmatprep.subr.mxu0 0.0
  %2357 = vmatpush1.msra.mxu0 %v2315
  %2358 = vmatprep.subr.mxu0 0.0
  %2359 = vmatpush2.msra.mxu0 0.0
  %2360 = vmatprep.subr.mxu0 0.0
  %2361 = vmatpush2.msra.mxu0 0.0
  %2362 = vmatprep.subr.mxu0 0.0
  %2363 = vmatpush2.msra.mxu0 0.0
  %2364 = vmatprep.subr.mxu0 0.0
  %2365 = vmatpush2.msra.mxu0 0.0
  %2366 = vmatprep.subr.mxu0 0.0
  %2367 = vmatpush2.msra.mxu0 0.0
  %2368 = vmatprep.subr.mxu0 0.0
  %2369 = vmatpush2.msra.mxu0 0.0
  %2370 = vmatprep.subr.mxu0 0.0
  %2371 = vmatpush2.msra.mxu0 0.0
  %2372 = vmatprep.subr.mxu0 0.0
  %2373 = vmatpush2.msra.mxu0 0.0
  %2374 = vmatprep.subr.mxu0 0.0
  %2375 = vmatpush2.msra.mxu0 0.0
  %2376 = vmatprep.subr.mxu0 0.0
  %2377 = vmatpush2.msra.mxu0 0.0
  %2378 = vmatprep.subr.mxu0 0.0
  %2379 = vmatpush2.msra.mxu0 0.0
  %2380 = vmatprep.subr.mxu0 0.0
  %2381 = vmatpush2.msra.mxu0 0.0
  %2382 = vmatprep.subr.mxu0 0.0
  %2383 = vmatpush2.msra.mxu0 0.0
  %2384 = vmatprep.subr.mxu0 0.0
  %2385 = vmatpush2.msra.mxu0 0.0
  %2386 = vmatprep.subr.mxu0 0.0
  %2387 = vmatpush2.msra.mxu0 0.0
  %2388 = vmatprep.subr.mxu0 0.0
  %2389 = vmatpush2.msra.mxu0 0.0
  %2390 = vmatprep.mubr.f32.mxu0 0.0
  %2391 = vmatmul.mubr.f32.gmra.mxu0 %v2321
  %v2392 = vpop.f32.mrf.mxu0
  %v2393 = vadd.f32 0.0, %v2392
  %v2394 = vpop.f32.mrf.mxu0
  %2395 = vmatprep.mubr.f32.mxu0 0.0
  %2396 = vmatmul.mubr.f32.gmra.mxu0 %v2324
  %v2397 = vpop.f32.mrf.mxu0
  %v2398 = vadd.f32 0.0, %v2397
  %v2399 = vpop.f32.mrf.mxu0
  %2400 = vdwg.mxu0
  %2403 = vrot.lane.b32.xlu0 %v2219, 8
  %v2404 = vpop.permute.xlu0 %2403
  %2405 = vrot.lane.b32.xlu0 %v2224, 8
  %v2406 = vpop.permute.xlu0 %2405
  %2411 = vrot.lane.b32.xlu0 %v2306, 16
  %v2412 = vpop.permute.xlu0 %2411
  %2413 = vrot.lane.b32.xlu0 %v2311, 16
  %v2414 = vpop.permute.xlu0 %2413
  %2419 = vrot.lane.b32.xlu0 %v2393, 24
  %v2420 = vpop.permute.xlu0 %2419
  %2421 = vrot.lane.b32.xlu0 %v2398, 24
  %v2422 = vpop.permute.xlu0 %2421
  %v2425 = vsel %vm302, %v2132, %v2404
  %v2426 = vsel %vm302, %v2137, %v2406
  %v2427 = vsel %vm655, %v2425, %v2412
  %v2428 = vsel %vm655, %v2426, %v2414
  %v2429 = vsel %vm1120, %v2427, %v2420
  %v2430 = vsel %vm1120, %v2428, %v2422
  %v2432 = vsel %vm145, %v2429, 0
  %v2435 = vsel %vm145, %v2430, 0
  %2437 = vmatprep.subr.mxu0 0.0
  %2438 = vmatpush1.msra.mxu0 0.0
  %2439 = vmatprep.subr.mxu0 0.0
  %2440 = vmatpush1.msra.mxu0 0.0
  %2441 = vmatprep.subr.mxu0 0.0
  %2442 = vmatpush1.msra.mxu0 0.0
  %2443 = vmatprep.subr.mxu0 0.0
  %2444 = vmatpush1.msra.mxu0 0.0
  %2445 = vmatprep.subr.mxu0 0.0
  %2446 = vmatpush1.msra.mxu0 0.0
  %2447 = vmatprep.subr.mxu0 0.0
  %2448 = vmatpush1.msra.mxu0 0.0
  %2449 = vmatprep.subr.mxu0 0.0
  %2450 = vmatpush1.msra.mxu0 0.0
  %2451 = vmatprep.subr.mxu0 0.0
  %2452 = vmatpush1.msra.mxu0 0.0
  %2453 = vmatprep.subr.mxu0 0.0
  %2454 = vmatpush1.msra.mxu0 0.0
  %2455 = vmatprep.subr.mxu0 0.0
  %2456 = vmatpush1.msra.mxu0 0.0
  %2457 = vmatprep.subr.mxu0 0.0
  %2458 = vmatpush1.msra.mxu0 0.0
  %2459 = vmatprep.subr.mxu0 0.0
  %2460 = vmatpush1.msra.mxu0 0.0
  %2461 = vmatprep.subr.mxu0 0.0
  %2462 = vmatpush1.msra.mxu0 %v1440
  %2463 = vmatprep.subr.mxu0 0.0
  %2464 = vmatpush1.msra.mxu0 %v1437
  %2465 = vmatprep.subr.mxu0 0.0
  %2466 = vmatpush1.msra.mxu0 %v1434
  %2467 = vmatprep.subr.mxu0 0.0
  %2468 = vmatpush1.msra.mxu0 %v1431
  %2469 = vmatprep.subr.mxu0 0.0
  %2470 = vmatpush2.msra.mxu0 0.0
  %2471 = vmatprep.subr.mxu0 0.0
  %2472 = vmatpush2.msra.mxu0 0.0
  %2473 = vmatprep.subr.mxu0 0.0
  %2474 = vmatpush2.msra.mxu0 0.0
  %2475 = vmatprep.subr.mxu0 0.0
  %2476 = vmatpush2.msra.mxu0 0.0
  %2477 = vmatprep.subr.mxu0 0.0
  %2478 = vmatpush2.msra.mxu0 0.0
  %2479 = vmatprep.subr.mxu0 0.0
  %2480 = vmatpush2.msra.mxu0 0.0
  %2481 = vmatprep.subr.mxu0 0.0
  %2482 = vmatpush2.msra.mxu0 0.0
  %2483 = vmatprep.subr.mxu0 0.0
  %2484 = vmatpush2.msra.mxu0 0.0
  %2485 = vmatprep.subr.mxu0 0.0
  %2486 = vmatpush2.msra.mxu0 0.0
  %2487 = vmatprep.subr.mxu0 0.0
  %2488 = vmatpush2.msra.mxu0 0.0
  %2489 = vmatprep.subr.mxu0 0.0
  %2490 = vmatpush2.msra.mxu0 0.0
  %2491 = vmatprep.subr.mxu0 0.0
  %2492 = vmatpush2.msra.mxu0 0.0
  %2493 = vmatprep.subr.mxu0 0.0
  %2494 = vmatpush2.msra.mxu0 0.0
  %2495 = vmatprep.subr.mxu0 0.0
  %2496 = vmatpush2.msra.mxu0 0.0
  %2497 = vmatprep.subr.mxu0 0.0
  %2498 = vmatpush2.msra.mxu0 0.0
  %2499 = vmatprep.subr.mxu0 0.0
  %2500 = vmatpush2.msra.mxu0 0.0
  %2501 = vmatprep.mubr.f32.mxu0 0.0
  %2502 = vmatmul.mubr.f32.gmra.mxu0 %v2432
  %v2503 = vpop.f32.mrf.mxu0
  %v2504 = vadd.f32 0.0, %v2503
  %v2505 = vpop.f32.mrf.mxu0
  %2506 = vmatprep.mubr.f32.mxu0 0.0
  %2507 = vmatmul.mubr.f32.gmra.mxu0 %v2435
  %v2508 = vpop.f32.mrf.mxu0
  %v2509 = vadd.f32 0.0, %v2508
  %v2510 = vpop.f32.mrf.mxu0
  %2511 = vdwg.mxu0
  %v2512 = vadd.f32 %v1426, %v2504
  %v2513 = vadd.f32 %v1427, %v2509
  %v2514 = vlaneseq
  %v2515 = vshrl.u32 %v2514, 7
  %v2516 = vsub.s32 1, %v2515
  %v2517 = vrot.slane %v20, %v2516
  %v2518 = vadd.f32 %v2512, %v2517
  %v2519 = vadd.f32 %v2513, %v2517
  %v2520 = vsel %vm145, %v2518, 0.0
  %2521 = vadd.xlane.f32.xlu0 %v2520
  %v2522 = vpop.xlane.xlu0 %2521
  %v2523 = vsel %vm145, %v2519, 0.0
  %2524 = vadd.xlane.f32.xlu0 %v2523
  %v2525 = vpop.xlane.xlu0 %2524
  %v2526 = vmul.f32 %v2522, %v152
  %v2527 = vmul.f32 %v2525, %v152
  %v2528 = vsub.f32 %v2518, %v2526
  %v2529 = vsub.f32 %v2519, %v2527
  %v2530 = vmul.f32 %v2528, %v2528
  %v2531 = vmul.f32 %v2529, %v2529
  %v2532 = vsel %vm145, %v2530, 0.0
  %2533 = vadd.xlane.f32.xlu0 %v2532
  %v2534 = vpop.xlane.xlu0 %2533
  %v2535 = vsel %vm145, %v2531, 0.0
  %2536 = vadd.xlane.f32.xlu0 %v2535
  %v2537 = vpop.xlane.xlu0 %2536
  %v2538 = vmul.f32 %v2534, %v152
  %v2539 = vmul.f32 %v2537, %v152
  %v2540 = vadd.f32 %v2538, 1e-05
  %v2541 = vadd.f32 %v2539, 1e-05
  %v2542 = vrsqrt.pop %v2540
  %v2543 = vrsqrt.pop %v2541
  %v2544 = vmul.f32 %v2528, %v2542
  %v2545 = vmul.f32 %v2529, %v2543
  %v2546 = vlaneseq
  %v2547 = vshrl.u32 %v2546, 7
  %v2548 = vsub.s32 4, %v2547
  %v2549 = vrot.slane %v20, %v2548
  %v2550 = vmul.f32 %v2544, %v2549
  %v2551 = vmul.f32 %v2545, %v2549
  %v2552 = vlaneseq
  %v2553 = vshrl.u32 %v2552, 7
  %v2554 = vsub.s32 5, %v2553
  %v2555 = vrot.slane %v20, %v2554
  %v2556 = vadd.f32 %v2550, %v2555
  %v2557 = vadd.f32 %v2551, %v2555
  %v2558 = vlaneseq
  %v2559 = vshrl.u32 %v2558, 7
  %v2560 = vsub.s32 6, %v2559
  %v2561 = vrot.slane %v20, %v2560
  %v2563 = vsel %vm145, %v2556, 0
  %v2566 = vsel %vm145, %v2557, 0
  %2568 = vmatprep.subr.mxu0 0.0
  %2569 = vmatpush1.msra.mxu0 0.0
  %2570 = vmatprep.subr.mxu0 0.0
  %2571 = vmatpush1.msra.mxu0 0.0
  %2572 = vmatprep.subr.mxu0 0.0
  %2573 = vmatpush1.msra.mxu0 0.0
  %2574 = vmatprep.subr.mxu0 0.0
  %2575 = vmatpush1.msra.mxu0 0.0
  %2576 = vmatprep.subr.mxu0 0.0
  %2577 = vmatpush1.msra.mxu0 0.0
  %2578 = vmatprep.subr.mxu0 0.0
  %2579 = vmatpush1.msra.mxu0 0.0
  %2580 = vmatprep.subr.mxu0 0.0
  %2581 = vmatpush1.msra.mxu0 0.0
  %2582 = vmatprep.subr.mxu0 0.0
  %2583 = vmatpush1.msra.mxu0 0.0
  %2584 = vmatprep.subr.mxu0 0.0
  %2585 = vmatpush1.msra.mxu0 0.0
  %2586 = vmatprep.subr.mxu0 0.0
  %2587 = vmatpush1.msra.mxu0 0.0
  %2588 = vmatprep.subr.mxu0 0.0
  %2589 = vmatpush1.msra.mxu0 0.0
  %2590 = vmatprep.subr.mxu0 0.0
  %2591 = vmatpush1.msra.mxu0 0.0
  %2592 = vmatprep.subr.mxu0 0.0
  %2593 = vmatpush1.msra.mxu0 %v1439
  %2594 = vmatprep.subr.mxu0 0.0
  %2595 = vmatpush1.msra.mxu0 %v1436
  %2596 = vmatprep.subr.mxu0 0.0
  %2597 = vmatpush1.msra.mxu0 %v1433
  %2598 = vmatprep.subr.mxu0 0.0
  %2599 = vmatpush1.msra.mxu0 %v1430
  %2600 = vmatprep.subr.mxu0 0.0
  %2601 = vmatpush2.msra.mxu0 0.0
  %2602 = vmatprep.subr.mxu0 0.0
  %2603 = vmatpush2.msra.mxu0 0.0
  %2604 = vmatprep.subr.mxu0 0.0
  %2605 = vmatpush2.msra.mxu0 0.0
  %2606 = vmatprep.subr.mxu0 0.0
  %2607 = vmatpush2.msra.mxu0 0.0
  %2608 = vmatprep.subr.mxu0 0.0
  %2609 = vmatpush2.msra.mxu0 0.0
  %2610 = vmatprep.subr.mxu0 0.0
  %2611 = vmatpush2.msra.mxu0 0.0
  %2612 = vmatprep.subr.mxu0 0.0
  %2613 = vmatpush2.msra.mxu0 0.0
  %2614 = vmatprep.subr.mxu0 0.0
  %2615 = vmatpush2.msra.mxu0 0.0
  %2616 = vmatprep.subr.mxu0 0.0
  %2617 = vmatpush2.msra.mxu0 0.0
  %2618 = vmatprep.subr.mxu0 0.0
  %2619 = vmatpush2.msra.mxu0 0.0
  %2620 = vmatprep.subr.mxu0 0.0
  %2621 = vmatpush2.msra.mxu0 0.0
  %2622 = vmatprep.subr.mxu0 0.0
  %2623 = vmatpush2.msra.mxu0 0.0
  %2624 = vmatprep.subr.mxu0 0.0
  %2625 = vmatpush2.msra.mxu0 0.0
  %2626 = vmatprep.subr.mxu0 0.0
  %2627 = vmatpush2.msra.mxu0 0.0
  %2628 = vmatprep.subr.mxu0 0.0
  %2629 = vmatpush2.msra.mxu0 0.0
  %2630 = vmatprep.subr.mxu0 0.0
  %2631 = vmatpush2.msra.mxu0 0.0
  %2632 = vmatprep.mubr.f32.mxu0 0.0
  %2633 = vmatmul.mubr.f32.gmra.mxu0 %v2563
  %v2634 = vpop.f32.mrf.mxu0
  %v2635 = vadd.f32 %v2561, %v2634
  %v2636 = vpop.f32.mrf.mxu0
  %2637 = vmatprep.mubr.f32.mxu0 0.0
  %2638 = vmatmul.mubr.f32.gmra.mxu0 %v2566
  %v2639 = vpop.f32.mrf.mxu0
  %v2640 = vadd.f32 %v2561, %v2639
  %v2641 = vpop.f32.mrf.mxu0
  %2642 = vdwg.mxu0
  %v2643 = vmul.f32 %v2635, 0.5
  %v2644 = vmul.f32 %v2640, 0.5
  %v2645 = vmul.f32 %v2635, 0.70710677
  %v2646 = vmul.f32 %v2640, 0.70710677
  %v2647 = verf.f32.pop %v2645
  %v2648 = verf.f32.pop %v2646
  %v2649 = vadd.f32 %v2647, 1.0
  %v2650 = vadd.f32 %v2648, 1.0
  %v2651 = vmul.f32 %v2643, %v2649
  %v2652 = vmul.f32 %v2644, %v2650
  %2653 = vmatprep.subr.mxu0 0.0
  %2654 = vmatpush1.msra.mxu0 %v1457
  %2655 = vmatprep.subr.mxu0 0.0
  %2656 = vmatpush1.msra.mxu0 %v1456
  %2657 = vmatprep.subr.mxu0 0.0
  %2658 = vmatpush1.msra.mxu0 %v1455
  %2659 = vmatprep.subr.mxu0 0.0
  %2660 = vmatpush1.msra.mxu0 %v1454
  %2661 = vmatprep.subr.mxu0 0.0
  %2662 = vmatpush1.msra.mxu0 %v1453
  %2663 = vmatprep.subr.mxu0 0.0
  %2664 = vmatpush1.msra.mxu0 %v1452
  %2665 = vmatprep.subr.mxu0 0.0
  %2666 = vmatpush1.msra.mxu0 %v1451
  %2667 = vmatprep.subr.mxu0 0.0
  %2668 = vmatpush1.msra.mxu0 %v1450
  %2669 = vmatprep.subr.mxu0 0.0
  %2670 = vmatpush1.msra.mxu0 %v1449
  %2671 = vmatprep.subr.mxu0 0.0
  %2672 = vmatpush1.msra.mxu0 %v1448
  %2673 = vmatprep.subr.mxu0 0.0
  %2674 = vmatpush1.msra.mxu0 %v1447
  %2675 = vmatprep.subr.mxu0 0.0
  %2676 = vmatpush1.msra.mxu0 %v1446
  %2677 = vmatprep.subr.mxu0 0.0
  %2678 = vmatpush1.msra.mxu0 %v1445
  %2679 = vmatprep.subr.mxu0 0.0
  %2680 = vmatpush1.msra.mxu0 %v1444
  %2681 = vmatprep.subr.mxu0 0.0
  %2682 = vmatpush1.msra.mxu0 %v1443
  %2683 = vmatprep.subr.mxu0 0.0
  %2684 = vmatpush1.msra.mxu0 %v1442
  %2685 = vmatprep.subr.mxu0 0.0
  %2686 = vmatpush2.msra.mxu0 0.0
  %2687 = vmatprep.subr.mxu0 0.0
  %2688 = vmatpush2.msra.mxu0 0.0
  %2689 = vmatprep.subr.mxu0 0.0
  %2690 = vmatpush2.msra.mxu0 0.0
  %2691 = vmatprep.subr.mxu0 0.0
  %2692 = vmatpush2.msra.mxu0 0.0
  %2693 = vmatprep.subr.mxu0 0.0
  %2694 = vmatpush2.msra.mxu0 0.0
  %2695 = vmatprep.subr.mxu0 0.0
  %2696 = vmatpush2.msra.mxu0 0.0
  %2697 = vmatprep.subr.mxu0 0.0
  %2698 = vmatpush2.msra.mxu0 0.0
  %2699 = vmatprep.subr.mxu0 0.0
  %2700 = vmatpush2.msra.mxu0 0.0
  %2701 = vmatprep.subr.mxu0 0.0
  %2702 = vmatpush2.msra.mxu0 0.0
  %2703 = vmatprep.subr.mxu0 0.0
  %2704 = vmatpush2.msra.mxu0 0.0
  %2705 = vmatprep.subr.mxu0 0.0
  %2706 = vmatpush2.msra.mxu0 0.0
  %2707 = vmatprep.subr.mxu0 0.0
  %2708 = vmatpush2.msra.mxu0 0.0
  %2709 = vmatprep.subr.mxu0 0.0
  %2710 = vmatpush2.msra.mxu0 0.0
  %2711 = vmatprep.subr.mxu0 0.0
  %2712 = vmatpush2.msra.mxu0 0.0
  %2713 = vmatprep.subr.mxu0 0.0
  %2714 = vmatpush2.msra.mxu0 0.0
  %2715 = vmatprep.subr.mxu0 0.0
  %2716 = vmatpush2.msra.mxu0 0.0
  %2717 = vmatprep.mubr.f32.mxu0 0.0
  %2718 = vmatmul.mubr.f32.gmra.mxu0 %v2651
  %v2719 = vpop.f32.mrf.mxu0
  %v2720 = vadd.f32 0.0, %v2719
  %v2721 = vpop.f32.mrf.mxu0
  %2722 = vmatprep.mubr.f32.mxu0 0.0
  %2723 = vmatmul.mubr.f32.gmra.mxu0 %v2652
  %v2724 = vpop.f32.mrf.mxu0
  %v2725 = vadd.f32 0.0, %v2724
  %v2726 = vpop.f32.mrf.mxu0
  %2727 = vdwg.mxu0
  %v2728 = vadd.f32 %v2518, %v2720
  %v2729 = vadd.f32 %v2519, %v2725
  %v2730 = vlaneseq
  %v2731 = vshrl.u32 %v2730, 7
  %v2732 = vsub.s32 7, %v2731
  %v2733 = vrot.slane %v20, %v2732
  %v2734 = vadd.f32 %v2728, %v2733
  %v2735 = vadd.f32 %v2729, %v2733
  %v2736 = vsel %vm145, %v2734, 0.0
  %2737 = vadd.xlane.f32.xlu0 %v2736
  %v2738 = vpop.xlane.xlu0 %2737
  %v2739 = vsel %vm145, %v2735, 0.0
  %2740 = vadd.xlane.f32.xlu0 %v2739
  %v2741 = vpop.xlane.xlu0 %2740
  %v2742 = vmul.f32 %v2738, %v152
  %v2743 = vmul.f32 %v2741, %v152
  %v2744 = vsub.f32 %v2734, %v2742
  %v2745 = vsub.f32 %v2735, %v2743
  %v2746 = vmul.f32 %v2744, %v2744
  %v2747 = vmul.f32 %v2745, %v2745
  %v2748 = vsel %vm145, %v2746, 0.0
  %2749 = vadd.xlane.f32.xlu0 %v2748
  %v2750 = vpop.xlane.xlu0 %2749
  %v2751 = vsel %vm145, %v2747, 0.0
  %2752 = vadd.xlane.f32.xlu0 %v2751
  %v2753 = vpop.xlane.xlu0 %2752
  %v2754 = vmul.f32 %v2750, %v152
  %v2755 = vmul.f32 %v2753, %v152
  %v2756 = vadd.f32 %v2754, 1e-05
  %v2757 = vadd.f32 %v2755, 1e-05
  %v2758 = vrsqrt.pop %v2756
  %v2759 = vrsqrt.pop %v2757
  %v2760 = vmul.f32 %v2744, %v2758
  %v2761 = vmul.f32 %v2745, %v2759
  %v2762 = vlaneseq
  %v2763 = vshrl.u32 %v2762, 7
  %v2764 = vsub.s32 5, %v2763
  %v2765 = vrot.slane %v17, %v2764
  %v2766 = vmul.f32 %v2760, %v2765
  %v2767 = vmul.f32 %v2761, %v2765
  %v2768 = vlaneseq
  %v2769 = vshrl.u32 %v2768, 7
  %v2770 = vsub.s32 6, %v2769
  %v2771 = vrot.slane %v17, %v2770
  %v2772 = vadd.f32 %v2766, %v2771
  %v2773 = vadd.f32 %v2767, %v2771
  %2774 = vxpose.xlu0.b32.start [1/16] %v2772, 128
  %2775 = vxpose.xlu0.b32.cont [2/16] 0.0, 128
  %2776 = vxpose.xlu0.b32.cont [3/16] 0.0, 128
  %2777 = vxpose.xlu0.b32.cont [4/16] 0.0, 128
  %2778 = vxpose.xlu0.b32.cont [5/16] 0.0, 128
  %2779 = vxpose.xlu0.b32.cont [6/16] 0.0, 128
  %2780 = vxpose.xlu0.b32.cont [7/16] 0.0, 128
  %2781 = vxpose.xlu0.b32.cont [8/16] 0.0, 128
  %2782 = vxpose.xlu0.b32.cont [9/16] 0.0, 128
  %2783 = vxpose.xlu0.b32.cont [10/16] 0.0, 128
  %2784 = vxpose.xlu0.b32.cont [11/16] 0.0, 128
  %2785 = vxpose.xlu0.b32.cont [12/16] 0.0, 128
  %2786 = vxpose.xlu0.b32.cont [13/16] 0.0, 128
  %2787 = vxpose.xlu0.b32.cont [14/16] 0.0, 128
  %2788 = vxpose.xlu0.b32.cont [15/16] 0.0, 128
  %2789 = vxpose.xlu0.b32.end [16/16] 0.0, 128
  %v2790 = vpop.trf.xlu0
  %v2791 = vpop.trf.xlu0
  %v2792 = vpop.trf.xlu0
  %v2793 = vpop.trf.xlu0
  %v2794 = vpop.trf.xlu0
  %v2795 = vpop.trf.xlu0
  %v2796 = vpop.trf.xlu0
  %v2797 = vpop.trf.xlu0
  %v2798 = vpop.trf.xlu0
  %v2799 = vpop.trf.xlu0
  %v2800 = vpop.trf.xlu0
  %v2801 = vpop.trf.xlu0
  %v2802 = vpop.trf.xlu0
  %v2803 = vpop.trf.xlu0
  %v2804 = vpop.trf.xlu0
  %v2805 = vpop.trf.xlu0
  %2806 = vst.msk [vmem:[%s4] sm:$0xff] %vm302, %v2790
  %2807 = vst.msk [vmem:[%s4 + $0x8] sm:$0xff] %vm302, %v2791
  %2808 = vst.msk [vmem:[%s4 + $0x10] sm:$0xff] %vm302, %v2792
  %2809 = vst.msk [vmem:[%s4 + $0x18] sm:$0xff] %vm302, %v2793
  %2810 = vxpose.xlu0.b32.start [1/16] %v2773, 128
  %2811 = vxpose.xlu0.b32.cont [2/16] 0.0, 128
  %2812 = vxpose.xlu0.b32.cont [3/16] 0.0, 128
  %2813 = vxpose.xlu0.b32.cont [4/16] 0.0, 128
  %2814 = vxpose.xlu0.b32.cont [5/16] 0.0, 128
  %2815 = vxpose.xlu0.b32.cont [6/16] 0.0, 128
  %2816 = vxpose.xlu0.b32.cont [7/16] 0.0, 128
  %2817 = vxpose.xlu0.b32.cont [8/16] 0.0, 128
  %2818 = vxpose.xlu0.b32.cont [9/16] 0.0, 128
  %2819 = vxpose.xlu0.b32.cont [10/16] 0.0, 128
  %2820 = vxpose.xlu0.b32.cont [11/16] 0.0, 128
  %2821 = vxpose.xlu0.b32.cont [12/16] 0.0, 128
  %2822 = vxpose.xlu0.b32.cont [13/16] 0.0, 128
  %2823 = vxpose.xlu0.b32.cont [14/16] 0.0, 128
  %2824 = vxpose.xlu0.b32.cont [15/16] 0.0, 128
  %2825 = vxpose.xlu0.b32.end [16/16] 0.0, 128
  %v2826 = vpop.trf.xlu0
  %v2827 = vpop.trf.xlu0
  %v2828 = vpop.trf.xlu0
  %v2829 = vpop.trf.xlu0
  %v2830 = vpop.trf.xlu0
  %v2831 = vpop.trf.xlu0
  %v2832 = vpop.trf.xlu0
  %v2833 = vpop.trf.xlu0
  %v2834 = vpop.trf.xlu0
  %v2835 = vpop.trf.xlu0
  %v2836 = vpop.trf.xlu0
  %v2837 = vpop.trf.xlu0
  %v2838 = vpop.trf.xlu0
  %v2839 = vpop.trf.xlu0
  %v2840 = vpop.trf.xlu0
  %v2841 = vpop.trf.xlu0
  %s2842 = scalar_lea.vmem %s4, 32
  %2843 = vst.msk [vmem:[%s2842] sm:$0xff] %vm302, %v2826
  %2844 = vst.msk [vmem:[%s2842 + $0x8] sm:$0xff] %vm302, %v2827
  %2845 = vst.msk [vmem:[%s2842 + $0x10] sm:$0xff] %vm302, %v2828
  %2846 = vst.msk [vmem:[%s2842 + $0x18] sm:$0xff] %vm302, %v2829
  // Predicated region
  $region18: #{tpu_custom_call.1} parent=0 // pred_check
    _
  $region19: #{tpu_custom_call.1} parent=0 // pred_check_branch
    %2848 = sbr.rel (0) target = $region21
  $region20: #{tpu_custom_call.1} parent=0 // pred_region
    _
  $region21: #{tpu_custom_call.1} parent=0 // pred_fallthru
    _
  // Predicated region
  $region22: #{tpu_custom_call.1} parent=0 // pred_check
    _
  $region23: #{tpu_custom_call.1} parent=0 // pred_check_branch
    %2850 = sbr.rel (0) target = $region25
  $region24: #{tpu_custom_call.1} parent=0 // pred_region
    _
  $region25: #{tpu_custom_call.1} parent=0 // pred_fallthru
    _

</llo_original>
